<compile_context>
chip_gen: v5e
topology: v5e:2x2
jax: 0.10.0
libtpu: 0.0.40
codegen_flags: <defaults>
</compile_context>

<pallas_src>
import functools

import jax
import jax.numpy as jnp
from jax.experimental import pallas as pl
from jax.experimental.pallas import tpu as pltpu


def _round_up(v, m):
    return ((v + m - 1) // m) * m


def _nary_tree_lstm_kernel(x_ref, *refs, N, H, matmul_dtype):
    """refs = (h_0..h_{N-1}, c_0..c_{N-1}, W_fused, b_fused, U_hid, U_f, sel, out)."""
    f32 = jnp.float32
    md = matmul_dtype

    h_refs = refs[:N]
    c_refs = refs[N:2 * N]
    w_ref, b_ref, uh_ref, uf_ref, sel_ref, out_ref = refs[2 * N:]

    x = x_ref[...].astype(md)                                      # (TN, I)

    # Fused input projection: one (TN, I) @ (I, 4H) MXU matmul + fused bias.
    wx = jnp.dot(x, w_ref[...].astype(md), preferred_element_type=f32)
    wx = wx + b_ref[...].astype(f32)                               # (TN, 4H)
    wi = wx[:, 0 * H:1 * H]
    wf = wx[:, 1 * H:2 * H]
    wo = wx[:, 2 * H:3 * H]
    wu = wx[:, 3 * H:4 * H]

    # Concatenate the streamed child states once in VMEM (no host concat, no
    # extra HBM traffic) and run one wide matmul per fused weight matrix.
    h_cat = jnp.concatenate([h_refs[k][...].astype(md) for k in range(N)],
                            axis=-1)                               # (TN, NH)
    c_cat = jnp.concatenate([c_refs[k][...].astype(f32) for k in range(N)],
                            axis=-1)                               # (TN, NH) f32 for gates

    #   U_hid = [U_i | U_o | U_u]  (NH, 3H)  applied to hidden states
    #   U_f                        (NH, NH)  applied to *cell* states
    #                                        (exactly as in the PyTorch ref).
    uh = jnp.dot(h_cat, uh_ref[...].astype(md),
                 preferred_element_type=f32)                       # (TN, 3H)
    uf = jnp.dot(c_cat.astype(md), uf_ref[...].astype(md),
                 preferred_element_type=f32)                       # (TN, NH)

    ui = uh[:, 0 * H:1 * H]
    uo = uh[:, 1 * H:2 * H]
    uu = uh[:, 2 * H:3 * H]

    # Elementwise gate math kept in f32 (v5e has no bf16 VPU/EUP).
    i = jax.nn.sigmoid(wi + ui)
    o = jax.nn.sigmoid(wo + uo)
    u = jnp.tanh(wu + uu)

    # Full-width forget gates over all N children, then reduce the N children
    # with one f32 MXU matmul against the stacked identity (NH, H) — avoids
    # per-child lane-sliced selects on the VPU path.
    f_all = jax.nn.sigmoid(jnp.tile(wf, (1, N)) + uf)              # (TN, NH)
    fc_sum = jnp.dot(f_all * c_cat, sel_ref[...].astype(f32),
                     preferred_element_type=f32)                   # (TN, H)

    c_new = i * u + fc_sum
    h_new = o * jnp.tanh(c_new)

    # Lane-dense single output slab [h_new | c_new].
    out_ref[...] = jnp.concatenate([h_new, c_new], axis=-1).astype(out_ref.dtype)


def nary_tree_lstm_forward(x, hidden_tuple, cell_tuple, params, *, N, hidden_size,
                           tile_nodes=256, matmul_dtype=jnp.float32,
                           vmem_limit_bytes=None):
    """Pallas-backed forward of NaryTreeLSTM.

    Args:
      x:            (n_nodes, input_size)
      hidden_tuple: tuple of N arrays, each (n_nodes, hidden_size)
      cell_tuple:   tuple of N arrays, each (n_nodes, hidden_size)
      params: dict with keys W_i, W_f, W_o, W_u  -> (input_size, H)   (pre-transposed)
                             b_i, b_f, b_o, b_u  -> (1, H)
                             U_i, U_o, U_u       -> (N*H, H)
                             U_f                 -> (N*H, N*H)
      tile_nodes:   node-axis tile (128+ recommended; 256-512 on v6e/v7x).
      matmul_dtype: dtype of MXU matmul operands (jnp.bfloat16 on v6e/v7x for
                    ~2x MXU throughput; gate math always stays f32).
      vmem_limit_bytes: optional override for Mosaic's scoped VMEM limit
                    (useful on v7x if N*H and tile_nodes are large).

    Returns:
      (hidden_new, cell_new), each (n_nodes, hidden_size)
    """
    n_nodes, input_size = x.shape
    H = hidden_size
    NH = N * H
    assert len(hidden_tuple) == N and len(cell_tuple) == N

    # ---- pack gate weights once (tiny, weight-only ops; not node data) ----
    w_fused = jnp.concatenate(
        [params["W_i"], params["W_f"], params["W_o"], params["W_u"]], axis=1)  # (I, 4H)
    b_fused = jnp.concatenate(
        [params["b_i"], params["b_f"], params["b_o"], params["b_u"]], axis=1)  # (1, 4H)
    u_hid = jnp.concatenate(
        [params["U_i"], params["U_o"], params["U_u"]], axis=1)                 # (NH, 3H)
    u_f = params["U_f"]                                                        # (NH, NH)
    sel = jnp.tile(jnp.eye(H, dtype=jnp.float32), (N, 1))                      # (NH, H)

    # ---- tile / pad the node axis so arbitrary n_nodes work ----
    tile = max(8, min(int(tile_nodes), _round_up(n_nodes, 8)))
    n_pad = _round_up(n_nodes, tile)
    pad = n_pad - n_nodes

    def pad_nodes(a):
        return jnp.pad(a, ((0, pad), (0, 0))) if pad else a

    x_p = pad_nodes(x)
    h_p = [pad_nodes(h) for h in hidden_tuple]
    c_p = [pad_nodes(c) for c in cell_tuple]

    grid = (n_pad // tile,)

    node_spec = lambda feat: pl.BlockSpec((tile, feat), lambda i: (i, 0))
    full_spec = lambda r, c: pl.BlockSpec((r, c), lambda i: (0, 0))

    kernel = functools.partial(
        _nary_tree_lstm_kernel, N=N, H=H, matmul_dtype=matmul_dtype)

    compiler_kwargs = dict(dimension_semantics=("parallel",))
    if vmem_limit_bytes is not None:
        compiler_kwargs["vmem_limit_bytes"] = int(vmem_limit_bytes)
    # Note (v7x): with very large N*H the (NH, NH) U_f block is the VMEM hot
    # spot; shrink tile_nodes and/or raise vmem_limit_bytes there.

    out = pl.pallas_call(
        kernel,
        out_shape=jax.ShapeDtypeStruct((n_pad, 2 * H), x.dtype),
        grid_spec=pltpu.PrefetchScalarGridSpec(
            num_scalar_prefetch=0,
            grid=grid,
            in_specs=(
                [node_spec(input_size)]            # x
                + [node_spec(H)] * N               # per-child hidden (no host concat)
                + [node_spec(H)] * N               # per-child cell   (no host concat)
                + [
                    full_spec(input_size, 4 * H),  # fused W  [W_i|W_f|W_o|W_u]
                    full_spec(1, 4 * H),           # fused bias
                    full_spec(NH, 3 * H),          # fused U  [U_i|U_o|U_u]
                    full_spec(NH, NH),             # U_f
                    full_spec(NH, H),              # stacked identity (child reduction)
                ]
            ),
            out_specs=pl.BlockSpec((tile, 2 * H), lambda i: (i, 0)),
        ),
        compiler_params=pltpu.CompilerParams(**compiler_kwargs),
    )(x_p, *h_p, *c_p, w_fused, b_fused, u_hid, u_f, sel)

    out = out[:n_nodes]
    return out[:, :H], out[:, H:]


def _reference_forward(x, hidden_tuple, cell_tuple, params, *, N, hidden_size):
    """Pure-JAX reference mirroring the PyTorch code, for verification."""
    H = hidden_size
    h = jnp.concatenate(hidden_tuple, axis=-1)
    c = jnp.concatenate(cell_tuple, axis=-1)
    n_nodes = h.shape[-2]

    def lin(v, w, b=None):
        y = v @ w
        return y + b if b is not None else y

    i = jax.nn.sigmoid(lin(x, params["W_i"], params["b_i"]) + lin(h, params["U_i"]))
    f = jax.nn.sigmoid(
        lin(x, params["W_f"], params["b_f"])[:, None, :]
        + lin(c, params["U_f"]).reshape(n_nodes, N, H)
    )
    o = jax.nn.sigmoid(lin(x, params["W_o"], params["b_o"]) + lin(h, params["U_o"]))
    u = jnp.tanh(lin(x, params["W_u"], params["b_u"]) + lin(h, params["U_u"]))
    c_new = i * u + (f * c.reshape(n_nodes, N, H)).sum(axis=-2)
    h_new = o * jnp.tanh(c_new)
    return h_new, c_new


def init_params(key, N, input_size, hidden_size, dtype=jnp.float32):
    """Deterministic synthetic parameter init (Linear weights pre-transposed)."""
    H = hidden_size
    NH = N * H
    keys = jax.random.split(key, 12)
    s = 0.1
    return {
        "W_i": jax.random.normal(keys[0], (input_size, H), dtype) * s,
        "W_f": jax.random.normal(keys[1], (input_size, H), dtype) * s,
        "W_o": jax.random.normal(keys[2], (input_size, H), dtype) * s,
        "W_u": jax.random.normal(keys[3], (input_size, H), dtype) * s,
        "b_i": jax.random.normal(keys[4], (1, H), dtype) * s,
        "b_f": jax.random.normal(keys[5], (1, H), dtype) * s,
        "b_o": jax.random.normal(keys[6], (1, H), dtype) * s,
        "b_u": jax.random.normal(keys[7], (1, H), dtype) * s,
        "U_i": jax.random.normal(keys[8], (NH, H), dtype) * s,
        "U_f": jax.random.normal(keys[9], (NH, NH), dtype) * s,
        "U_o": jax.random.normal(keys[10], (NH, H), dtype) * s,
        "U_u": jax.random.normal(keys[11], (NH, H), dtype) * s,
    }


if __name__ == "__main__":
    N = 2               # max number of ordered children
    input_size = 16
    hidden_size = 32
    n_nodes = 1000      # deliberately NOT a multiple of the tile -> exercises padding

    key = jax.random.PRNGKey(0)
    k_param, k_x, k_h, k_c = jax.random.split(key, 4)

    params = init_params(k_param, N, input_size, hidden_size)

    x = jax.random.normal(k_x, (n_nodes, input_size), jnp.float32)
    hidden = tuple(
        jax.random.normal(jax.random.fold_in(k_h, k), (n_nodes, hidden_size), jnp.float32)
        for k in range(N)
    )
    cell = tuple(
        jax.random.normal(jax.random.fold_in(k_c, k), (n_nodes, hidden_size), jnp.float32)
        for k in range(N)
    )

    # f32 MXU path (exact).
    h_out, c_out = nary_tree_lstm_forward(
        x, hidden, cell, params, N=N, hidden_size=hidden_size, tile_nodes=256)
    jax.block_until_ready((h_out, c_out))

    h_ref, c_ref = _reference_forward(
        x, hidden, cell, params, N=N, hidden_size=hidden_size)
    assert h_out.shape == (n_nodes, hidden_size) and c_out.shape == (n_nodes, hidden_size)
    assert jnp.allclose(h_out, h_ref, atol=1e-4, rtol=1e-4)
    assert jnp.allclose(c_out, c_ref, atol=1e-4, rtol=1e-4)

    # bf16 MXU-operand path (v6e / v7x): matmuls in bf16, gate math stays f32.
    h_bf, c_bf = nary_tree_lstm_forward(
        x, hidden, cell, params, N=N, hidden_size=hidden_size,
        tile_nodes=256, matmul_dtype=jnp.bfloat16)
    jax.block_until_ready((h_bf, c_bf))
    assert jnp.allclose(h_bf, h_ref, atol=5e-2, rtol=5e-2)
    assert jnp.allclose(c_bf, c_ref, atol=5e-2, rtol=5e-2)

    print("KERNEL_OK")
</pallas_src>

<mosaic_0001>
module attributes {stable_mosaic.version = 11 : i64} {
  func.func @_nary_tree_lstm_kernel(%arg0: i32, %arg1: memref<256x16xf32, #tpu.memory_space<vmem>>, %arg2: memref<256x32xf32, #tpu.memory_space<vmem>>, %arg3: memref<256x32xf32, #tpu.memory_space<vmem>>, %arg4: memref<256x32xf32, #tpu.memory_space<vmem>>, %arg5: memref<256x32xf32, #tpu.memory_space<vmem>>, %arg6: memref<16x128xf32, #tpu.memory_space<vmem>>, %arg7: memref<1x128xf32, #tpu.memory_space<vmem>>, %arg8: memref<64x96xf32, #tpu.memory_space<vmem>>, %arg9: memref<64x64xf32, #tpu.memory_space<vmem>>, %arg10: memref<64x32xf32, #tpu.memory_space<vmem>>, %arg11: memref<256x64xf32, #tpu.memory_space<vmem>>) attributes {dimension_semantics = [#tpu.dimension_semantics<parallel>], iteration_bounds = array<i64: 4>, scalar_prefetch = 0 : i64, scratch_operands = 0 : i64, tpu.core_type = #tpu.core_type<tc>, window_params = [{transform_indices = @transform_0, window_bounds = array<i64: 256, 16>}, {transform_indices = @transform_1, window_bounds = array<i64: 256, 32>}, {transform_indices = @transform_2, window_bounds = array<i64: 256, 32>}, {transform_indices = @transform_3, window_bounds = array<i64: 256, 32>}, {transform_indices = @transform_4, window_bounds = array<i64: 256, 32>}, {pipeline_mode = #tpu.pipeline_mode<synchronous>, transform_indices = @transform_5, window_bounds = array<i64: 16, 128>}, {pipeline_mode = #tpu.pipeline_mode<synchronous>, transform_indices = @transform_6, window_bounds = array<i64: 1, 128>}, {pipeline_mode = #tpu.pipeline_mode<synchronous>, transform_indices = @transform_7, window_bounds = array<i64: 64, 96>}, {pipeline_mode = #tpu.pipeline_mode<synchronous>, transform_indices = @transform_8, window_bounds = array<i64: 64, 64>}, {pipeline_mode = #tpu.pipeline_mode<synchronous>, transform_indices = @transform_9, window_bounds = array<i64: 64, 32>}, {transform_indices = @transform_10, window_bounds = array<i64: 256, 64>}]} {
    %c0 = arith.constant 0 : index
    %c0_0 = arith.constant 0 : index
    %0 = vector.load %arg1[%c0, %c0_0] : memref<256x16xf32, #tpu.memory_space<vmem>>, vector<256x16xf32>
    %c0_1 = arith.constant 0 : index
    %c0_2 = arith.constant 0 : index
    %1 = vector.load %arg6[%c0_1, %c0_2] : memref<16x128xf32, #tpu.memory_space<vmem>>, vector<16x128xf32>
    %cst = arith.constant dense<0.000000e+00> : vector<256x128xf32>
    %2 = tpu.matmul %0, %1, %cst {dimension_numbers = #tpu.dot_dimension_numbers<[1], [0], [0], [1], [0, 0, 1, 1], [], []>} : vector<256x16xf32>, vector<16x128xf32>, vector<256x128xf32> -> vector<256x128xf32>
    %c0_3 = arith.constant 0 : index
    %c0_4 = arith.constant 0 : index
    %3 = vector.load %arg7[%c0_3, %c0_4] : memref<1x128xf32, #tpu.memory_space<vmem>>, vector<1x128xf32>
    %4 = vector.broadcast %3 : vector<1x128xf32> to vector<256x128xf32>
    %5 = arith.addf %2, %4 : vector<256x128xf32>
    %6 = vector.extract_strided_slice %5 {offsets = [0, 0], sizes = [256, 32], strides = [1, 1]} : vector<256x128xf32> to vector<256x32xf32>
    %7 = vector.extract_strided_slice %5 {offsets = [0, 32], sizes = [256, 32], strides = [1, 1]} : vector<256x128xf32> to vector<256x32xf32>
    %8 = vector.extract_strided_slice %5 {offsets = [0, 64], sizes = [256, 32], strides = [1, 1]} : vector<256x128xf32> to vector<256x32xf32>
    %9 = vector.extract_strided_slice %5 {offsets = [0, 96], sizes = [256, 32], strides = [1, 1]} : vector<256x128xf32> to vector<256x32xf32>
    %c0_5 = arith.constant 0 : index
    %c0_6 = arith.constant 0 : index
    %10 = vector.load %arg2[%c0_5, %c0_6] : memref<256x32xf32, #tpu.memory_space<vmem>>, vector<256x32xf32>
    %c0_7 = arith.constant 0 : index
    %c0_8 = arith.constant 0 : index
    %11 = vector.load %arg3[%c0_7, %c0_8] : memref<256x32xf32, #tpu.memory_space<vmem>>, vector<256x32xf32>
    %12 = tpu.concatenate %10, %11 in 1 : vector<256x32xf32>, vector<256x32xf32> -> vector<256x64xf32>
    %c0_9 = arith.constant 0 : index
    %c0_10 = arith.constant 0 : index
    %13 = vector.load %arg4[%c0_9, %c0_10] : memref<256x32xf32, #tpu.memory_space<vmem>>, vector<256x32xf32>
    %c0_11 = arith.constant 0 : index
    %c0_12 = arith.constant 0 : index
    %14 = vector.load %arg5[%c0_11, %c0_12] : memref<256x32xf32, #tpu.memory_space<vmem>>, vector<256x32xf32>
    %15 = tpu.concatenate %13, %14 in 1 : vector<256x32xf32>, vector<256x32xf32> -> vector<256x64xf32>
    %c0_13 = arith.constant 0 : index
    %c0_14 = arith.constant 0 : index
    %16 = vector.load %arg8[%c0_13, %c0_14] : memref<64x96xf32, #tpu.memory_space<vmem>>, vector<64x96xf32>
    %cst_15 = arith.constant dense<0.000000e+00> : vector<256x96xf32>
    %17 = tpu.matmul %12, %16, %cst_15 {dimension_numbers = #tpu.dot_dimension_numbers<[1], [0], [0], [1], [0, 0, 1, 1], [], []>} : vector<256x64xf32>, vector<64x96xf32>, vector<256x96xf32> -> vector<256x96xf32>
    %c0_16 = arith.constant 0 : index
    %c0_17 = arith.constant 0 : index
    %18 = vector.load %arg9[%c0_16, %c0_17] : memref<64x64xf32, #tpu.memory_space<vmem>>, vector<64x64xf32>
    %cst_18 = arith.constant dense<0.000000e+00> : vector<256x64xf32>
    %19 = tpu.matmul %15, %18, %cst_18 {dimension_numbers = #tpu.dot_dimension_numbers<[1], [0], [0], [1], [0, 0, 1, 1], [], []>} : vector<256x64xf32>, vector<64x64xf32>, vector<256x64xf32> -> vector<256x64xf32>
    %20 = vector.extract_strided_slice %17 {offsets = [0, 0], sizes = [256, 32], strides = [1, 1]} : vector<256x96xf32> to vector<256x32xf32>
    %21 = vector.extract_strided_slice %17 {offsets = [0, 32], sizes = [256, 32], strides = [1, 1]} : vector<256x96xf32> to vector<256x32xf32>
    %22 = vector.extract_strided_slice %17 {offsets = [0, 64], sizes = [256, 32], strides = [1, 1]} : vector<256x96xf32> to vector<256x32xf32>
    %23 = arith.addf %6, %20 : vector<256x32xf32>
    %24 = arith.negf %23 : vector<256x32xf32>
    %25 = math.exp %24 : vector<256x32xf32>
    %cst_19 = arith.constant 1.000000e+00 : f32
    %26 = vector.broadcast %cst_19 : f32 to vector<256x32xf32>
    %27 = arith.addf %26, %25 : vector<256x32xf32>
    %28 = arith.divf %26, %27 : vector<256x32xf32>
    %29 = arith.addf %8, %21 : vector<256x32xf32>
    %30 = arith.negf %29 : vector<256x32xf32>
    %31 = math.exp %30 : vector<256x32xf32>
    %cst_20 = arith.constant 1.000000e+00 : f32
    %32 = vector.broadcast %cst_20 : f32 to vector<256x32xf32>
    %33 = arith.addf %32, %31 : vector<256x32xf32>
    %34 = arith.divf %32, %33 : vector<256x32xf32>
    %35 = arith.addf %9, %22 : vector<256x32xf32>
    %36 = math.tanh %35 : vector<256x32xf32>
    %37 = tpu.concatenate %7, %7 in 1 : vector<256x32xf32>, vector<256x32xf32> -> vector<256x64xf32>
    %38 = arith.addf %37, %19 : vector<256x64xf32>
    %39 = arith.negf %38 : vector<256x64xf32>
    %40 = math.exp %39 : vector<256x64xf32>
    %cst_21 = arith.constant 1.000000e+00 : f32
    %41 = vector.broadcast %cst_21 : f32 to vector<256x64xf32>
    %42 = arith.addf %41, %40 : vector<256x64xf32>
    %43 = arith.divf %41, %42 : vector<256x64xf32>
    %44 = arith.mulf %43, %15 : vector<256x64xf32>
    %c0_22 = arith.constant 0 : index
    %c0_23 = arith.constant 0 : index
    %45 = vector.load %arg10[%c0_22, %c0_23] : memref<64x32xf32, #tpu.memory_space<vmem>>, vector<64x32xf32>
    %cst_24 = arith.constant dense<0.000000e+00> : vector<256x32xf32>
    %46 = tpu.matmul %44, %45, %cst_24 {dimension_numbers = #tpu.dot_dimension_numbers<[1], [0], [0], [1], [0, 0, 1, 1], [], []>} : vector<256x64xf32>, vector<64x32xf32>, vector<256x32xf32> -> vector<256x32xf32>
    %47 = arith.mulf %28, %36 : vector<256x32xf32>
    %48 = arith.addf %47, %46 : vector<256x32xf32>
    %49 = math.tanh %48 : vector<256x32xf32>
    %50 = arith.mulf %34, %49 : vector<256x32xf32>
    %51 = tpu.concatenate %50, %48 in 1 : vector<256x32xf32>, vector<256x32xf32> -> vector<256x64xf32>
    %c0_25 = arith.constant 0 : index
    %c0_26 = arith.constant 0 : index
    %52 = vector.load %arg11[%c0_25, %c0_26] : memref<256x64xf32, #tpu.memory_space<vmem>>, vector<256x64xf32>
    tpu.vector_store %arg11[%c0_25, %c0_26], %51 {strides = array<i32>} : memref<256x64xf32, #tpu.memory_space<vmem>>, vector<256x64xf32>,
    return
  }
  func.func @transform_0(%arg0: i32) -> (i32, i32) {
    %c0_i32 = arith.constant 0 : i32
    %c0_i32_0 = arith.constant 0 : i32
    return %arg0, %c0_i32 : i32, i32
  }
  func.func @transform_1(%arg0: i32) -> (i32, i32) {
    %c0_i32 = arith.constant 0 : i32
    %c0_i32_0 = arith.constant 0 : i32
    return %arg0, %c0_i32 : i32, i32
  }
  func.func @transform_2(%arg0: i32) -> (i32, i32) {
    %c0_i32 = arith.constant 0 : i32
    %c0_i32_0 = arith.constant 0 : i32
    return %arg0, %c0_i32 : i32, i32
  }
  func.func @transform_3(%arg0: i32) -> (i32, i32) {
    %c0_i32 = arith.constant 0 : i32
    %c0_i32_0 = arith.constant 0 : i32
    return %arg0, %c0_i32 : i32, i32
  }
  func.func @transform_4(%arg0: i32) -> (i32, i32) {
    %c0_i32 = arith.constant 0 : i32
    %c0_i32_0 = arith.constant 0 : i32
    return %arg0, %c0_i32 : i32, i32
  }
  func.func @transform_5(%arg0: i32) -> (i32, i32) {
    %c0_i32 = arith.constant 0 : i32
    %c0_i32_0 = arith.constant 0 : i32
    %c0_i32_1 = arith.constant 0 : i32
    return %c0_i32, %c0_i32_0 : i32, i32
  }
  func.func @transform_6(%arg0: i32) -> (i32, i32) {
    %c0_i32 = arith.constant 0 : i32
    %c0_i32_0 = arith.constant 0 : i32
    %c0_i32_1 = arith.constant 0 : i32
    return %c0_i32, %c0_i32_0 : i32, i32
  }
  func.func @transform_7(%arg0: i32) -> (i32, i32) {
    %c0_i32 = arith.constant 0 : i32
    %c0_i32_0 = arith.constant 0 : i32
    %c0_i32_1 = arith.constant 0 : i32
    return %c0_i32, %c0_i32_0 : i32, i32
  }
  func.func @transform_8(%arg0: i32) -> (i32, i32) {
    %c0_i32 = arith.constant 0 : i32
    %c0_i32_0 = arith.constant 0 : i32
    %c0_i32_1 = arith.constant 0 : i32
    return %c0_i32, %c0_i32_0 : i32, i32
  }
  func.func @transform_9(%arg0: i32) -> (i32, i32) {
    %c0_i32 = arith.constant 0 : i32
    %c0_i32_0 = arith.constant 0 : i32
    %c0_i32_1 = arith.constant 0 : i32
    return %c0_i32, %c0_i32_0 : i32, i32
  }
  func.func @transform_10(%arg0: i32) -> (i32, i32) {
    %c0_i32 = arith.constant 0 : i32
    %c0_i32_0 = arith.constant 0 : i32
    return %arg0, %c0_i32 : i32, i32
  }
}

</mosaic_0001>

<llo_original>
// kernel: tpu_custom_call.1
$region0: #{tpu_custom_call.1}
  #allocation0 [shape = 'u32[]', space=smem, size = 0x4, offset = 0x4, fixed_abs, tag = 'smem constant byte address 0x4 - core index']
  #allocation1 [shape = 'u32[72,128]{1,0:T(1,128)}', space=vmem, size = 0x9000, scoped, tag = 'internal scratch']
  %s0 = inlined_call_operand.vmem [shape: f32[1024,16], index: 0, kind: input, shape index: {}]
  %s1 = inlined_call_operand.vmem [shape: f32[1024,32], index: 1, kind: input, shape index: {}]
  %s2 = inlined_call_operand.vmem [shape: f32[1024,32], index: 2, kind: input, shape index: {}]
  %s3 = inlined_call_operand.vmem [shape: f32[1024,32], index: 3, kind: input, shape index: {}]
  %s4 = inlined_call_operand.vmem [shape: f32[1024,32], index: 4, kind: input, shape index: {}]
  %s5 = inlined_call_operand.vmem [shape: f32[16,128], index: 5, kind: input, shape index: {}]
  %s6 = inlined_call_operand.vmem [shape: f32[1,128], index: 6, kind: input, shape index: {}]
  %s7 = inlined_call_operand.vmem [shape: f32[64,96], index: 7, kind: input, shape index: {}]
  %s8 = inlined_call_operand.vmem [shape: f32[64,64], index: 8, kind: input, shape index: {}]
  %s9 = inlined_call_operand.vmem [shape: f32[64,32], index: 9, kind: input, shape index: {}]
  %s10 = inlined_call_operand.vmem [shape: f32[1024,64], index: 10, kind: output, shape index: {}]
  %s11 = sld [smem:[#allocation0]]
  $region73: #{tpu_custom_call.1} parent=0
    _
  %s13 = ssub.s32 1, %s11
  %s14 = scalar_select 0, %s13, %s11
  loop: start=0, step=1, limit=6
  $region2: #{tpu_custom_call.1} parent=0 // loop_pre_header
    _
  $region3: #{tpu_custom_call.1} parent=0 // loop_header
    %s16 = sphi 0, %s20
    %p17 = scmp.ge.s32.totalorder %s16, 6
    %s26 = sphi 0, %s28
    %s29 = sphi 0, %s26
    %s30 = sphi 0, %s29
    %s46 = sphi 0, %s30
    %s52 = sphi 0, %s54
    %s55 = sphi 0, %s52
    %s56 = sphi 0, %s55
    %s72 = sphi 0, %s56
    %s78 = sphi 0, %s80
    %s81 = sphi 0, %s78
    %s82 = sphi 0, %s81
    %s98 = sphi 0, %s82
    %s104 = sphi 0, %s106
    %s107 = sphi 0, %s104
    %s108 = sphi 0, %s107
    %s124 = sphi 0, %s108
    %s130 = sphi 0, %s132
    %s133 = sphi 0, %s130
    %s134 = sphi 0, %s133
    %s150 = sphi 0, %s134
    %s154 = sphi 0, %s154
    %s156 = sphi 0, %s154
    %s157 = sphi 0, %s156
    %s171 = sphi 0, %s157
    %s175 = sphi 0, %s175
    %s177 = sphi 0, %s175
    %s178 = sphi 0, %s177
    %s192 = sphi 0, %s178
    %s196 = sphi 0, %s196
    %s198 = sphi 0, %s196
    %s199 = sphi 0, %s198
    %s213 = sphi 0, %s199
    %s217 = sphi 0, %s217
    %s219 = sphi 0, %s217
    %s220 = sphi 0, %s219
    %s234 = sphi 0, %s220
    %s238 = sphi 0, %s238
    %s240 = sphi 0, %s238
    %s241 = sphi 0, %s240
    %s255 = sphi 0, %s241
    %s261 = sphi 0, %s263
    %s264 = sphi 0, %s261
    %s265 = sphi 0, %s264
    %s281 = sphi 0, %s265
  $region4: #{tpu_custom_call.1} parent=0 // loop_header_branch
    %19 = sbr.rel (%p17) target = $region8
  $region5: #{tpu_custom_call.1} parent=0 // loop_body
    %s21 = ssub.s32 %s16, 1
    %s22 = ssub.s32 %s16, 2
    %s23 = sadd.s32 %s16, 1
    %s24 = ssub.s32 %s16, %s23
    %p25 = scmp.eq.s32.totalorder %s24, 0
    %s27 = sadd.s32 %s26, 1
    %s28 = scalar_select %p25, %s26, %s27
    %p31 = pneg %p25
    %p32 = scmp.eq.s32.totalorder %s16, 3
    %p33 = por %p31, %p32
    %p34 = scmp.ne.s32.totalorder %s26, %s29
    %p35 = scmp.eq.s32.totalorder %s16, 0
    %p36 = por %p34, %p35
    %p37 = scmp.ne.s32.totalorder %s26, %s29
    %p38 = scmp.eq.s32.totalorder %s21, 3
    %p39 = por %p37, %p38
    %p40 = scmp.ne.s32.totalorder %s29, %s30
    %p41 = scmp.eq.s32.totalorder %s21, 0
    %p42 = por %p40, %p41
    %p43 = scmp.ne.s32.totalorder %s29, %s30
    %p44 = scmp.eq.s32.totalorder %s22, 3
    %p45 = por %p43, %p44
    %p47 = scmp.ne.s32.totalorder %s30, %s46
    %p48 = scmp.eq.s32.totalorder %s22, 0
    %p49 = por %p47, %p48
    %s50 = ssub.s32 %s16, %s23
    %p51 = scmp.eq.s32.totalorder %s50, 0
    %s53 = sadd.s32 %s52, 1
    %s54 = scalar_select %p51, %s52, %s53
    %p57 = pneg %p51
    %p58 = scmp.eq.s32.totalorder %s16, 3
    %p59 = por %p57, %p58
    %p60 = scmp.ne.s32.totalorder %s52, %s55
    %p61 = scmp.eq.s32.totalorder %s16, 0
    %p62 = por %p60, %p61
    %p63 = scmp.ne.s32.totalorder %s52, %s55
    %p64 = scmp.eq.s32.totalorder %s21, 3
    %p65 = por %p63, %p64
    %p66 = scmp.ne.s32.totalorder %s55, %s56
    %p67 = scmp.eq.s32.totalorder %s21, 0
    %p68 = por %p66, %p67
    %p69 = scmp.ne.s32.totalorder %s55, %s56
    %p70 = scmp.eq.s32.totalorder %s22, 3
    %p71 = por %p69, %p70
    %p73 = scmp.ne.s32.totalorder %s56, %s72
    %p74 = scmp.eq.s32.totalorder %s22, 0
    %p75 = por %p73, %p74
    %s76 = ssub.s32 %s16, %s23
    %p77 = scmp.eq.s32.totalorder %s76, 0
    %s79 = sadd.s32 %s78, 1
    %s80 = scalar_select %p77, %s78, %s79
    %p83 = pneg %p77
    %p84 = scmp.eq.s32.totalorder %s16, 3
    %p85 = por %p83, %p84
    %p86 = scmp.ne.s32.totalorder %s78, %s81
    %p87 = scmp.eq.s32.totalorder %s16, 0
    %p88 = por %p86, %p87
    %p89 = scmp.ne.s32.totalorder %s78, %s81
    %p90 = scmp.eq.s32.totalorder %s21, 3
    %p91 = por %p89, %p90
    %p92 = scmp.ne.s32.totalorder %s81, %s82
    %p93 = scmp.eq.s32.totalorder %s21, 0
    %p94 = por %p92, %p93
    %p95 = scmp.ne.s32.totalorder %s81, %s82
    %p96 = scmp.eq.s32.totalorder %s22, 3
    %p97 = por %p95, %p96
    %p99 = scmp.ne.s32.totalorder %s82, %s98
    %p100 = scmp.eq.s32.totalorder %s22, 0
    %p101 = por %p99, %p100
    %s102 = ssub.s32 %s16, %s23
    %p103 = scmp.eq.s32.totalorder %s102, 0
    %s105 = sadd.s32 %s104, 1
    %s106 = scalar_select %p103, %s104, %s105
    %p109 = pneg %p103
    %p110 = scmp.eq.s32.totalorder %s16, 3
    %p111 = por %p109, %p110
    %p112 = scmp.ne.s32.totalorder %s104, %s107
    %p113 = scmp.eq.s32.totalorder %s16, 0
    %p114 = por %p112, %p113
    %p115 = scmp.ne.s32.totalorder %s104, %s107
    %p116 = scmp.eq.s32.totalorder %s21, 3
    %p117 = por %p115, %p116
    %p118 = scmp.ne.s32.totalorder %s107, %s108
    %p119 = scmp.eq.s32.totalorder %s21, 0
    %p120 = por %p118, %p119
    %p121 = scmp.ne.s32.totalorder %s107, %s108
    %p122 = scmp.eq.s32.totalorder %s22, 3
    %p123 = por %p121, %p122
    %p125 = scmp.ne.s32.totalorder %s108, %s124
    %p126 = scmp.eq.s32.totalorder %s22, 0
    %p127 = por %p125, %p126
    %s128 = ssub.s32 %s16, %s23
    %p129 = scmp.eq.s32.totalorder %s128, 0
    %s131 = sadd.s32 %s130, 1
    %s132 = scalar_select %p129, %s130, %s131
    %p135 = pneg %p129
    %p136 = scmp.eq.s32.totalorder %s16, 3
    %p137 = por %p135, %p136
    %p138 = scmp.ne.s32.totalorder %s130, %s133
    %p139 = scmp.eq.s32.totalorder %s16, 0
    %p140 = por %p138, %p139
    %p141 = scmp.ne.s32.totalorder %s130, %s133
    %p142 = scmp.eq.s32.totalorder %s21, 3
    %p143 = por %p141, %p142
    %p144 = scmp.ne.s32.totalorder %s133, %s134
    %p145 = scmp.eq.s32.totalorder %s21, 0
    %p146 = por %p144, %p145
    %p147 = scmp.ne.s32.totalorder %s133, %s134
    %p148 = scmp.eq.s32.totalorder %s22, 3
    %p149 = por %p147, %p148
    %p151 = scmp.ne.s32.totalorder %s134, %s150
    %p152 = scmp.eq.s32.totalorder %s22, 0
    %p153 = por %p151, %p152
    %s155 = sadd.s32 %s154, 1
    %p158 = scmp.eq.s32.totalorder %s16, 3
    %p159 = scmp.ne.s32.totalorder %s154, %s156
    %p160 = scmp.eq.s32.totalorder %s16, 0
    %p161 = por %p159, %p160
    %p162 = scmp.ne.s32.totalorder %s154, %s156
    %p163 = scmp.eq.s32.totalorder %s21, 3
    %p164 = por %p162, %p163
    %p165 = scmp.ne.s32.totalorder %s156, %s157
    %p166 = scmp.eq.s32.totalorder %s21, 0
    %p167 = por %p165, %p166
    %p168 = scmp.ne.s32.totalorder %s156, %s157
    %p169 = scmp.eq.s32.totalorder %s22, 3
    %p170 = por %p168, %p169
    %p172 = scmp.ne.s32.totalorder %s157, %s171
    %p173 = scmp.eq.s32.totalorder %s22, 0
    %p174 = por %p172, %p173
    %s176 = sadd.s32 %s175, 1
    %p179 = scmp.eq.s32.totalorder %s16, 3
    %p180 = scmp.ne.s32.totalorder %s175, %s177
    %p181 = scmp.eq.s32.totalorder %s16, 0
    %p182 = por %p180, %p181
    %p183 = scmp.ne.s32.totalorder %s175, %s177
    %p184 = scmp.eq.s32.totalorder %s21, 3
    %p185 = por %p183, %p184
    %p186 = scmp.ne.s32.totalorder %s177, %s178
    %p187 = scmp.eq.s32.totalorder %s21, 0
    %p188 = por %p186, %p187
    %p189 = scmp.ne.s32.totalorder %s177, %s178
    %p190 = scmp.eq.s32.totalorder %s22, 3
    %p191 = por %p189, %p190
    %p193 = scmp.ne.s32.totalorder %s178, %s192
    %p194 = scmp.eq.s32.totalorder %s22, 0
    %p195 = por %p193, %p194
    %s197 = sadd.s32 %s196, 1
    %p200 = scmp.eq.s32.totalorder %s16, 3
    %p201 = scmp.ne.s32.totalorder %s196, %s198
    %p202 = scmp.eq.s32.totalorder %s16, 0
    %p203 = por %p201, %p202
    %p204 = scmp.ne.s32.totalorder %s196, %s198
    %p205 = scmp.eq.s32.totalorder %s21, 3
    %p206 = por %p204, %p205
    %p207 = scmp.ne.s32.totalorder %s198, %s199
    %p208 = scmp.eq.s32.totalorder %s21, 0
    %p209 = por %p207, %p208
    %p210 = scmp.ne.s32.totalorder %s198, %s199
    %p211 = scmp.eq.s32.totalorder %s22, 3
    %p212 = por %p210, %p211
    %p214 = scmp.ne.s32.totalorder %s199, %s213
    %p215 = scmp.eq.s32.totalorder %s22, 0
    %p216 = por %p214, %p215
    %s218 = sadd.s32 %s217, 1
    %p221 = scmp.eq.s32.totalorder %s16, 3
    %p222 = scmp.ne.s32.totalorder %s217, %s219
    %p223 = scmp.eq.s32.totalorder %s16, 0
    %p224 = por %p222, %p223
    %p225 = scmp.ne.s32.totalorder %s217, %s219
    %p226 = scmp.eq.s32.totalorder %s21, 3
    %p227 = por %p225, %p226
    %p228 = scmp.ne.s32.totalorder %s219, %s220
    %p229 = scmp.eq.s32.totalorder %s21, 0
    %p230 = por %p228, %p229
    %p231 = scmp.ne.s32.totalorder %s219, %s220
    %p232 = scmp.eq.s32.totalorder %s22, 3
    %p233 = por %p231, %p232
    %p235 = scmp.ne.s32.totalorder %s220, %s234
    %p236 = scmp.eq.s32.totalorder %s22, 0
    %p237 = por %p235, %p236
    %s239 = sadd.s32 %s238, 1
    %p242 = scmp.eq.s32.totalorder %s16, 3
    %p243 = scmp.ne.s32.totalorder %s238, %s240
    %p244 = scmp.eq.s32.totalorder %s16, 0
    %p245 = por %p243, %p244
    %p246 = scmp.ne.s32.totalorder %s238, %s240
    %p247 = scmp.eq.s32.totalorder %s21, 3
    %p248 = por %p246, %p247
    %p249 = scmp.ne.s32.totalorder %s240, %s241
    %p250 = scmp.eq.s32.totalorder %s21, 0
    %p251 = por %p249, %p250
    %p252 = scmp.ne.s32.totalorder %s240, %s241
    %p253 = scmp.eq.s32.totalorder %s22, 3
    %p254 = por %p252, %p253
    %p256 = scmp.ne.s32.totalorder %s241, %s255
    %p257 = scmp.eq.s32.totalorder %s22, 0
    %p258 = por %p256, %p257
    %s259 = ssub.s32 %s16, %s23
    %p260 = scmp.eq.s32.totalorder %s259, 0
    %s262 = sadd.s32 %s261, 1
    %s263 = scalar_select %p260, %s261, %s262
    %p266 = pneg %p260
    %p267 = scmp.eq.s32.totalorder %s16, 3
    %p268 = por %p266, %p267
    %p269 = scmp.ne.s32.totalorder %s261, %s264
    %p270 = scmp.eq.s32.totalorder %s16, 0
    %p271 = por %p269, %p270
    %p272 = scmp.ne.s32.totalorder %s261, %s264
    %p273 = scmp.eq.s32.totalorder %s21, 3
    %p274 = por %p272, %p273
    %p275 = scmp.ne.s32.totalorder %s264, %s265
    %p276 = scmp.eq.s32.totalorder %s21, 0
    %p277 = por %p275, %p276
    %p278 = scmp.ne.s32.totalorder %s264, %s265
    %p279 = scmp.eq.s32.totalorder %s22, 3
    %p280 = por %p278, %p279
    %p282 = scmp.ne.s32.totalorder %s265, %s281
    %p283 = scmp.eq.s32.totalorder %s22, 0
    %p284 = por %p282, %p283
    %p285 = scmp.le.s32.totalorder 1, %s16
    %p286 = scmp.lt.s32.totalorder %s16, 5
    %p287 = pnand %p285, %p286
    %p288 = pneg %p287
    // Predicated region
    $region9: #{tpu_custom_call.1} parent=5 // pred_check
      _
    $region10: #{tpu_custom_call.1} parent=5 // pred_check_branch
      %290 = sbr.rel (%p287) target = $region12
    $region11: #{tpu_custom_call.1} parent=5 // pred_region
      %s291 = ssub.s32 %s16, 1
      // Predicated region
      $region13: #{tpu_custom_call.1} parent=11 // pred_check
        %p292 = pneg %p167
      $region14: #{tpu_custom_call.1} parent=11 // pred_check_branch
        %294 = sbr.rel (%p292) target = $region16
      $region15: #{tpu_custom_call.1} parent=11 // pred_region
        _
      $region16: #{tpu_custom_call.1} parent=11 // pred_fallthru
        _
      // Predicated region
      $region17: #{tpu_custom_call.1} parent=11 // pred_check
        %p295 = pneg %p188
      $region18: #{tpu_custom_call.1} parent=11 // pred_check_branch
        %297 = sbr.rel (%p295) target = $region20
      $region19: #{tpu_custom_call.1} parent=11 // pred_region
        _
      $region20: #{tpu_custom_call.1} parent=11 // pred_fallthru
        _
      // Predicated region
      $region21: #{tpu_custom_call.1} parent=11 // pred_check
        %p298 = pneg %p209
      $region22: #{tpu_custom_call.1} parent=11 // pred_check_branch
        %300 = sbr.rel (%p298) target = $region24
      $region23: #{tpu_custom_call.1} parent=11 // pred_region
        _
      $region24: #{tpu_custom_call.1} parent=11 // pred_fallthru
        _
      // Predicated region
      $region25: #{tpu_custom_call.1} parent=11 // pred_check
        %p301 = pneg %p230
      $region26: #{tpu_custom_call.1} parent=11 // pred_check_branch
        %303 = sbr.rel (%p301) target = $region28
      $region27: #{tpu_custom_call.1} parent=11 // pred_region
        _
      $region28: #{tpu_custom_call.1} parent=11 // pred_fallthru
        _
      // Predicated region
      $region29: #{tpu_custom_call.1} parent=11 // pred_check
        %p304 = pneg %p251
      $region30: #{tpu_custom_call.1} parent=11 // pred_check_branch
        %306 = sbr.rel (%p304) target = $region32
      $region31: #{tpu_custom_call.1} parent=11 // pred_region
        _
      $region32: #{tpu_custom_call.1} parent=11 // pred_fallthru
        _
    $region12: #{tpu_custom_call.1} parent=5 // pred_fallthru
      _
    %p307 = scmp.lt.s32.totalorder %s16, 4
    // Predicated region
    $region33: #{tpu_custom_call.1} parent=5 // pred_check
      %p308 = pneg %p307
    $region34: #{tpu_custom_call.1} parent=5 // pred_check_branch
      %310 = sbr.rel (%p308) target = $region36
    $region35: #{tpu_custom_call.1} parent=5 // pred_region
      // Predicated region
      $region37: #{tpu_custom_call.1} parent=35 // pred_check
        %p311 = pneg %p36
      $region38: #{tpu_custom_call.1} parent=35 // pred_check_branch
        %313 = sbr.rel (%p311) target = $region40
      $region39: #{tpu_custom_call.1} parent=35 // pred_region
        %s314 = smul.u32 32, %s16
        %p315 = scmp.lt.s32.totalorder %s314, 127
        %s316 = scalar_select %p315, %s314, 127
        %s317 = smul.addr %s316, 8
        %s318 = scalar_lea.vmem %s0, %s317
        %s319 = smul.u32 32, %s16
      $region40: #{tpu_custom_call.1} parent=35 // pred_fallthru
        _
      // Predicated region
      $region41: #{tpu_custom_call.1} parent=35 // pred_check
        %p320 = pneg %p62
      $region42: #{tpu_custom_call.1} parent=35 // pred_check_branch
        %322 = sbr.rel (%p320) target = $region44
      $region43: #{tpu_custom_call.1} parent=35 // pred_region
        %s323 = smul.u32 32, %s16
        %p324 = scmp.lt.s32.totalorder %s323, 127
        %s325 = scalar_select %p324, %s323, 127
        %s326 = smul.addr %s325, 8
        %s327 = scalar_lea.vmem %s1, %s326
        %s328 = smul.u32 32, %s16
      $region44: #{tpu_custom_call.1} parent=35 // pred_fallthru
        _
      // Predicated region
      $region45: #{tpu_custom_call.1} parent=35 // pred_check
        %p329 = pneg %p88
      $region46: #{tpu_custom_call.1} parent=35 // pred_check_branch
        %331 = sbr.rel (%p329) target = $region48
      $region47: #{tpu_custom_call.1} parent=35 // pred_region
        %s332 = smul.u32 32, %s16
        %p333 = scmp.lt.s32.totalorder %s332, 127
        %s334 = scalar_select %p333, %s332, 127
        %s335 = smul.addr %s334, 8
        %s336 = scalar_lea.vmem %s2, %s335
        %s337 = smul.u32 32, %s16
      $region48: #{tpu_custom_call.1} parent=35 // pred_fallthru
        _
      // Predicated region
      $region49: #{tpu_custom_call.1} parent=35 // pred_check
        %p338 = pneg %p114
      $region50: #{tpu_custom_call.1} parent=35 // pred_check_branch
        %340 = sbr.rel (%p338) target = $region52
      $region51: #{tpu_custom_call.1} parent=35 // pred_region
        %s341 = smul.u32 32, %s16
        %p342 = scmp.lt.s32.totalorder %s341, 127
        %s343 = scalar_select %p342, %s341, 127
        %s344 = smul.addr %s343, 8
        %s345 = scalar_lea.vmem %s3, %s344
        %s346 = smul.u32 32, %s16
      $region52: #{tpu_custom_call.1} parent=35 // pred_fallthru
        _
      // Predicated region
      $region53: #{tpu_custom_call.1} parent=35 // pred_check
        %p347 = pneg %p140
      $region54: #{tpu_custom_call.1} parent=35 // pred_check_branch
        %349 = sbr.rel (%p347) target = $region56
      $region55: #{tpu_custom_call.1} parent=35 // pred_region
        %s350 = smul.u32 32, %s16
        %p351 = scmp.lt.s32.totalorder %s350, 127
        %s352 = scalar_select %p351, %s350, 127
        %s353 = smul.addr %s352, 8
        %s354 = scalar_lea.vmem %s4, %s353
        %s355 = smul.u32 32, %s16
      $region56: #{tpu_custom_call.1} parent=35 // pred_fallthru
        _
    $region36: #{tpu_custom_call.1} parent=5 // pred_fallthru
      _
    %p356 = scmp.le.s32.totalorder 1, %s16
    %p357 = scmp.lt.s32.totalorder %s16, 5
    %p358 = pnand %p356, %p357
    %p359 = pneg %p358
    // Predicated region
    $region57: #{tpu_custom_call.1} parent=5 // pred_check
      _
    $region58: #{tpu_custom_call.1} parent=5 // pred_check_branch
      %361 = sbr.rel (%p358) target = $region60
    $region59: #{tpu_custom_call.1} parent=5 // pred_region
      %s362 = ssub.s32 %s16, 1
      %s363 = smul.u32 32, %s21
      %p364 = scmp.lt.s32.totalorder %s363, 127
      %s365 = scalar_select %p364, %s363, 127
      %s366 = smul.addr %s365, 8
      %s367 = scalar_lea.vmem %s0, %s366
      %p368 = pneg %p42
      %p369 = pneg %p39
      %s370 = smul.u32 32, %s21
      %p371 = scmp.lt.s32.totalorder %s370, 127
      %s372 = scalar_select %p371, %s370, 127
      %s373 = smul.addr %s372, 8
      %s374 = scalar_lea.vmem %s1, %s373
      %p375 = pneg %p68
      %p376 = pneg %p65
      %s377 = smul.u32 32, %s21
      %p378 = scmp.lt.s32.totalorder %s377, 127
      %s379 = scalar_select %p378, %s377, 127
      %s380 = smul.addr %s379, 8
      %s381 = scalar_lea.vmem %s2, %s380
      %p382 = pneg %p94
      %p383 = pneg %p91
      %s384 = smul.u32 32, %s21
      %p385 = scmp.lt.s32.totalorder %s384, 127
      %s386 = scalar_select %p385, %s384, 127
      %s387 = smul.addr %s386, 8
      %s388 = scalar_lea.vmem %s3, %s387
      %p389 = pneg %p120
      %p390 = pneg %p117
      %s391 = smul.u32 32, %s21
      %p392 = scmp.lt.s32.totalorder %s391, 127
      %s393 = scalar_select %p392, %s391, 127
      %s394 = smul.addr %s393, 8
      %s395 = scalar_lea.vmem %s4, %s394
      %p396 = pneg %p146
      %p397 = pneg %p143
      %p398 = pneg %p167
      %p399 = pneg %p164
      %p400 = pneg %p188
      %p401 = pneg %p185
      %p402 = pneg %p209
      %p403 = pneg %p206
      %p404 = pneg %p230
      %p405 = pneg %p227
      %p406 = pneg %p251
      %p407 = pneg %p248
      %p408 = pneg %p277
      %p409 = pneg %p274
      %s410 = smul.u32 32, %s21
      %p411 = scmp.lt.s32.totalorder %s410, 127
      %s412 = scalar_select %p411, %s410, 127
      %s413 = smul.addr %s412, 8
      %s414 = scalar_lea.vmem %s10, %s413
      %s415 = smul.u32 32, %s21
      %p416 = scmp.lt.s32.totalorder %s415, 127
      %s417 = scalar_select %p416, %s415, 127
      %s418 = smul.addr %s417, 8
      %s419 = scalar_lea.vmem %s0, %s418
      %s420 = smul.u32 32, %s21
      %s421 = smul.u32 32, %s21
      %p422 = scmp.lt.s32.totalorder %s421, 127
      %s423 = scalar_select %p422, %s421, 127
      %s424 = smul.addr %s423, 8
      %s425 = scalar_lea.vmem %s1, %s424
      %s426 = smul.u32 32, %s21
      %s427 = smul.u32 32, %s21
      %p428 = scmp.lt.s32.totalorder %s427, 127
      %s429 = scalar_select %p428, %s427, 127
      %s430 = smul.addr %s429, 8
      %s431 = scalar_lea.vmem %s2, %s430
      %s432 = smul.u32 32, %s21
      %s433 = smul.u32 32, %s21
      %p434 = scmp.lt.s32.totalorder %s433, 127
      %s435 = scalar_select %p434, %s433, 127
      %s436 = smul.addr %s435, 8
      %s437 = scalar_lea.vmem %s3, %s436
      %s438 = smul.u32 32, %s21
      %s439 = smul.u32 32, %s21
      %p440 = scmp.lt.s32.totalorder %s439, 127
      %s441 = scalar_select %p440, %s439, 127
      %s442 = smul.addr %s441, 8
      %s443 = scalar_lea.vmem %s4, %s442
      %s444 = smul.u32 32, %s21
      %s445 = smul.u32 32, %s21
      %p446 = scmp.lt.s32.totalorder %s445, 127
      %s447 = scalar_select %p446, %s445, 127
      %s448 = smul.addr %s447, 8
      %s449 = scalar_lea.vmem %s10, %s448
      %s450 = smul.u32 32, %s21
      %v451 = vld [vmem:[%s419] sm:$0xff]
      %v452 = vld [vmem:[%s419 + $0x8] sm:$0xff]
      %v453 = vld [vmem:[%s419 + $0x10] sm:$0xff]
      %v454 = vld [vmem:[%s419 + $0x18] sm:$0xff]
      %v455 = vld [vmem:[%s419 + $0x20] sm:$0xff]
      %v456 = vld [vmem:[%s419 + $0x28] sm:$0xff]
      %v457 = vld [vmem:[%s419 + $0x30] sm:$0xff]
      %v458 = vld [vmem:[%s419 + $0x38] sm:$0xff]
      %v459 = vld [vmem:[%s419 + $0x40] sm:$0xff]
      %v460 = vld [vmem:[%s419 + $0x48] sm:$0xff]
      %v461 = vld [vmem:[%s419 + $0x50] sm:$0xff]
      %v462 = vld [vmem:[%s419 + $0x58] sm:$0xff]
      %v463 = vld [vmem:[%s419 + $0x60] sm:$0xff]
      %v464 = vld [vmem:[%s419 + $0x68] sm:$0xff]
      %v465 = vld [vmem:[%s419 + $0x70] sm:$0xff]
      %v466 = vld [vmem:[%s419 + $0x78] sm:$0xff]
      %v467 = vld [vmem:[%s419 + $0x80] sm:$0xff]
      %v468 = vld [vmem:[%s419 + $0x88] sm:$0xff]
      %v469 = vld [vmem:[%s419 + $0x90] sm:$0xff]
      %v470 = vld [vmem:[%s419 + $0x98] sm:$0xff]
      %v471 = vld [vmem:[%s419 + $0xa0] sm:$0xff]
      %v472 = vld [vmem:[%s419 + $0xa8] sm:$0xff]
      %v473 = vld [vmem:[%s419 + $0xb0] sm:$0xff]
      %v474 = vld [vmem:[%s419 + $0xb8] sm:$0xff]
      %v475 = vld [vmem:[%s419 + $0xc0] sm:$0xff]
      %v476 = vld [vmem:[%s419 + $0xc8] sm:$0xff]
      %v477 = vld [vmem:[%s419 + $0xd0] sm:$0xff]
      %v478 = vld [vmem:[%s419 + $0xd8] sm:$0xff]
      %v479 = vld [vmem:[%s419 + $0xe0] sm:$0xff]
      %v480 = vld [vmem:[%s419 + $0xe8] sm:$0xff]
      %v481 = vld [vmem:[%s419 + $0xf0] sm:$0xff]
      %v482 = vld [vmem:[%s419 + $0xf8] sm:$0xff]
      %v483 = vld [vmem:[%s5] sm:$0xff]
      %v484 = vld [vmem:[%s5 + $0x8] sm:$0xff]
      %v485 = vld [vmem:[%s6] sm:$0x1]
      %v487 = vperm.slane %v485, 0
      %vm489 = vcmask 130048
      %v491 = vsel %vm489, %v451, 0
      %v494 = vsel %vm489, %v452, 0
      %v497 = vsel %vm489, %v453, 0
      %v500 = vsel %vm489, %v454, 0
      %v503 = vsel %vm489, %v455, 0
      %v506 = vsel %vm489, %v456, 0
      %v509 = vsel %vm489, %v457, 0
      %v512 = vsel %vm489, %v458, 0
      %v515 = vsel %vm489, %v459, 0
      %v518 = vsel %vm489, %v460, 0
      %v521 = vsel %vm489, %v461, 0
      %v524 = vsel %vm489, %v462, 0
      %v527 = vsel %vm489, %v463, 0
      %v530 = vsel %vm489, %v464, 0
      %v533 = vsel %vm489, %v465, 0
      %v536 = vsel %vm489, %v466, 0
      %v539 = vsel %vm489, %v467, 0
      %v542 = vsel %vm489, %v468, 0
      %v545 = vsel %vm489, %v469, 0
      %v548 = vsel %vm489, %v470, 0
      %v551 = vsel %vm489, %v471, 0
      %v554 = vsel %vm489, %v472, 0
      %v557 = vsel %vm489, %v473, 0
      %v560 = vsel %vm489, %v474, 0
      %v563 = vsel %vm489, %v475, 0
      %v566 = vsel %vm489, %v476, 0
      %v569 = vsel %vm489, %v477, 0
      %v572 = vsel %vm489, %v478, 0
      %v575 = vsel %vm489, %v479, 0
      %v578 = vsel %vm489, %v480, 0
      %v581 = vsel %vm489, %v481, 0
      %v584 = vsel %vm489, %v482, 0
      %586 = vmatpush.msra.mxu0 0.0
      %587 = vmatpush.msra.mxu0 0.0
      %588 = vmatpush.msra.mxu0 0.0
      %589 = vmatpush.msra.mxu0 0.0
      %590 = vmatpush.msra.mxu0 0.0
      %591 = vmatpush.msra.mxu0 0.0
      %592 = vmatpush.msra.mxu0 0.0
      %593 = vmatpush.msra.mxu0 0.0
      %594 = vmatpush.msra.mxu0 0.0
      %595 = vmatpush.msra.mxu0 0.0
      %596 = vmatpush.msra.mxu0 0.0
      %597 = vmatpush.msra.mxu0 0.0
      %598 = vmatpush.msra.mxu0 0.0
      %599 = vmatpush.msra.mxu0 0.0
      %600 = vmatpush.msra.mxu0 %v484
      %601 = vmatpush.msra.mxu0 %v483
      %602 = vmatmul.f32.gmra.mxu0 %v491
      %v603 = vpop.f32.mrf.mxu0
      %v604 = vadd.f32 %v487, %v603
      %605 = vmatmul.f32.gmra.mxu0 %v494
      %v606 = vpop.f32.mrf.mxu0
      %v607 = vadd.f32 %v487, %v606
      %608 = vmatmul.f32.gmra.mxu0 %v497
      %v609 = vpop.f32.mrf.mxu0
      %v610 = vadd.f32 %v487, %v609
      %611 = vmatmul.f32.gmra.mxu0 %v500
      %v612 = vpop.f32.mrf.mxu0
      %v613 = vadd.f32 %v487, %v612
      %614 = vmatmul.f32.gmra.mxu0 %v503
      %v615 = vpop.f32.mrf.mxu0
      %v616 = vadd.f32 %v487, %v615
      %617 = vmatmul.f32.gmra.mxu0 %v506
      %v618 = vpop.f32.mrf.mxu0
      %v619 = vadd.f32 %v487, %v618
      %620 = vmatmul.f32.gmra.mxu0 %v509
      %v621 = vpop.f32.mrf.mxu0
      %v622 = vadd.f32 %v487, %v621
      %623 = vmatmul.f32.gmra.mxu0 %v512
      %v624 = vpop.f32.mrf.mxu0
      %v625 = vadd.f32 %v487, %v624
      %626 = vmatmul.f32.gmra.mxu0 %v515
      %v627 = vpop.f32.mrf.mxu0
      %v628 = vadd.f32 %v487, %v627
      %629 = vmatmul.f32.gmra.mxu0 %v518
      %v630 = vpop.f32.mrf.mxu0
      %v631 = vadd.f32 %v487, %v630
      %632 = vmatmul.f32.gmra.mxu0 %v521
      %v633 = vpop.f32.mrf.mxu0
      %v634 = vadd.f32 %v487, %v633
      %635 = vmatmul.f32.gmra.mxu0 %v524
      %v636 = vpop.f32.mrf.mxu0
      %v637 = vadd.f32 %v487, %v636
      %638 = vmatmul.f32.gmra.mxu0 %v527
      %v639 = vpop.f32.mrf.mxu0
      %v640 = vadd.f32 %v487, %v639
      %641 = vmatmul.f32.gmra.mxu0 %v530
      %v642 = vpop.f32.mrf.mxu0
      %v643 = vadd.f32 %v487, %v642
      %644 = vmatmul.f32.gmra.mxu0 %v533
      %v645 = vpop.f32.mrf.mxu0
      %v646 = vadd.f32 %v487, %v645
      %647 = vmatmul.f32.gmra.mxu0 %v536
      %v648 = vpop.f32.mrf.mxu0
      %v649 = vadd.f32 %v487, %v648
      %650 = vmatmul.f32.gmra.mxu0 %v539
      %v651 = vpop.f32.mrf.mxu0
      %v652 = vadd.f32 %v487, %v651
      %653 = vmatmul.f32.gmra.mxu0 %v542
      %v654 = vpop.f32.mrf.mxu0
      %v655 = vadd.f32 %v487, %v654
      %656 = vmatmul.f32.gmra.mxu0 %v545
      %v657 = vpop.f32.mrf.mxu0
      %v658 = vadd.f32 %v487, %v657
      %659 = vmatmul.f32.gmra.mxu0 %v548
      %v660 = vpop.f32.mrf.mxu0
      %v661 = vadd.f32 %v487, %v660
      %662 = vmatmul.f32.gmra.mxu0 %v551
      %v663 = vpop.f32.mrf.mxu0
      %v664 = vadd.f32 %v487, %v663
      %665 = vmatmul.f32.gmra.mxu0 %v554
      %v666 = vpop.f32.mrf.mxu0
      %v667 = vadd.f32 %v487, %v666
      %668 = vmatmul.f32.gmra.mxu0 %v557
      %v669 = vpop.f32.mrf.mxu0
      %v670 = vadd.f32 %v487, %v669
      %671 = vmatmul.f32.gmra.mxu0 %v560
      %v672 = vpop.f32.mrf.mxu0
      %v673 = vadd.f32 %v487, %v672
      %674 = vmatmul.f32.gmra.mxu0 %v563
      %v675 = vpop.f32.mrf.mxu0
      %v676 = vadd.f32 %v487, %v675
      %677 = vmatmul.f32.gmra.mxu0 %v566
      %v678 = vpop.f32.mrf.mxu0
      %v679 = vadd.f32 %v487, %v678
      %680 = vmatmul.f32.gmra.mxu0 %v569
      %v681 = vpop.f32.mrf.mxu0
      %v682 = vadd.f32 %v487, %v681
      %683 = vmatmul.f32.gmra.mxu0 %v572
      %v684 = vpop.f32.mrf.mxu0
      %v685 = vadd.f32 %v487, %v684
      %686 = vmatmul.f32.gmra.mxu0 %v575
      %v687 = vpop.f32.mrf.mxu0
      %v688 = vadd.f32 %v487, %v687
      %689 = vmatmul.f32.gmra.mxu0 %v578
      %v690 = vpop.f32.mrf.mxu0
      %v691 = vadd.f32 %v487, %v690
      %692 = vmatmul.f32.gmra.mxu0 %v581
      %v693 = vpop.f32.mrf.mxu0
      %v694 = vadd.f32 %v487, %v693
      %695 = vmatmul.f32.gmra.mxu0 %v584
      %v696 = vpop.f32.mrf.mxu0
      %v697 = vadd.f32 %v487, %v696
      %698 = vdwg.mxu0
      %v699 = vld [vmem:[%s425] sm:$0xff]
      %v700 = vld [vmem:[%s425 + $0x8] sm:$0xff]
      %v701 = vld [vmem:[%s425 + $0x10] sm:$0xff]
      %v702 = vld [vmem:[%s425 + $0x18] sm:$0xff]
      %v703 = vld [vmem:[%s425 + $0x20] sm:$0xff]
      %v704 = vld [vmem:[%s425 + $0x28] sm:$0xff]
      %v705 = vld [vmem:[%s425 + $0x30] sm:$0xff]
      %v706 = vld [vmem:[%s425 + $0x38] sm:$0xff]
      %v707 = vld [vmem:[%s425 + $0x40] sm:$0xff]
      %v708 = vld [vmem:[%s425 + $0x48] sm:$0xff]
      %v709 = vld [vmem:[%s425 + $0x50] sm:$0xff]
      %v710 = vld [vmem:[%s425 + $0x58] sm:$0xff]
      %v711 = vld [vmem:[%s425 + $0x60] sm:$0xff]
      %v712 = vld [vmem:[%s425 + $0x68] sm:$0xff]
      %v713 = vld [vmem:[%s425 + $0x70] sm:$0xff]
      %v714 = vld [vmem:[%s425 + $0x78] sm:$0xff]
      %v715 = vld [vmem:[%s425 + $0x80] sm:$0xff]
      %v716 = vld [vmem:[%s425 + $0x88] sm:$0xff]
      %v717 = vld [vmem:[%s425 + $0x90] sm:$0xff]
      %v718 = vld [vmem:[%s425 + $0x98] sm:$0xff]
      %v719 = vld [vmem:[%s425 + $0xa0] sm:$0xff]
      %v720 = vld [vmem:[%s425 + $0xa8] sm:$0xff]
      %v721 = vld [vmem:[%s425 + $0xb0] sm:$0xff]
      %v722 = vld [vmem:[%s425 + $0xb8] sm:$0xff]
      %v723 = vld [vmem:[%s425 + $0xc0] sm:$0xff]
      %v724 = vld [vmem:[%s425 + $0xc8] sm:$0xff]
      %v725 = vld [vmem:[%s425 + $0xd0] sm:$0xff]
      %v726 = vld [vmem:[%s425 + $0xd8] sm:$0xff]
      %v727 = vld [vmem:[%s425 + $0xe0] sm:$0xff]
      %v728 = vld [vmem:[%s425 + $0xe8] sm:$0xff]
      %v729 = vld [vmem:[%s425 + $0xf0] sm:$0xff]
      %v730 = vld [vmem:[%s425 + $0xf8] sm:$0xff]
      %v731 = vld [vmem:[%s431] sm:$0xff]
      %v732 = vld [vmem:[%s431 + $0x8] sm:$0xff]
      %v733 = vld [vmem:[%s431 + $0x10] sm:$0xff]
      %v734 = vld [vmem:[%s431 + $0x18] sm:$0xff]
      %v735 = vld [vmem:[%s431 + $0x20] sm:$0xff]
      %v736 = vld [vmem:[%s431 + $0x28] sm:$0xff]
      %v737 = vld [vmem:[%s431 + $0x30] sm:$0xff]
      %v738 = vld [vmem:[%s431 + $0x38] sm:$0xff]
      %v739 = vld [vmem:[%s431 + $0x40] sm:$0xff]
      %v740 = vld [vmem:[%s431 + $0x48] sm:$0xff]
      %v741 = vld [vmem:[%s431 + $0x50] sm:$0xff]
      %v742 = vld [vmem:[%s431 + $0x58] sm:$0xff]
      %v743 = vld [vmem:[%s431 + $0x60] sm:$0xff]
      %v744 = vld [vmem:[%s431 + $0x68] sm:$0xff]
      %v745 = vld [vmem:[%s431 + $0x70] sm:$0xff]
      %v746 = vld [vmem:[%s431 + $0x78] sm:$0xff]
      %v747 = vld [vmem:[%s431 + $0x80] sm:$0xff]
      %v748 = vld [vmem:[%s431 + $0x88] sm:$0xff]
      %v749 = vld [vmem:[%s431 + $0x90] sm:$0xff]
      %v750 = vld [vmem:[%s431 + $0x98] sm:$0xff]
      %v751 = vld [vmem:[%s431 + $0xa0] sm:$0xff]
      %v752 = vld [vmem:[%s431 + $0xa8] sm:$0xff]
      %v753 = vld [vmem:[%s431 + $0xb0] sm:$0xff]
      %v754 = vld [vmem:[%s431 + $0xb8] sm:$0xff]
      %v755 = vld [vmem:[%s431 + $0xc0] sm:$0xff]
      %v756 = vld [vmem:[%s431 + $0xc8] sm:$0xff]
      %v757 = vld [vmem:[%s431 + $0xd0] sm:$0xff]
      %v758 = vld [vmem:[%s431 + $0xd8] sm:$0xff]
      %v759 = vld [vmem:[%s431 + $0xe0] sm:$0xff]
      %v760 = vld [vmem:[%s431 + $0xe8] sm:$0xff]
      %v761 = vld [vmem:[%s431 + $0xf0] sm:$0xff]
      %v762 = vld [vmem:[%s431 + $0xf8] sm:$0xff]
      %795 = vrot.lane.b32.xlu0 %v731, 32
      %v796 = vpop.permute.xlu0 %795
      %797 = vrot.lane.b32.xlu0 %v732, 32
      %v798 = vpop.permute.xlu0 %797
      %799 = vrot.lane.b32.xlu0 %v733, 32
      %v800 = vpop.permute.xlu0 %799
      %801 = vrot.lane.b32.xlu0 %v734, 32
      %v802 = vpop.permute.xlu0 %801
      %803 = vrot.lane.b32.xlu0 %v735, 32
      %v804 = vpop.permute.xlu0 %803
      %805 = vrot.lane.b32.xlu0 %v736, 32
      %v806 = vpop.permute.xlu0 %805
      %807 = vrot.lane.b32.xlu0 %v737, 32
      %v808 = vpop.permute.xlu0 %807
      %809 = vrot.lane.b32.xlu0 %v738, 32
      %v810 = vpop.permute.xlu0 %809
      %811 = vrot.lane.b32.xlu0 %v739, 32
      %v812 = vpop.permute.xlu0 %811
      %813 = vrot.lane.b32.xlu0 %v740, 32
      %v814 = vpop.permute.xlu0 %813
      %815 = vrot.lane.b32.xlu0 %v741, 32
      %v816 = vpop.permute.xlu0 %815
      %817 = vrot.lane.b32.xlu0 %v742, 32
      %v818 = vpop.permute.xlu0 %817
      %819 = vrot.lane.b32.xlu0 %v743, 32
      %v820 = vpop.permute.xlu0 %819
      %821 = vrot.lane.b32.xlu0 %v744, 32
      %v822 = vpop.permute.xlu0 %821
      %823 = vrot.lane.b32.xlu0 %v745, 32
      %v824 = vpop.permute.xlu0 %823
      %825 = vrot.lane.b32.xlu0 %v746, 32
      %v826 = vpop.permute.xlu0 %825
      %827 = vrot.lane.b32.xlu0 %v747, 32
      %v828 = vpop.permute.xlu0 %827
      %829 = vrot.lane.b32.xlu0 %v748, 32
      %v830 = vpop.permute.xlu0 %829
      %831 = vrot.lane.b32.xlu0 %v749, 32
      %v832 = vpop.permute.xlu0 %831
      %833 = vrot.lane.b32.xlu0 %v750, 32
      %v834 = vpop.permute.xlu0 %833
      %835 = vrot.lane.b32.xlu0 %v751, 32
      %v836 = vpop.permute.xlu0 %835
      %837 = vrot.lane.b32.xlu0 %v752, 32
      %v838 = vpop.permute.xlu0 %837
      %839 = vrot.lane.b32.xlu0 %v753, 32
      %v840 = vpop.permute.xlu0 %839
      %841 = vrot.lane.b32.xlu0 %v754, 32
      %v842 = vpop.permute.xlu0 %841
      %843 = vrot.lane.b32.xlu0 %v755, 32
      %v844 = vpop.permute.xlu0 %843
      %845 = vrot.lane.b32.xlu0 %v756, 32
      %v846 = vpop.permute.xlu0 %845
      %847 = vrot.lane.b32.xlu0 %v757, 32
      %v848 = vpop.permute.xlu0 %847
      %849 = vrot.lane.b32.xlu0 %v758, 32
      %v850 = vpop.permute.xlu0 %849
      %851 = vrot.lane.b32.xlu0 %v759, 32
      %v852 = vpop.permute.xlu0 %851
      %853 = vrot.lane.b32.xlu0 %v760, 32
      %v854 = vpop.permute.xlu0 %853
      %855 = vrot.lane.b32.xlu0 %v761, 32
      %v856 = vpop.permute.xlu0 %855
      %857 = vrot.lane.b32.xlu0 %v762, 32
      %v858 = vpop.permute.xlu0 %857
      %vm891 = vcmask 261120
      %v892 = vsel %vm891, %v699, %v796
      %v893 = vsel %vm891, %v700, %v798
      %v894 = vsel %vm891, %v701, %v800
      %v895 = vsel %vm891, %v702, %v802
      %v896 = vsel %vm891, %v703, %v804
      %v897 = vsel %vm891, %v704, %v806
      %v898 = vsel %vm891, %v705, %v808
      %v899 = vsel %vm891, %v706, %v810
      %v900 = vsel %vm891, %v707, %v812
      %v901 = vsel %vm891, %v708, %v814
      %v902 = vsel %vm891, %v709, %v816
      %v903 = vsel %vm891, %v710, %v818
      %v904 = vsel %vm891, %v711, %v820
      %v905 = vsel %vm891, %v712, %v822
      %v906 = vsel %vm891, %v713, %v824
      %v907 = vsel %vm891, %v714, %v826
      %v908 = vsel %vm891, %v715, %v828
      %v909 = vsel %vm891, %v716, %v830
      %v910 = vsel %vm891, %v717, %v832
      %v911 = vsel %vm891, %v718, %v834
      %v912 = vsel %vm891, %v719, %v836
      %v913 = vsel %vm891, %v720, %v838
      %v914 = vsel %vm891, %v721, %v840
      %v915 = vsel %vm891, %v722, %v842
      %v916 = vsel %vm891, %v723, %v844
      %v917 = vsel %vm891, %v724, %v846
      %v918 = vsel %vm891, %v725, %v848
      %v919 = vsel %vm891, %v726, %v850
      %v920 = vsel %vm891, %v727, %v852
      %v921 = vsel %vm891, %v728, %v854
      %v922 = vsel %vm891, %v729, %v856
      %v923 = vsel %vm891, %v730, %v858
      %v924 = vld [vmem:[%s437] sm:$0xff]
      %v925 = vld [vmem:[%s437 + $0x8] sm:$0xff]
      %v926 = vld [vmem:[%s437 + $0x10] sm:$0xff]
      %v927 = vld [vmem:[%s437 + $0x18] sm:$0xff]
      %v928 = vld [vmem:[%s437 + $0x20] sm:$0xff]
      %v929 = vld [vmem:[%s437 + $0x28] sm:$0xff]
      %v930 = vld [vmem:[%s437 + $0x30] sm:$0xff]
      %v931 = vld [vmem:[%s437 + $0x38] sm:$0xff]
      %v932 = vld [vmem:[%s437 + $0x40] sm:$0xff]
      %v933 = vld [vmem:[%s437 + $0x48] sm:$0xff]
      %v934 = vld [vmem:[%s437 + $0x50] sm:$0xff]
      %v935 = vld [vmem:[%s437 + $0x58] sm:$0xff]
      %v936 = vld [vmem:[%s437 + $0x60] sm:$0xff]
      %v937 = vld [vmem:[%s437 + $0x68] sm:$0xff]
      %v938 = vld [vmem:[%s437 + $0x70] sm:$0xff]
      %v939 = vld [vmem:[%s437 + $0x78] sm:$0xff]
      %v940 = vld [vmem:[%s437 + $0x80] sm:$0xff]
      %v941 = vld [vmem:[%s437 + $0x88] sm:$0xff]
      %v942 = vld [vmem:[%s437 + $0x90] sm:$0xff]
      %v943 = vld [vmem:[%s437 + $0x98] sm:$0xff]
      %v944 = vld [vmem:[%s437 + $0xa0] sm:$0xff]
      %v945 = vld [vmem:[%s437 + $0xa8] sm:$0xff]
      %v946 = vld [vmem:[%s437 + $0xb0] sm:$0xff]
      %v947 = vld [vmem:[%s437 + $0xb8] sm:$0xff]
      %v948 = vld [vmem:[%s437 + $0xc0] sm:$0xff]
      %v949 = vld [vmem:[%s437 + $0xc8] sm:$0xff]
      %v950 = vld [vmem:[%s437 + $0xd0] sm:$0xff]
      %v951 = vld [vmem:[%s437 + $0xd8] sm:$0xff]
      %v952 = vld [vmem:[%s437 + $0xe0] sm:$0xff]
      %v953 = vld [vmem:[%s437 + $0xe8] sm:$0xff]
      %v954 = vld [vmem:[%s437 + $0xf0] sm:$0xff]
      %v955 = vld [vmem:[%s437 + $0xf8] sm:$0xff]
      %v956 = vld [vmem:[%s443] sm:$0xff]
      %v957 = vld [vmem:[%s443 + $0x8] sm:$0xff]
      %v958 = vld [vmem:[%s443 + $0x10] sm:$0xff]
      %v959 = vld [vmem:[%s443 + $0x18] sm:$0xff]
      %v960 = vld [vmem:[%s443 + $0x20] sm:$0xff]
      %v961 = vld [vmem:[%s443 + $0x28] sm:$0xff]
      %v962 = vld [vmem:[%s443 + $0x30] sm:$0xff]
      %v963 = vld [vmem:[%s443 + $0x38] sm:$0xff]
      %v964 = vld [vmem:[%s443 + $0x40] sm:$0xff]
      %v965 = vld [vmem:[%s443 + $0x48] sm:$0xff]
      %v966 = vld [vmem:[%s443 + $0x50] sm:$0xff]
      %v967 = vld [vmem:[%s443 + $0x58] sm:$0xff]
      %v968 = vld [vmem:[%s443 + $0x60] sm:$0xff]
      %v969 = vld [vmem:[%s443 + $0x68] sm:$0xff]
      %v970 = vld [vmem:[%s443 + $0x70] sm:$0xff]
      %v971 = vld [vmem:[%s443 + $0x78] sm:$0xff]
      %v972 = vld [vmem:[%s443 + $0x80] sm:$0xff]
      %v973 = vld [vmem:[%s443 + $0x88] sm:$0xff]
      %v974 = vld [vmem:[%s443 + $0x90] sm:$0xff]
      %v975 = vld [vmem:[%s443 + $0x98] sm:$0xff]
      %v976 = vld [vmem:[%s443 + $0xa0] sm:$0xff]
      %v977 = vld [vmem:[%s443 + $0xa8] sm:$0xff]
      %v978 = vld [vmem:[%s443 + $0xb0] sm:$0xff]
      %v979 = vld [vmem:[%s443 + $0xb8] sm:$0xff]
      %v980 = vld [vmem:[%s443 + $0xc0] sm:$0xff]
      %v981 = vld [vmem:[%s443 + $0xc8] sm:$0xff]
      %v982 = vld [vmem:[%s443 + $0xd0] sm:$0xff]
      %v983 = vld [vmem:[%s443 + $0xd8] sm:$0xff]
      %v984 = vld [vmem:[%s443 + $0xe0] sm:$0xff]
      %v985 = vld [vmem:[%s443 + $0xe8] sm:$0xff]
      %v986 = vld [vmem:[%s443 + $0xf0] sm:$0xff]
      %v987 = vld [vmem:[%s443 + $0xf8] sm:$0xff]
      %1020 = vrot.lane.b32.xlu0 %v956, 32
      %v1021 = vpop.permute.xlu0 %1020
      %1022 = vrot.lane.b32.xlu0 %v957, 32
      %v1023 = vpop.permute.xlu0 %1022
      %1024 = vrot.lane.b32.xlu0 %v958, 32
      %v1025 = vpop.permute.xlu0 %1024
      %1026 = vrot.lane.b32.xlu0 %v959, 32
      %v1027 = vpop.permute.xlu0 %1026
      %1028 = vrot.lane.b32.xlu0 %v960, 32
      %v1029 = vpop.permute.xlu0 %1028
      %1030 = vrot.lane.b32.xlu0 %v961, 32
      %v1031 = vpop.permute.xlu0 %1030
      %1032 = vrot.lane.b32.xlu0 %v962, 32
      %v1033 = vpop.permute.xlu0 %1032
      %1034 = vrot.lane.b32.xlu0 %v963, 32
      %v1035 = vpop.permute.xlu0 %1034
      %1036 = vrot.lane.b32.xlu0 %v964, 32
      %v1037 = vpop.permute.xlu0 %1036
      %1038 = vrot.lane.b32.xlu0 %v965, 32
      %v1039 = vpop.permute.xlu0 %1038
      %1040 = vrot.lane.b32.xlu0 %v966, 32
      %v1041 = vpop.permute.xlu0 %1040
      %1042 = vrot.lane.b32.xlu0 %v967, 32
      %v1043 = vpop.permute.xlu0 %1042
      %1044 = vrot.lane.b32.xlu0 %v968, 32
      %v1045 = vpop.permute.xlu0 %1044
      %1046 = vrot.lane.b32.xlu0 %v969, 32
      %v1047 = vpop.permute.xlu0 %1046
      %1048 = vrot.lane.b32.xlu0 %v970, 32
      %v1049 = vpop.permute.xlu0 %1048
      %1050 = vrot.lane.b32.xlu0 %v971, 32
      %v1051 = vpop.permute.xlu0 %1050
      %1052 = vrot.lane.b32.xlu0 %v972, 32
      %v1053 = vpop.permute.xlu0 %1052
      %1054 = vrot.lane.b32.xlu0 %v973, 32
      %v1055 = vpop.permute.xlu0 %1054
      %1056 = vrot.lane.b32.xlu0 %v974, 32
      %v1057 = vpop.permute.xlu0 %1056
      %1058 = vrot.lane.b32.xlu0 %v975, 32
      %v1059 = vpop.permute.xlu0 %1058
      %1060 = vrot.lane.b32.xlu0 %v976, 32
      %v1061 = vpop.permute.xlu0 %1060
      %1062 = vrot.lane.b32.xlu0 %v977, 32
      %v1063 = vpop.permute.xlu0 %1062
      %1064 = vrot.lane.b32.xlu0 %v978, 32
      %v1065 = vpop.permute.xlu0 %1064
      %1066 = vrot.lane.b32.xlu0 %v979, 32
      %v1067 = vpop.permute.xlu0 %1066
      %1068 = vrot.lane.b32.xlu0 %v980, 32
      %v1069 = vpop.permute.xlu0 %1068
      %1070 = vrot.lane.b32.xlu0 %v981, 32
      %v1071 = vpop.permute.xlu0 %1070
      %1072 = vrot.lane.b32.xlu0 %v982, 32
      %v1073 = vpop.permute.xlu0 %1072
      %1074 = vrot.lane.b32.xlu0 %v983, 32
      %v1075 = vpop.permute.xlu0 %1074
      %1076 = vrot.lane.b32.xlu0 %v984, 32
      %v1077 = vpop.permute.xlu0 %1076
      %1078 = vrot.lane.b32.xlu0 %v985, 32
      %v1079 = vpop.permute.xlu0 %1078
      %1080 = vrot.lane.b32.xlu0 %v986, 32
      %v1081 = vpop.permute.xlu0 %1080
      %1082 = vrot.lane.b32.xlu0 %v987, 32
      %v1083 = vpop.permute.xlu0 %1082
      %v1116 = vsel %vm891, %v924, %v1021
      %v1117 = vsel %vm891, %v925, %v1023
      %v1118 = vsel %vm891, %v926, %v1025
      %v1119 = vsel %vm891, %v927, %v1027
      %v1120 = vsel %vm891, %v928, %v1029
      %v1121 = vsel %vm891, %v929, %v1031
      %v1122 = vsel %vm891, %v930, %v1033
      %v1123 = vsel %vm891, %v931, %v1035
      %v1124 = vsel %vm891, %v932, %v1037
      %v1125 = vsel %vm891, %v933, %v1039
      %v1126 = vsel %vm891, %v934, %v1041
      %v1127 = vsel %vm891, %v935, %v1043
      %v1128 = vsel %vm891, %v936, %v1045
      %v1129 = vsel %vm891, %v937, %v1047
      %v1130 = vsel %vm891, %v938, %v1049
      %v1131 = vsel %vm891, %v939, %v1051
      %v1132 = vsel %vm891, %v940, %v1053
      %v1133 = vsel %vm891, %v941, %v1055
      %v1134 = vsel %vm891, %v942, %v1057
      %v1135 = vsel %vm891, %v943, %v1059
      %v1136 = vsel %vm891, %v944, %v1061
      %v1137 = vsel %vm891, %v945, %v1063
      %v1138 = vsel %vm891, %v946, %v1065
      %v1139 = vsel %vm891, %v947, %v1067
      %v1140 = vsel %vm891, %v948, %v1069
      %v1141 = vsel %vm891, %v949, %v1071
      %v1142 = vsel %vm891, %v950, %v1073
      %v1143 = vsel %vm891, %v951, %v1075
      %v1144 = vsel %vm891, %v952, %v1077
      %v1145 = vsel %vm891, %v953, %v1079
      %v1146 = vsel %vm891, %v954, %v1081
      %v1147 = vsel %vm891, %v955, %v1083
      %v1148 = vld [vmem:[%s7] sm:$0xff]
      %v1149 = vld [vmem:[%s7 + $0x8] sm:$0xff]
      %v1150 = vld [vmem:[%s7 + $0x10] sm:$0xff]
      %v1151 = vld [vmem:[%s7 + $0x18] sm:$0xff]
      %v1152 = vld [vmem:[%s7 + $0x20] sm:$0xff]
      %v1153 = vld [vmem:[%s7 + $0x28] sm:$0xff]
      %v1154 = vld [vmem:[%s7 + $0x30] sm:$0xff]
      %v1155 = vld [vmem:[%s7 + $0x38] sm:$0xff]
      %vm1156 = vcmask 523264
      %v1158 = vsel %vm1156, %v892, 0
      %v1161 = vsel %vm1156, %v893, 0
      %v1164 = vsel %vm1156, %v894, 0
      %v1167 = vsel %vm1156, %v895, 0
      %v1170 = vsel %vm1156, %v896, 0
      %v1173 = vsel %vm1156, %v897, 0
      %v1176 = vsel %vm1156, %v898, 0
      %v1179 = vsel %vm1156, %v899, 0
      %v1182 = vsel %vm1156, %v900, 0
      %v1185 = vsel %vm1156, %v901, 0
      %v1188 = vsel %vm1156, %v902, 0
      %v1191 = vsel %vm1156, %v903, 0
      %v1194 = vsel %vm1156, %v904, 0
      %v1197 = vsel %vm1156, %v905, 0
      %v1200 = vsel %vm1156, %v906, 0
      %v1203 = vsel %vm1156, %v907, 0
      %v1206 = vsel %vm1156, %v908, 0
      %v1209 = vsel %vm1156, %v909, 0
      %v1212 = vsel %vm1156, %v910, 0
      %v1215 = vsel %vm1156, %v911, 0
      %v1218 = vsel %vm1156, %v912, 0
      %v1221 = vsel %vm1156, %v913, 0
      %v1224 = vsel %vm1156, %v914, 0
      %v1227 = vsel %vm1156, %v915, 0
      %v1230 = vsel %vm1156, %v916, 0
      %v1233 = vsel %vm1156, %v917, 0
      %v1236 = vsel %vm1156, %v918, 0
      %v1239 = vsel %vm1156, %v919, 0
      %v1242 = vsel %vm1156, %v920, 0
      %v1245 = vsel %vm1156, %v921, 0
      %v1248 = vsel %vm1156, %v922, 0
      %v1251 = vsel %vm1156, %v923, 0
      %1253 = vmatpush.msra.mxu0 0.0
      %1254 = vmatpush.msra.mxu0 0.0
      %1255 = vmatpush.msra.mxu0 0.0
      %1256 = vmatpush.msra.mxu0 0.0
      %1257 = vmatpush.msra.mxu0 0.0
      %1258 = vmatpush.msra.mxu0 0.0
      %1259 = vmatpush.msra.mxu0 0.0
      %1260 = vmatpush.msra.mxu0 0.0
      %1261 = vmatpush.msra.mxu0 %v1155
      %1262 = vmatpush.msra.mxu0 %v1154
      %1263 = vmatpush.msra.mxu0 %v1153
      %1264 = vmatpush.msra.mxu0 %v1152
      %1265 = vmatpush.msra.mxu0 %v1151
      %1266 = vmatpush.msra.mxu0 %v1150
      %1267 = vmatpush.msra.mxu0 %v1149
      %1268 = vmatpush.msra.mxu0 %v1148
      %1269 = vmatmul.f32.gmra.mxu0 %v1158
      %v1270 = vpop.f32.mrf.mxu0
      %v1271 = vadd.f32 0.0, %v1270
      %1272 = vmatmul.f32.gmra.mxu0 %v1161
      %v1273 = vpop.f32.mrf.mxu0
      %v1274 = vadd.f32 0.0, %v1273
      %1275 = vmatmul.f32.gmra.mxu0 %v1164
      %v1276 = vpop.f32.mrf.mxu0
      %v1277 = vadd.f32 0.0, %v1276
      %1278 = vmatmul.f32.gmra.mxu0 %v1167
      %v1279 = vpop.f32.mrf.mxu0
      %v1280 = vadd.f32 0.0, %v1279
      %1281 = vmatmul.f32.gmra.mxu0 %v1170
      %v1282 = vpop.f32.mrf.mxu0
      %v1283 = vadd.f32 0.0, %v1282
      %1284 = vmatmul.f32.gmra.mxu0 %v1173
      %v1285 = vpop.f32.mrf.mxu0
      %v1286 = vadd.f32 0.0, %v1285
      %1287 = vmatmul.f32.gmra.mxu0 %v1176
      %v1288 = vpop.f32.mrf.mxu0
      %v1289 = vadd.f32 0.0, %v1288
      %1290 = vmatmul.f32.gmra.mxu0 %v1179
      %v1291 = vpop.f32.mrf.mxu0
      %v1292 = vadd.f32 0.0, %v1291
      %1293 = vmatmul.f32.gmra.mxu0 %v1182
      %v1294 = vpop.f32.mrf.mxu0
      %v1295 = vadd.f32 0.0, %v1294
      %1296 = vmatmul.f32.gmra.mxu0 %v1185
      %v1297 = vpop.f32.mrf.mxu0
      %v1298 = vadd.f32 0.0, %v1297
      %1299 = vmatmul.f32.gmra.mxu0 %v1188
      %v1300 = vpop.f32.mrf.mxu0
      %v1301 = vadd.f32 0.0, %v1300
      %1302 = vmatmul.f32.gmra.mxu0 %v1191
      %v1303 = vpop.f32.mrf.mxu0
      %v1304 = vadd.f32 0.0, %v1303
      %1305 = vmatmul.f32.gmra.mxu0 %v1194
      %v1306 = vpop.f32.mrf.mxu0
      %v1307 = vadd.f32 0.0, %v1306
      %1308 = vmatmul.f32.gmra.mxu0 %v1197
      %v1309 = vpop.f32.mrf.mxu0
      %v1310 = vadd.f32 0.0, %v1309
      %1311 = vmatmul.f32.gmra.mxu0 %v1200
      %v1312 = vpop.f32.mrf.mxu0
      %v1313 = vadd.f32 0.0, %v1312
      %1314 = vmatmul.f32.gmra.mxu0 %v1203
      %v1315 = vpop.f32.mrf.mxu0
      %v1316 = vadd.f32 0.0, %v1315
      %1317 = vmatmul.f32.gmra.mxu0 %v1206
      %v1318 = vpop.f32.mrf.mxu0
      %v1319 = vadd.f32 0.0, %v1318
      %1320 = vmatmul.f32.gmra.mxu0 %v1209
      %v1321 = vpop.f32.mrf.mxu0
      %v1322 = vadd.f32 0.0, %v1321
      %1323 = vmatmul.f32.gmra.mxu0 %v1212
      %v1324 = vpop.f32.mrf.mxu0
      %v1325 = vadd.f32 0.0, %v1324
      %1326 = vmatmul.f32.gmra.mxu0 %v1215
      %v1327 = vpop.f32.mrf.mxu0
      %v1328 = vadd.f32 0.0, %v1327
      %1329 = vmatmul.f32.gmra.mxu0 %v1218
      %v1330 = vpop.f32.mrf.mxu0
      %v1331 = vadd.f32 0.0, %v1330
      %1332 = vmatmul.f32.gmra.mxu0 %v1221
      %v1333 = vpop.f32.mrf.mxu0
      %v1334 = vadd.f32 0.0, %v1333
      %1335 = vmatmul.f32.gmra.mxu0 %v1224
      %v1336 = vpop.f32.mrf.mxu0
      %v1337 = vadd.f32 0.0, %v1336
      %1338 = vmatmul.f32.gmra.mxu0 %v1227
      %v1339 = vpop.f32.mrf.mxu0
      %v1340 = vadd.f32 0.0, %v1339
      %1341 = vmatmul.f32.gmra.mxu0 %v1230
      %v1342 = vpop.f32.mrf.mxu0
      %v1343 = vadd.f32 0.0, %v1342
      %1344 = vmatmul.f32.gmra.mxu0 %v1233
      %v1345 = vpop.f32.mrf.mxu0
      %v1346 = vadd.f32 0.0, %v1345
      %1347 = vmatmul.f32.gmra.mxu0 %v1236
      %v1348 = vpop.f32.mrf.mxu0
      %v1349 = vadd.f32 0.0, %v1348
      %1350 = vmatmul.f32.gmra.mxu0 %v1239
      %v1351 = vpop.f32.mrf.mxu0
      %v1352 = vadd.f32 0.0, %v1351
      %1353 = vmatmul.f32.gmra.mxu0 %v1242
      %v1354 = vpop.f32.mrf.mxu0
      %v1355 = vadd.f32 0.0, %v1354
      %1356 = vmatmul.f32.gmra.mxu0 %v1245
      %v1357 = vpop.f32.mrf.mxu0
      %v1358 = vadd.f32 0.0, %v1357
      %1359 = vmatmul.f32.gmra.mxu0 %v1248
      %v1360 = vpop.f32.mrf.mxu0
      %v1361 = vadd.f32 0.0, %v1360
      %1362 = vmatmul.f32.gmra.mxu0 %v1251
      %v1363 = vpop.f32.mrf.mxu0
      %v1364 = vadd.f32 0.0, %v1363
      %1365 = vdwg.mxu0
      %v1366 = vld [vmem:[%s8] sm:$0xff]
      %v1367 = vld [vmem:[%s8 + $0x8] sm:$0xff]
      %v1368 = vld [vmem:[%s8 + $0x10] sm:$0xff]
      %v1369 = vld [vmem:[%s8 + $0x18] sm:$0xff]
      %v1370 = vld [vmem:[%s8 + $0x20] sm:$0xff]
      %v1371 = vld [vmem:[%s8 + $0x28] sm:$0xff]
      %v1372 = vld [vmem:[%s8 + $0x30] sm:$0xff]
      %v1373 = vld [vmem:[%s8 + $0x38] sm:$0xff]
      %v1375 = vsel %vm1156, %v1116, 0
      %v1378 = vsel %vm1156, %v1117, 0
      %v1381 = vsel %vm1156, %v1118, 0
      %v1384 = vsel %vm1156, %v1119, 0
      %v1387 = vsel %vm1156, %v1120, 0
      %v1390 = vsel %vm1156, %v1121, 0
      %v1393 = vsel %vm1156, %v1122, 0
      %v1396 = vsel %vm1156, %v1123, 0
      %v1399 = vsel %vm1156, %v1124, 0
      %v1402 = vsel %vm1156, %v1125, 0
      %v1405 = vsel %vm1156, %v1126, 0
      %v1408 = vsel %vm1156, %v1127, 0
      %v1411 = vsel %vm1156, %v1128, 0
      %v1414 = vsel %vm1156, %v1129, 0
      %v1417 = vsel %vm1156, %v1130, 0
      %v1420 = vsel %vm1156, %v1131, 0
      %v1423 = vsel %vm1156, %v1132, 0
      %v1426 = vsel %vm1156, %v1133, 0
      %v1429 = vsel %vm1156, %v1134, 0
      %v1432 = vsel %vm1156, %v1135, 0
      %v1435 = vsel %vm1156, %v1136, 0
      %v1438 = vsel %vm1156, %v1137, 0
      %v1441 = vsel %vm1156, %v1138, 0
      %v1444 = vsel %vm1156, %v1139, 0
      %v1447 = vsel %vm1156, %v1140, 0
      %v1450 = vsel %vm1156, %v1141, 0
      %v1453 = vsel %vm1156, %v1142, 0
      %v1456 = vsel %vm1156, %v1143, 0
      %v1459 = vsel %vm1156, %v1144, 0
      %v1462 = vsel %vm1156, %v1145, 0
      %v1465 = vsel %vm1156, %v1146, 0
      %v1468 = vsel %vm1156, %v1147, 0
      %1470 = vmatpush.msra.mxu0 0.0
      %1471 = vmatpush.msra.mxu0 0.0
      %1472 = vmatpush.msra.mxu0 0.0
      %1473 = vmatpush.msra.mxu0 0.0
      %1474 = vmatpush.msra.mxu0 0.0
      %1475 = vmatpush.msra.mxu0 0.0
      %1476 = vmatpush.msra.mxu0 0.0
      %1477 = vmatpush.msra.mxu0 0.0
      %1478 = vmatpush.msra.mxu0 %v1373
      %1479 = vmatpush.msra.mxu0 %v1372
      %1480 = vmatpush.msra.mxu0 %v1371
      %1481 = vmatpush.msra.mxu0 %v1370
      %1482 = vmatpush.msra.mxu0 %v1369
      %1483 = vmatpush.msra.mxu0 %v1368
      %1484 = vmatpush.msra.mxu0 %v1367
      %1485 = vmatpush.msra.mxu0 %v1366
      %1486 = vmatmul.f32.gmra.mxu0 %v1375
      %v1487 = vpop.f32.mrf.mxu0
      %v1488 = vadd.f32 0.0, %v1487
      %1489 = vmatmul.f32.gmra.mxu0 %v1378
      %v1490 = vpop.f32.mrf.mxu0
      %v1491 = vadd.f32 0.0, %v1490
      %1492 = vmatmul.f32.gmra.mxu0 %v1381
      %v1493 = vpop.f32.mrf.mxu0
      %v1494 = vadd.f32 0.0, %v1493
      %1495 = vmatmul.f32.gmra.mxu0 %v1384
      %v1496 = vpop.f32.mrf.mxu0
      %v1497 = vadd.f32 0.0, %v1496
      %1498 = vmatmul.f32.gmra.mxu0 %v1387
      %v1499 = vpop.f32.mrf.mxu0
      %v1500 = vadd.f32 0.0, %v1499
      %1501 = vmatmul.f32.gmra.mxu0 %v1390
      %v1502 = vpop.f32.mrf.mxu0
      %v1503 = vadd.f32 0.0, %v1502
      %1504 = vmatmul.f32.gmra.mxu0 %v1393
      %v1505 = vpop.f32.mrf.mxu0
      %v1506 = vadd.f32 0.0, %v1505
      %1507 = vmatmul.f32.gmra.mxu0 %v1396
      %v1508 = vpop.f32.mrf.mxu0
      %v1509 = vadd.f32 0.0, %v1508
      %1510 = vmatmul.f32.gmra.mxu0 %v1399
      %v1511 = vpop.f32.mrf.mxu0
      %v1512 = vadd.f32 0.0, %v1511
      %1513 = vmatmul.f32.gmra.mxu0 %v1402
      %v1514 = vpop.f32.mrf.mxu0
      %v1515 = vadd.f32 0.0, %v1514
      %1516 = vmatmul.f32.gmra.mxu0 %v1405
      %v1517 = vpop.f32.mrf.mxu0
      %v1518 = vadd.f32 0.0, %v1517
      %1519 = vmatmul.f32.gmra.mxu0 %v1408
      %v1520 = vpop.f32.mrf.mxu0
      %v1521 = vadd.f32 0.0, %v1520
      %1522 = vmatmul.f32.gmra.mxu0 %v1411
      %v1523 = vpop.f32.mrf.mxu0
      %v1524 = vadd.f32 0.0, %v1523
      %1525 = vmatmul.f32.gmra.mxu0 %v1414
      %v1526 = vpop.f32.mrf.mxu0
      %v1527 = vadd.f32 0.0, %v1526
      %1528 = vmatmul.f32.gmra.mxu0 %v1417
      %v1529 = vpop.f32.mrf.mxu0
      %v1530 = vadd.f32 0.0, %v1529
      %1531 = vmatmul.f32.gmra.mxu0 %v1420
      %v1532 = vpop.f32.mrf.mxu0
      %v1533 = vadd.f32 0.0, %v1532
      %1534 = vmatmul.f32.gmra.mxu0 %v1423
      %v1535 = vpop.f32.mrf.mxu0
      %v1536 = vadd.f32 0.0, %v1535
      %1537 = vmatmul.f32.gmra.mxu0 %v1426
      %v1538 = vpop.f32.mrf.mxu0
      %v1539 = vadd.f32 0.0, %v1538
      %1540 = vmatmul.f32.gmra.mxu0 %v1429
      %v1541 = vpop.f32.mrf.mxu0
      %v1542 = vadd.f32 0.0, %v1541
      %1543 = vmatmul.f32.gmra.mxu0 %v1432
      %v1544 = vpop.f32.mrf.mxu0
      %v1545 = vadd.f32 0.0, %v1544
      %1546 = vmatmul.f32.gmra.mxu0 %v1435
      %v1547 = vpop.f32.mrf.mxu0
      %v1548 = vadd.f32 0.0, %v1547
      %1549 = vmatmul.f32.gmra.mxu0 %v1438
      %v1550 = vpop.f32.mrf.mxu0
      %v1551 = vadd.f32 0.0, %v1550
      %1552 = vmatmul.f32.gmra.mxu0 %v1441
      %v1553 = vpop.f32.mrf.mxu0
      %v1554 = vadd.f32 0.0, %v1553
      %1555 = vmatmul.f32.gmra.mxu0 %v1444
      %v1556 = vpop.f32.mrf.mxu0
      %v1557 = vadd.f32 0.0, %v1556
      %1558 = vmatmul.f32.gmra.mxu0 %v1447
      %v1559 = vpop.f32.mrf.mxu0
      %v1560 = vadd.f32 0.0, %v1559
      %1561 = vmatmul.f32.gmra.mxu0 %v1450
      %v1562 = vpop.f32.mrf.mxu0
      %v1563 = vadd.f32 0.0, %v1562
      %1564 = vmatmul.f32.gmra.mxu0 %v1453
      %v1565 = vpop.f32.mrf.mxu0
      %v1566 = vadd.f32 0.0, %v1565
      %1567 = vmatmul.f32.gmra.mxu0 %v1456
      %v1568 = vpop.f32.mrf.mxu0
      %v1569 = vadd.f32 0.0, %v1568
      %1570 = vmatmul.f32.gmra.mxu0 %v1459
      %v1571 = vpop.f32.mrf.mxu0
      %v1572 = vadd.f32 0.0, %v1571
      %1573 = vmatmul.f32.gmra.mxu0 %v1462
      %v1574 = vpop.f32.mrf.mxu0
      %v1575 = vadd.f32 0.0, %v1574
      %1576 = vmatmul.f32.gmra.mxu0 %v1465
      %v1577 = vpop.f32.mrf.mxu0
      %v1578 = vadd.f32 0.0, %v1577
      %1579 = vmatmul.f32.gmra.mxu0 %v1468
      %v1580 = vpop.f32.mrf.mxu0
      %v1581 = vadd.f32 0.0, %v1580
      %1582 = vdwg.mxu0
      %v1583 = vadd.f32 %v604, %v1271
      %v1584 = vadd.f32 %v607, %v1274
      %v1585 = vadd.f32 %v610, %v1277
      %v1586 = vadd.f32 %v613, %v1280
      %v1587 = vadd.f32 %v616, %v1283
      %v1588 = vadd.f32 %v619, %v1286
      %v1589 = vadd.f32 %v622, %v1289
      %v1590 = vadd.f32 %v625, %v1292
      %v1591 = vadd.f32 %v628, %v1295
      %v1592 = vadd.f32 %v631, %v1298
      %v1593 = vadd.f32 %v634, %v1301
      %v1594 = vadd.f32 %v637, %v1304
      %v1595 = vadd.f32 %v640, %v1307
      %v1596 = vadd.f32 %v643, %v1310
      %v1597 = vadd.f32 %v646, %v1313
      %v1598 = vadd.f32 %v649, %v1316
      %v1599 = vadd.f32 %v652, %v1319
      %v1600 = vadd.f32 %v655, %v1322
      %v1601 = vadd.f32 %v658, %v1325
      %v1602 = vadd.f32 %v661, %v1328
      %v1603 = vadd.f32 %v664, %v1331
      %v1604 = vadd.f32 %v667, %v1334
      %v1605 = vadd.f32 %v670, %v1337
      %v1606 = vadd.f32 %v673, %v1340
      %v1607 = vadd.f32 %v676, %v1343
      %v1608 = vadd.f32 %v679, %v1346
      %v1609 = vadd.f32 %v682, %v1349
      %v1610 = vadd.f32 %v685, %v1352
      %v1611 = vadd.f32 %v688, %v1355
      %v1612 = vadd.f32 %v691, %v1358
      %v1613 = vadd.f32 %v694, %v1361
      %v1614 = vadd.f32 %v697, %v1364
      %v1615 = vxor.u32 %v1583, 2147483648
      %v1616 = vxor.u32 %v1584, 2147483648
      %v1617 = vxor.u32 %v1585, 2147483648
      %v1618 = vxor.u32 %v1586, 2147483648
      %v1619 = vxor.u32 %v1587, 2147483648
      %v1620 = vxor.u32 %v1588, 2147483648
      %v1621 = vxor.u32 %v1589, 2147483648
      %v1622 = vxor.u32 %v1590, 2147483648
      %v1623 = vxor.u32 %v1591, 2147483648
      %v1624 = vxor.u32 %v1592, 2147483648
      %v1625 = vxor.u32 %v1593, 2147483648
      %v1626 = vxor.u32 %v1594, 2147483648
      %v1627 = vxor.u32 %v1595, 2147483648
      %v1628 = vxor.u32 %v1596, 2147483648
      %v1629 = vxor.u32 %v1597, 2147483648
      %v1630 = vxor.u32 %v1598, 2147483648
      %v1631 = vxor.u32 %v1599, 2147483648
      %v1632 = vxor.u32 %v1600, 2147483648
      %v1633 = vxor.u32 %v1601, 2147483648
      %v1634 = vxor.u32 %v1602, 2147483648
      %v1635 = vxor.u32 %v1603, 2147483648
      %v1636 = vxor.u32 %v1604, 2147483648
      %v1637 = vxor.u32 %v1605, 2147483648
      %v1638 = vxor.u32 %v1606, 2147483648
      %v1639 = vxor.u32 %v1607, 2147483648
      %v1640 = vxor.u32 %v1608, 2147483648
      %v1641 = vxor.u32 %v1609, 2147483648
      %v1642 = vxor.u32 %v1610, 2147483648
      %v1643 = vxor.u32 %v1611, 2147483648
      %v1644 = vxor.u32 %v1612, 2147483648
      %v1645 = vxor.u32 %v1613, 2147483648
      %v1646 = vxor.u32 %v1614, 2147483648
      %v1647 = vmul.f32 %v1615, 1.442695
      %v1648 = vpow.pop %v1647
      %v1649 = vmul.f32 %v1616, 1.442695
      %v1650 = vpow.pop %v1649
      %v1651 = vmul.f32 %v1617, 1.442695
      %v1652 = vpow.pop %v1651
      %v1653 = vmul.f32 %v1618, 1.442695
      %v1654 = vpow.pop %v1653
      %v1655 = vmul.f32 %v1619, 1.442695
      %v1656 = vpow.pop %v1655
      %v1657 = vmul.f32 %v1620, 1.442695
      %v1658 = vpow.pop %v1657
      %v1659 = vmul.f32 %v1621, 1.442695
      %v1660 = vpow.pop %v1659
      %v1661 = vmul.f32 %v1622, 1.442695
      %v1662 = vpow.pop %v1661
      %v1663 = vmul.f32 %v1623, 1.442695
      %v1664 = vpow.pop %v1663
      %v1665 = vmul.f32 %v1624, 1.442695
      %v1666 = vpow.pop %v1665
      %v1667 = vmul.f32 %v1625, 1.442695
      %v1668 = vpow.pop %v1667
      %v1669 = vmul.f32 %v1626, 1.442695
      %v1670 = vpow.pop %v1669
      %v1671 = vmul.f32 %v1627, 1.442695
      %v1672 = vpow.pop %v1671
      %v1673 = vmul.f32 %v1628, 1.442695
      %v1674 = vpow.pop %v1673
      %v1675 = vmul.f32 %v1629, 1.442695
      %v1676 = vpow.pop %v1675
      %v1677 = vmul.f32 %v1630, 1.442695
      %v1678 = vpow.pop %v1677
      %v1679 = vmul.f32 %v1631, 1.442695
      %v1680 = vpow.pop %v1679
      %v1681 = vmul.f32 %v1632, 1.442695
      %v1682 = vpow.pop %v1681
      %v1683 = vmul.f32 %v1633, 1.442695
      %v1684 = vpow.pop %v1683
      %v1685 = vmul.f32 %v1634, 1.442695
      %v1686 = vpow.pop %v1685
      %v1687 = vmul.f32 %v1635, 1.442695
      %v1688 = vpow.pop %v1687
      %v1689 = vmul.f32 %v1636, 1.442695
      %v1690 = vpow.pop %v1689
      %v1691 = vmul.f32 %v1637, 1.442695
      %v1692 = vpow.pop %v1691
      %v1693 = vmul.f32 %v1638, 1.442695
      %v1694 = vpow.pop %v1693
      %v1695 = vmul.f32 %v1639, 1.442695
      %v1696 = vpow.pop %v1695
      %v1697 = vmul.f32 %v1640, 1.442695
      %v1698 = vpow.pop %v1697
      %v1699 = vmul.f32 %v1641, 1.442695
      %v1700 = vpow.pop %v1699
      %v1701 = vmul.f32 %v1642, 1.442695
      %v1702 = vpow.pop %v1701
      %v1703 = vmul.f32 %v1643, 1.442695
      %v1704 = vpow.pop %v1703
      %v1705 = vmul.f32 %v1644, 1.442695
      %v1706 = vpow.pop %v1705
      %v1707 = vmul.f32 %v1645, 1.442695
      %v1708 = vpow.pop %v1707
      %v1709 = vmul.f32 %v1646, 1.442695
      %v1710 = vpow.pop %v1709
      %v1711 = vadd.f32 %v1648, 1.0
      %v1712 = vadd.f32 %v1650, 1.0
      %v1713 = vadd.f32 %v1652, 1.0
      %v1714 = vadd.f32 %v1654, 1.0
      %v1715 = vadd.f32 %v1656, 1.0
      %v1716 = vadd.f32 %v1658, 1.0
      %v1717 = vadd.f32 %v1660, 1.0
      %v1718 = vadd.f32 %v1662, 1.0
      %v1719 = vadd.f32 %v1664, 1.0
      %v1720 = vadd.f32 %v1666, 1.0
      %v1721 = vadd.f32 %v1668, 1.0
      %v1722 = vadd.f32 %v1670, 1.0
      %v1723 = vadd.f32 %v1672, 1.0
      %v1724 = vadd.f32 %v1674, 1.0
      %v1725 = vadd.f32 %v1676, 1.0
      %v1726 = vadd.f32 %v1678, 1.0
      %v1727 = vadd.f32 %v1680, 1.0
      %v1728 = vadd.f32 %v1682, 1.0
      %v1729 = vadd.f32 %v1684, 1.0
      %v1730 = vadd.f32 %v1686, 1.0
      %v1731 = vadd.f32 %v1688, 1.0
      %v1732 = vadd.f32 %v1690, 1.0
      %v1733 = vadd.f32 %v1692, 1.0
      %v1734 = vadd.f32 %v1694, 1.0
      %v1735 = vadd.f32 %v1696, 1.0
      %v1736 = vadd.f32 %v1698, 1.0
      %v1737 = vadd.f32 %v1700, 1.0
      %v1738 = vadd.f32 %v1702, 1.0
      %v1739 = vadd.f32 %v1704, 1.0
      %v1740 = vadd.f32 %v1706, 1.0
      %v1741 = vadd.f32 %v1708, 1.0
      %v1742 = vadd.f32 %v1710, 1.0
      %v1743 = vrcp.pop %v1711
      %v1744 = vmul.f32 %v1711, %v1743
      %v1745 = vsub.f32 1.0, %v1744
      %v1746 = vmul.f32 %v1743, %v1745
      %v1747 = vadd.f32 %v1743, %v1746
      %vm1748 = vweird.f32 %v1711
      %vm1749 = vweird.f32 %v1743
      %vm1750 = vmor %vm1748, %vm1749
      %v1751 = vsel %vm1750, %v1743, %v1747
      %v1752 = vand.u32 2147483647, %v1711
      %vm1753 = vcmp.eq.f32.partialorder %v1752, 8.507059e+37
      %v1754 = vand.u32 %v1711, 2147483648
      %v1755 = vor.u32 1.1754944e-38, %v1754
      %v1756 = vsel %vm1753, %v1755, %v1751
      %v1757 = vmul.f32 1.0, %v1756
      %v1758 = vrcp.pop %v1712
      %v1759 = vmul.f32 %v1712, %v1758
      %v1760 = vsub.f32 1.0, %v1759
      %v1761 = vmul.f32 %v1758, %v1760
      %v1762 = vadd.f32 %v1758, %v1761
      %vm1763 = vweird.f32 %v1712
      %vm1764 = vweird.f32 %v1758
      %vm1765 = vmor %vm1763, %vm1764
      %v1766 = vsel %vm1765, %v1758, %v1762
      %v1767 = vand.u32 2147483647, %v1712
      %vm1768 = vcmp.eq.f32.partialorder %v1767, 8.507059e+37
      %v1769 = vand.u32 %v1712, 2147483648
      %v1770 = vor.u32 1.1754944e-38, %v1769
      %v1771 = vsel %vm1768, %v1770, %v1766
      %v1772 = vmul.f32 1.0, %v1771
      %v1773 = vrcp.pop %v1713
      %v1774 = vmul.f32 %v1713, %v1773
      %v1775 = vsub.f32 1.0, %v1774
      %v1776 = vmul.f32 %v1773, %v1775
      %v1777 = vadd.f32 %v1773, %v1776
      %vm1778 = vweird.f32 %v1713
      %vm1779 = vweird.f32 %v1773
      %vm1780 = vmor %vm1778, %vm1779
      %v1781 = vsel %vm1780, %v1773, %v1777
      %v1782 = vand.u32 2147483647, %v1713
      %vm1783 = vcmp.eq.f32.partialorder %v1782, 8.507059e+37
      %v1784 = vand.u32 %v1713, 2147483648
      %v1785 = vor.u32 1.1754944e-38, %v1784
      %v1786 = vsel %vm1783, %v1785, %v1781
      %v1787 = vmul.f32 1.0, %v1786
      %v1788 = vrcp.pop %v1714
      %v1789 = vmul.f32 %v1714, %v1788
      %v1790 = vsub.f32 1.0, %v1789
      %v1791 = vmul.f32 %v1788, %v1790
      %v1792 = vadd.f32 %v1788, %v1791
      %vm1793 = vweird.f32 %v1714
      %vm1794 = vweird.f32 %v1788
      %vm1795 = vmor %vm1793, %vm1794
      %v1796 = vsel %vm1795, %v1788, %v1792
      %v1797 = vand.u32 2147483647, %v1714
      %vm1798 = vcmp.eq.f32.partialorder %v1797, 8.507059e+37
      %v1799 = vand.u32 %v1714, 2147483648
      %v1800 = vor.u32 1.1754944e-38, %v1799
      %v1801 = vsel %vm1798, %v1800, %v1796
      %v1802 = vmul.f32 1.0, %v1801
      %v1803 = vrcp.pop %v1715
      %v1804 = vmul.f32 %v1715, %v1803
      %v1805 = vsub.f32 1.0, %v1804
      %v1806 = vmul.f32 %v1803, %v1805
      %v1807 = vadd.f32 %v1803, %v1806
      %vm1808 = vweird.f32 %v1715
      %vm1809 = vweird.f32 %v1803
      %vm1810 = vmor %vm1808, %vm1809
      %v1811 = vsel %vm1810, %v1803, %v1807
      %v1812 = vand.u32 2147483647, %v1715
      %vm1813 = vcmp.eq.f32.partialorder %v1812, 8.507059e+37
      %v1814 = vand.u32 %v1715, 2147483648
      %v1815 = vor.u32 1.1754944e-38, %v1814
      %v1816 = vsel %vm1813, %v1815, %v1811
      %v1817 = vmul.f32 1.0, %v1816
      %v1818 = vrcp.pop %v1716
      %v1819 = vmul.f32 %v1716, %v1818
      %v1820 = vsub.f32 1.0, %v1819
      %v1821 = vmul.f32 %v1818, %v1820
      %v1822 = vadd.f32 %v1818, %v1821
      %vm1823 = vweird.f32 %v1716
      %vm1824 = vweird.f32 %v1818
      %vm1825 = vmor %vm1823, %vm1824
      %v1826 = vsel %vm1825, %v1818, %v1822
      %v1827 = vand.u32 2147483647, %v1716
      %vm1828 = vcmp.eq.f32.partialorder %v1827, 8.507059e+37
      %v1829 = vand.u32 %v1716, 2147483648
      %v1830 = vor.u32 1.1754944e-38, %v1829
      %v1831 = vsel %vm1828, %v1830, %v1826
      %v1832 = vmul.f32 1.0, %v1831
      %v1833 = vrcp.pop %v1717
      %v1834 = vmul.f32 %v1717, %v1833
      %v1835 = vsub.f32 1.0, %v1834
      %v1836 = vmul.f32 %v1833, %v1835
      %v1837 = vadd.f32 %v1833, %v1836
      %vm1838 = vweird.f32 %v1717
      %vm1839 = vweird.f32 %v1833
      %vm1840 = vmor %vm1838, %vm1839
      %v1841 = vsel %vm1840, %v1833, %v1837
      %v1842 = vand.u32 2147483647, %v1717
      %vm1843 = vcmp.eq.f32.partialorder %v1842, 8.507059e+37
      %v1844 = vand.u32 %v1717, 2147483648
      %v1845 = vor.u32 1.1754944e-38, %v1844
      %v1846 = vsel %vm1843, %v1845, %v1841
      %v1847 = vmul.f32 1.0, %v1846
      %v1848 = vrcp.pop %v1718
      %v1849 = vmul.f32 %v1718, %v1848
      %v1850 = vsub.f32 1.0, %v1849
      %v1851 = vmul.f32 %v1848, %v1850
      %v1852 = vadd.f32 %v1848, %v1851
      %vm1853 = vweird.f32 %v1718
      %vm1854 = vweird.f32 %v1848
      %vm1855 = vmor %vm1853, %vm1854
      %v1856 = vsel %vm1855, %v1848, %v1852
      %v1857 = vand.u32 2147483647, %v1718
      %vm1858 = vcmp.eq.f32.partialorder %v1857, 8.507059e+37
      %v1859 = vand.u32 %v1718, 2147483648
      %v1860 = vor.u32 1.1754944e-38, %v1859
      %v1861 = vsel %vm1858, %v1860, %v1856
      %v1862 = vmul.f32 1.0, %v1861
      %v1863 = vrcp.pop %v1719
      %v1864 = vmul.f32 %v1719, %v1863
      %v1865 = vsub.f32 1.0, %v1864
      %v1866 = vmul.f32 %v1863, %v1865
      %v1867 = vadd.f32 %v1863, %v1866
      %vm1868 = vweird.f32 %v1719
      %vm1869 = vweird.f32 %v1863
      %vm1870 = vmor %vm1868, %vm1869
      %v1871 = vsel %vm1870, %v1863, %v1867
      %v1872 = vand.u32 2147483647, %v1719
      %vm1873 = vcmp.eq.f32.partialorder %v1872, 8.507059e+37
      %v1874 = vand.u32 %v1719, 2147483648
      %v1875 = vor.u32 1.1754944e-38, %v1874
      %v1876 = vsel %vm1873, %v1875, %v1871
      %v1877 = vmul.f32 1.0, %v1876
      %v1878 = vrcp.pop %v1720
      %v1879 = vmul.f32 %v1720, %v1878
      %v1880 = vsub.f32 1.0, %v1879
      %v1881 = vmul.f32 %v1878, %v1880
      %v1882 = vadd.f32 %v1878, %v1881
      %vm1883 = vweird.f32 %v1720
      %vm1884 = vweird.f32 %v1878
      %vm1885 = vmor %vm1883, %vm1884
      %v1886 = vsel %vm1885, %v1878, %v1882
      %v1887 = vand.u32 2147483647, %v1720
      %vm1888 = vcmp.eq.f32.partialorder %v1887, 8.507059e+37
      %v1889 = vand.u32 %v1720, 2147483648
      %v1890 = vor.u32 1.1754944e-38, %v1889
      %v1891 = vsel %vm1888, %v1890, %v1886
      %v1892 = vmul.f32 1.0, %v1891
      %v1893 = vrcp.pop %v1721
      %v1894 = vmul.f32 %v1721, %v1893
      %v1895 = vsub.f32 1.0, %v1894
      %v1896 = vmul.f32 %v1893, %v1895
      %v1897 = vadd.f32 %v1893, %v1896
      %vm1898 = vweird.f32 %v1721
      %vm1899 = vweird.f32 %v1893
      %vm1900 = vmor %vm1898, %vm1899
      %v1901 = vsel %vm1900, %v1893, %v1897
      %v1902 = vand.u32 2147483647, %v1721
      %vm1903 = vcmp.eq.f32.partialorder %v1902, 8.507059e+37
      %v1904 = vand.u32 %v1721, 2147483648
      %v1905 = vor.u32 1.1754944e-38, %v1904
      %v1906 = vsel %vm1903, %v1905, %v1901
      %v1907 = vmul.f32 1.0, %v1906
      %v1908 = vrcp.pop %v1722
      %v1909 = vmul.f32 %v1722, %v1908
      %v1910 = vsub.f32 1.0, %v1909
      %v1911 = vmul.f32 %v1908, %v1910
      %v1912 = vadd.f32 %v1908, %v1911
      %vm1913 = vweird.f32 %v1722
      %vm1914 = vweird.f32 %v1908
      %vm1915 = vmor %vm1913, %vm1914
      %v1916 = vsel %vm1915, %v1908, %v1912
      %v1917 = vand.u32 2147483647, %v1722
      %vm1918 = vcmp.eq.f32.partialorder %v1917, 8.507059e+37
      %v1919 = vand.u32 %v1722, 2147483648
      %v1920 = vor.u32 1.1754944e-38, %v1919
      %v1921 = vsel %vm1918, %v1920, %v1916
      %v1922 = vmul.f32 1.0, %v1921
      %v1923 = vrcp.pop %v1723
      %v1924 = vmul.f32 %v1723, %v1923
      %v1925 = vsub.f32 1.0, %v1924
      %v1926 = vmul.f32 %v1923, %v1925
      %v1927 = vadd.f32 %v1923, %v1926
      %vm1928 = vweird.f32 %v1723
      %vm1929 = vweird.f32 %v1923
      %vm1930 = vmor %vm1928, %vm1929
      %v1931 = vsel %vm1930, %v1923, %v1927
      %v1932 = vand.u32 2147483647, %v1723
      %vm1933 = vcmp.eq.f32.partialorder %v1932, 8.507059e+37
      %v1934 = vand.u32 %v1723, 2147483648
      %v1935 = vor.u32 1.1754944e-38, %v1934
      %v1936 = vsel %vm1933, %v1935, %v1931
      %v1937 = vmul.f32 1.0, %v1936
      %v1938 = vrcp.pop %v1724
      %v1939 = vmul.f32 %v1724, %v1938
      %v1940 = vsub.f32 1.0, %v1939
      %v1941 = vmul.f32 %v1938, %v1940
      %v1942 = vadd.f32 %v1938, %v1941
      %vm1943 = vweird.f32 %v1724
      %vm1944 = vweird.f32 %v1938
      %vm1945 = vmor %vm1943, %vm1944
      %v1946 = vsel %vm1945, %v1938, %v1942
      %v1947 = vand.u32 2147483647, %v1724
      %vm1948 = vcmp.eq.f32.partialorder %v1947, 8.507059e+37
      %v1949 = vand.u32 %v1724, 2147483648
      %v1950 = vor.u32 1.1754944e-38, %v1949
      %v1951 = vsel %vm1948, %v1950, %v1946
      %v1952 = vmul.f32 1.0, %v1951
      %v1953 = vrcp.pop %v1725
      %v1954 = vmul.f32 %v1725, %v1953
      %v1955 = vsub.f32 1.0, %v1954
      %v1956 = vmul.f32 %v1953, %v1955
      %v1957 = vadd.f32 %v1953, %v1956
      %vm1958 = vweird.f32 %v1725
      %vm1959 = vweird.f32 %v1953
      %vm1960 = vmor %vm1958, %vm1959
      %v1961 = vsel %vm1960, %v1953, %v1957
      %v1962 = vand.u32 2147483647, %v1725
      %vm1963 = vcmp.eq.f32.partialorder %v1962, 8.507059e+37
      %v1964 = vand.u32 %v1725, 2147483648
      %v1965 = vor.u32 1.1754944e-38, %v1964
      %v1966 = vsel %vm1963, %v1965, %v1961
      %v1967 = vmul.f32 1.0, %v1966
      %v1968 = vrcp.pop %v1726
      %v1969 = vmul.f32 %v1726, %v1968
      %v1970 = vsub.f32 1.0, %v1969
      %v1971 = vmul.f32 %v1968, %v1970
      %v1972 = vadd.f32 %v1968, %v1971
      %vm1973 = vweird.f32 %v1726
      %vm1974 = vweird.f32 %v1968
      %vm1975 = vmor %vm1973, %vm1974
      %v1976 = vsel %vm1975, %v1968, %v1972
      %v1977 = vand.u32 2147483647, %v1726
      %vm1978 = vcmp.eq.f32.partialorder %v1977, 8.507059e+37
      %v1979 = vand.u32 %v1726, 2147483648
      %v1980 = vor.u32 1.1754944e-38, %v1979
      %v1981 = vsel %vm1978, %v1980, %v1976
      %v1982 = vmul.f32 1.0, %v1981
      %v1983 = vrcp.pop %v1727
      %v1984 = vmul.f32 %v1727, %v1983
      %v1985 = vsub.f32 1.0, %v1984
      %v1986 = vmul.f32 %v1983, %v1985
      %v1987 = vadd.f32 %v1983, %v1986
      %vm1988 = vweird.f32 %v1727
      %vm1989 = vweird.f32 %v1983
      %vm1990 = vmor %vm1988, %vm1989
      %v1991 = vsel %vm1990, %v1983, %v1987
      %v1992 = vand.u32 2147483647, %v1727
      %vm1993 = vcmp.eq.f32.partialorder %v1992, 8.507059e+37
      %v1994 = vand.u32 %v1727, 2147483648
      %v1995 = vor.u32 1.1754944e-38, %v1994
      %v1996 = vsel %vm1993, %v1995, %v1991
      %v1997 = vmul.f32 1.0, %v1996
      %v1998 = vrcp.pop %v1728
      %v1999 = vmul.f32 %v1728, %v1998
      %v2000 = vsub.f32 1.0, %v1999
      %v2001 = vmul.f32 %v1998, %v2000
      %v2002 = vadd.f32 %v1998, %v2001
      %vm2003 = vweird.f32 %v1728
      %vm2004 = vweird.f32 %v1998
      %vm2005 = vmor %vm2003, %vm2004
      %v2006 = vsel %vm2005, %v1998, %v2002
      %v2007 = vand.u32 2147483647, %v1728
      %vm2008 = vcmp.eq.f32.partialorder %v2007, 8.507059e+37
      %v2009 = vand.u32 %v1728, 2147483648
      %v2010 = vor.u32 1.1754944e-38, %v2009
      %v2011 = vsel %vm2008, %v2010, %v2006
      %v2012 = vmul.f32 1.0, %v2011
      %v2013 = vrcp.pop %v1729
      %v2014 = vmul.f32 %v1729, %v2013
      %v2015 = vsub.f32 1.0, %v2014
      %v2016 = vmul.f32 %v2013, %v2015
      %v2017 = vadd.f32 %v2013, %v2016
      %vm2018 = vweird.f32 %v1729
      %vm2019 = vweird.f32 %v2013
      %vm2020 = vmor %vm2018, %vm2019
      %v2021 = vsel %vm2020, %v2013, %v2017
      %v2022 = vand.u32 2147483647, %v1729
      %vm2023 = vcmp.eq.f32.partialorder %v2022, 8.507059e+37
      %v2024 = vand.u32 %v1729, 2147483648
      %v2025 = vor.u32 1.1754944e-38, %v2024
      %v2026 = vsel %vm2023, %v2025, %v2021
      %v2027 = vmul.f32 1.0, %v2026
      %v2028 = vrcp.pop %v1730
      %v2029 = vmul.f32 %v1730, %v2028
      %v2030 = vsub.f32 1.0, %v2029
      %v2031 = vmul.f32 %v2028, %v2030
      %v2032 = vadd.f32 %v2028, %v2031
      %vm2033 = vweird.f32 %v1730
      %vm2034 = vweird.f32 %v2028
      %vm2035 = vmor %vm2033, %vm2034
      %v2036 = vsel %vm2035, %v2028, %v2032
      %v2037 = vand.u32 2147483647, %v1730
      %vm2038 = vcmp.eq.f32.partialorder %v2037, 8.507059e+37
      %v2039 = vand.u32 %v1730, 2147483648
      %v2040 = vor.u32 1.1754944e-38, %v2039
      %v2041 = vsel %vm2038, %v2040, %v2036
      %v2042 = vmul.f32 1.0, %v2041
      %v2043 = vrcp.pop %v1731
      %v2044 = vmul.f32 %v1731, %v2043
      %v2045 = vsub.f32 1.0, %v2044
      %v2046 = vmul.f32 %v2043, %v2045
      %v2047 = vadd.f32 %v2043, %v2046
      %vm2048 = vweird.f32 %v1731
      %vm2049 = vweird.f32 %v2043
      %vm2050 = vmor %vm2048, %vm2049
      %v2051 = vsel %vm2050, %v2043, %v2047
      %v2052 = vand.u32 2147483647, %v1731
      %vm2053 = vcmp.eq.f32.partialorder %v2052, 8.507059e+37
      %v2054 = vand.u32 %v1731, 2147483648
      %v2055 = vor.u32 1.1754944e-38, %v2054
      %v2056 = vsel %vm2053, %v2055, %v2051
      %v2057 = vmul.f32 1.0, %v2056
      %v2058 = vrcp.pop %v1732
      %v2059 = vmul.f32 %v1732, %v2058
      %v2060 = vsub.f32 1.0, %v2059
      %v2061 = vmul.f32 %v2058, %v2060
      %v2062 = vadd.f32 %v2058, %v2061
      %vm2063 = vweird.f32 %v1732
      %vm2064 = vweird.f32 %v2058
      %vm2065 = vmor %vm2063, %vm2064
      %v2066 = vsel %vm2065, %v2058, %v2062
      %v2067 = vand.u32 2147483647, %v1732
      %vm2068 = vcmp.eq.f32.partialorder %v2067, 8.507059e+37
      %v2069 = vand.u32 %v1732, 2147483648
      %v2070 = vor.u32 1.1754944e-38, %v2069
      %v2071 = vsel %vm2068, %v2070, %v2066
      %v2072 = vmul.f32 1.0, %v2071
      %v2073 = vrcp.pop %v1733
      %v2074 = vmul.f32 %v1733, %v2073
      %v2075 = vsub.f32 1.0, %v2074
      %v2076 = vmul.f32 %v2073, %v2075
      %v2077 = vadd.f32 %v2073, %v2076
      %vm2078 = vweird.f32 %v1733
      %vm2079 = vweird.f32 %v2073
      %vm2080 = vmor %vm2078, %vm2079
      %v2081 = vsel %vm2080, %v2073, %v2077
      %v2082 = vand.u32 2147483647, %v1733
      %vm2083 = vcmp.eq.f32.partialorder %v2082, 8.507059e+37
      %v2084 = vand.u32 %v1733, 2147483648
      %v2085 = vor.u32 1.1754944e-38, %v2084
      %v2086 = vsel %vm2083, %v2085, %v2081
      %v2087 = vmul.f32 1.0, %v2086
      %v2088 = vrcp.pop %v1734
      %v2089 = vmul.f32 %v1734, %v2088
      %v2090 = vsub.f32 1.0, %v2089
      %v2091 = vmul.f32 %v2088, %v2090
      %v2092 = vadd.f32 %v2088, %v2091
      %vm2093 = vweird.f32 %v1734
      %vm2094 = vweird.f32 %v2088
      %vm2095 = vmor %vm2093, %vm2094
      %v2096 = vsel %vm2095, %v2088, %v2092
      %v2097 = vand.u32 2147483647, %v1734
      %vm2098 = vcmp.eq.f32.partialorder %v2097, 8.507059e+37
      %v2099 = vand.u32 %v1734, 2147483648
      %v2100 = vor.u32 1.1754944e-38, %v2099
      %v2101 = vsel %vm2098, %v2100, %v2096
      %v2102 = vmul.f32 1.0, %v2101
      %v2103 = vrcp.pop %v1735
      %v2104 = vmul.f32 %v1735, %v2103
      %v2105 = vsub.f32 1.0, %v2104
      %v2106 = vmul.f32 %v2103, %v2105
      %v2107 = vadd.f32 %v2103, %v2106
      %vm2108 = vweird.f32 %v1735
      %vm2109 = vweird.f32 %v2103
      %vm2110 = vmor %vm2108, %vm2109
      %v2111 = vsel %vm2110, %v2103, %v2107
      %v2112 = vand.u32 2147483647, %v1735
      %vm2113 = vcmp.eq.f32.partialorder %v2112, 8.507059e+37
      %v2114 = vand.u32 %v1735, 2147483648
      %v2115 = vor.u32 1.1754944e-38, %v2114
      %v2116 = vsel %vm2113, %v2115, %v2111
      %v2117 = vmul.f32 1.0, %v2116
      %v2118 = vrcp.pop %v1736
      %v2119 = vmul.f32 %v1736, %v2118
      %v2120 = vsub.f32 1.0, %v2119
      %v2121 = vmul.f32 %v2118, %v2120
      %v2122 = vadd.f32 %v2118, %v2121
      %vm2123 = vweird.f32 %v1736
      %vm2124 = vweird.f32 %v2118
      %vm2125 = vmor %vm2123, %vm2124
      %v2126 = vsel %vm2125, %v2118, %v2122
      %v2127 = vand.u32 2147483647, %v1736
      %vm2128 = vcmp.eq.f32.partialorder %v2127, 8.507059e+37
      %v2129 = vand.u32 %v1736, 2147483648
      %v2130 = vor.u32 1.1754944e-38, %v2129
      %v2131 = vsel %vm2128, %v2130, %v2126
      %v2132 = vmul.f32 1.0, %v2131
      %v2133 = vrcp.pop %v1737
      %v2134 = vmul.f32 %v1737, %v2133
      %v2135 = vsub.f32 1.0, %v2134
      %v2136 = vmul.f32 %v2133, %v2135
      %v2137 = vadd.f32 %v2133, %v2136
      %vm2138 = vweird.f32 %v1737
      %vm2139 = vweird.f32 %v2133
      %vm2140 = vmor %vm2138, %vm2139
      %v2141 = vsel %vm2140, %v2133, %v2137
      %v2142 = vand.u32 2147483647, %v1737
      %vm2143 = vcmp.eq.f32.partialorder %v2142, 8.507059e+37
      %v2144 = vand.u32 %v1737, 2147483648
      %v2145 = vor.u32 1.1754944e-38, %v2144
      %v2146 = vsel %vm2143, %v2145, %v2141
      %v2147 = vmul.f32 1.0, %v2146
      %v2148 = vrcp.pop %v1738
      %v2149 = vmul.f32 %v1738, %v2148
      %v2150 = vsub.f32 1.0, %v2149
      %v2151 = vmul.f32 %v2148, %v2150
      %v2152 = vadd.f32 %v2148, %v2151
      %vm2153 = vweird.f32 %v1738
      %vm2154 = vweird.f32 %v2148
      %vm2155 = vmor %vm2153, %vm2154
      %v2156 = vsel %vm2155, %v2148, %v2152
      %v2157 = vand.u32 2147483647, %v1738
      %vm2158 = vcmp.eq.f32.partialorder %v2157, 8.507059e+37
      %v2159 = vand.u32 %v1738, 2147483648
      %v2160 = vor.u32 1.1754944e-38, %v2159
      %v2161 = vsel %vm2158, %v2160, %v2156
      %v2162 = vmul.f32 1.0, %v2161
      %v2163 = vrcp.pop %v1739
      %v2164 = vmul.f32 %v1739, %v2163
      %v2165 = vsub.f32 1.0, %v2164
      %v2166 = vmul.f32 %v2163, %v2165
      %v2167 = vadd.f32 %v2163, %v2166
      %vm2168 = vweird.f32 %v1739
      %vm2169 = vweird.f32 %v2163
      %vm2170 = vmor %vm2168, %vm2169
      %v2171 = vsel %vm2170, %v2163, %v2167
      %v2172 = vand.u32 2147483647, %v1739
      %vm2173 = vcmp.eq.f32.partialorder %v2172, 8.507059e+37
      %v2174 = vand.u32 %v1739, 2147483648
      %v2175 = vor.u32 1.1754944e-38, %v2174
      %v2176 = vsel %vm2173, %v2175, %v2171
      %v2177 = vmul.f32 1.0, %v2176
      %v2178 = vrcp.pop %v1740
      %v2179 = vmul.f32 %v1740, %v2178
      %v2180 = vsub.f32 1.0, %v2179
      %v2181 = vmul.f32 %v2178, %v2180
      %v2182 = vadd.f32 %v2178, %v2181
      %vm2183 = vweird.f32 %v1740
      %vm2184 = vweird.f32 %v2178
      %vm2185 = vmor %vm2183, %vm2184
      %v2186 = vsel %vm2185, %v2178, %v2182
      %v2187 = vand.u32 2147483647, %v1740
      %vm2188 = vcmp.eq.f32.partialorder %v2187, 8.507059e+37
      %v2189 = vand.u32 %v1740, 2147483648
      %v2190 = vor.u32 1.1754944e-38, %v2189
      %v2191 = vsel %vm2188, %v2190, %v2186
      %v2192 = vmul.f32 1.0, %v2191
      %v2193 = vrcp.pop %v1741
      %v2194 = vmul.f32 %v1741, %v2193
      %v2195 = vsub.f32 1.0, %v2194
      %v2196 = vmul.f32 %v2193, %v2195
      %v2197 = vadd.f32 %v2193, %v2196
      %vm2198 = vweird.f32 %v1741
      %vm2199 = vweird.f32 %v2193
      %vm2200 = vmor %vm2198, %vm2199
      %v2201 = vsel %vm2200, %v2193, %v2197
      %v2202 = vand.u32 2147483647, %v1741
      %vm2203 = vcmp.eq.f32.partialorder %v2202, 8.507059e+37
      %v2204 = vand.u32 %v1741, 2147483648
      %v2205 = vor.u32 1.1754944e-38, %v2204
      %v2206 = vsel %vm2203, %v2205, %v2201
      %v2207 = vmul.f32 1.0, %v2206
      %v2208 = vrcp.pop %v1742
      %v2209 = vmul.f32 %v1742, %v2208
      %v2210 = vsub.f32 1.0, %v2209
      %v2211 = vmul.f32 %v2208, %v2210
      %v2212 = vadd.f32 %v2208, %v2211
      %vm2213 = vweird.f32 %v1742
      %vm2214 = vweird.f32 %v2208
      %vm2215 = vmor %vm2213, %vm2214
      %v2216 = vsel %vm2215, %v2208, %v2212
      %v2217 = vand.u32 2147483647, %v1742
      %vm2218 = vcmp.eq.f32.partialorder %v2217, 8.507059e+37
      %v2219 = vand.u32 %v1742, 2147483648
      %v2220 = vor.u32 1.1754944e-38, %v2219
      %v2221 = vsel %vm2218, %v2220, %v2216
      %v2222 = vmul.f32 1.0, %v2221
      %2255 = vrot.lane.b32.xlu0 %v1271, 32
      %v2256 = vpop.permute.xlu0 %2255
      %2257 = vrot.lane.b32.xlu0 %v1274, 32
      %v2258 = vpop.permute.xlu0 %2257
      %2259 = vrot.lane.b32.xlu0 %v1277, 32
      %v2260 = vpop.permute.xlu0 %2259
      %2261 = vrot.lane.b32.xlu0 %v1280, 32
      %v2262 = vpop.permute.xlu0 %2261
      %2263 = vrot.lane.b32.xlu0 %v1283, 32
      %v2264 = vpop.permute.xlu0 %2263
      %2265 = vrot.lane.b32.xlu0 %v1286, 32
      %v2266 = vpop.permute.xlu0 %2265
      %2267 = vrot.lane.b32.xlu0 %v1289, 32
      %v2268 = vpop.permute.xlu0 %2267
      %2269 = vrot.lane.b32.xlu0 %v1292, 32
      %v2270 = vpop.permute.xlu0 %2269
      %2271 = vrot.lane.b32.xlu0 %v1295, 32
      %v2272 = vpop.permute.xlu0 %2271
      %2273 = vrot.lane.b32.xlu0 %v1298, 32
      %v2274 = vpop.permute.xlu0 %2273
      %2275 = vrot.lane.b32.xlu0 %v1301, 32
      %v2276 = vpop.permute.xlu0 %2275
      %2277 = vrot.lane.b32.xlu0 %v1304, 32
      %v2278 = vpop.permute.xlu0 %2277
      %2279 = vrot.lane.b32.xlu0 %v1307, 32
      %v2280 = vpop.permute.xlu0 %2279
      %2281 = vrot.lane.b32.xlu0 %v1310, 32
      %v2282 = vpop.permute.xlu0 %2281
      %2283 = vrot.lane.b32.xlu0 %v1313, 32
      %v2284 = vpop.permute.xlu0 %2283
      %2285 = vrot.lane.b32.xlu0 %v1316, 32
      %v2286 = vpop.permute.xlu0 %2285
      %2287 = vrot.lane.b32.xlu0 %v1319, 32
      %v2288 = vpop.permute.xlu0 %2287
      %2289 = vrot.lane.b32.xlu0 %v1322, 32
      %v2290 = vpop.permute.xlu0 %2289
      %2291 = vrot.lane.b32.xlu0 %v1325, 32
      %v2292 = vpop.permute.xlu0 %2291
      %2293 = vrot.lane.b32.xlu0 %v1328, 32
      %v2294 = vpop.permute.xlu0 %2293
      %2295 = vrot.lane.b32.xlu0 %v1331, 32
      %v2296 = vpop.permute.xlu0 %2295
      %2297 = vrot.lane.b32.xlu0 %v1334, 32
      %v2298 = vpop.permute.xlu0 %2297
      %2299 = vrot.lane.b32.xlu0 %v1337, 32
      %v2300 = vpop.permute.xlu0 %2299
      %2301 = vrot.lane.b32.xlu0 %v1340, 32
      %v2302 = vpop.permute.xlu0 %2301
      %2303 = vrot.lane.b32.xlu0 %v1343, 32
      %v2304 = vpop.permute.xlu0 %2303
      %2305 = vrot.lane.b32.xlu0 %v1346, 32
      %v2306 = vpop.permute.xlu0 %2305
      %2307 = vrot.lane.b32.xlu0 %v1349, 32
      %v2308 = vpop.permute.xlu0 %2307
      %2309 = vrot.lane.b32.xlu0 %v1352, 32
      %v2310 = vpop.permute.xlu0 %2309
      %2311 = vrot.lane.b32.xlu0 %v1355, 32
      %v2312 = vpop.permute.xlu0 %2311
      %2313 = vrot.lane.b32.xlu0 %v1358, 32
      %v2314 = vpop.permute.xlu0 %2313
      %2315 = vrot.lane.b32.xlu0 %v1361, 32
      %v2316 = vpop.permute.xlu0 %2315
      %2317 = vrot.lane.b32.xlu0 %v1364, 32
      %v2318 = vpop.permute.xlu0 %2317
      %v2351 = vadd.f32 %v604, %v2256
      %v2352 = vadd.f32 %v607, %v2258
      %v2353 = vadd.f32 %v610, %v2260
      %v2354 = vadd.f32 %v613, %v2262
      %v2355 = vadd.f32 %v616, %v2264
      %v2356 = vadd.f32 %v619, %v2266
      %v2357 = vadd.f32 %v622, %v2268
      %v2358 = vadd.f32 %v625, %v2270
      %v2359 = vadd.f32 %v628, %v2272
      %v2360 = vadd.f32 %v631, %v2274
      %v2361 = vadd.f32 %v634, %v2276
      %v2362 = vadd.f32 %v637, %v2278
      %v2363 = vadd.f32 %v640, %v2280
      %v2364 = vadd.f32 %v643, %v2282
      %v2365 = vadd.f32 %v646, %v2284
      %v2366 = vadd.f32 %v649, %v2286
      %v2367 = vadd.f32 %v652, %v2288
      %v2368 = vadd.f32 %v655, %v2290
      %v2369 = vadd.f32 %v658, %v2292
      %v2370 = vadd.f32 %v661, %v2294
      %v2371 = vadd.f32 %v664, %v2296
      %v2372 = vadd.f32 %v667, %v2298
      %v2373 = vadd.f32 %v670, %v2300
      %v2374 = vadd.f32 %v673, %v2302
      %v2375 = vadd.f32 %v676, %v2304
      %v2376 = vadd.f32 %v679, %v2306
      %v2377 = vadd.f32 %v682, %v2308
      %v2378 = vadd.f32 %v685, %v2310
      %v2379 = vadd.f32 %v688, %v2312
      %v2380 = vadd.f32 %v691, %v2314
      %v2381 = vadd.f32 %v694, %v2316
      %v2382 = vadd.f32 %v697, %v2318
      %v2383 = vxor.u32 %v2351, 2147483648
      %v2384 = vxor.u32 %v2352, 2147483648
      %v2385 = vxor.u32 %v2353, 2147483648
      %v2386 = vxor.u32 %v2354, 2147483648
      %v2387 = vxor.u32 %v2355, 2147483648
      %v2388 = vxor.u32 %v2356, 2147483648
      %v2389 = vxor.u32 %v2357, 2147483648
      %v2390 = vxor.u32 %v2358, 2147483648
      %v2391 = vxor.u32 %v2359, 2147483648
      %v2392 = vxor.u32 %v2360, 2147483648
      %v2393 = vxor.u32 %v2361, 2147483648
      %v2394 = vxor.u32 %v2362, 2147483648
      %v2395 = vxor.u32 %v2363, 2147483648
      %v2396 = vxor.u32 %v2364, 2147483648
      %v2397 = vxor.u32 %v2365, 2147483648
      %v2398 = vxor.u32 %v2366, 2147483648
      %v2399 = vxor.u32 %v2367, 2147483648
      %v2400 = vxor.u32 %v2368, 2147483648
      %v2401 = vxor.u32 %v2369, 2147483648
      %v2402 = vxor.u32 %v2370, 2147483648
      %v2403 = vxor.u32 %v2371, 2147483648
      %v2404 = vxor.u32 %v2372, 2147483648
      %v2405 = vxor.u32 %v2373, 2147483648
      %v2406 = vxor.u32 %v2374, 2147483648
      %v2407 = vxor.u32 %v2375, 2147483648
      %v2408 = vxor.u32 %v2376, 2147483648
      %v2409 = vxor.u32 %v2377, 2147483648
      %v2410 = vxor.u32 %v2378, 2147483648
      %v2411 = vxor.u32 %v2379, 2147483648
      %v2412 = vxor.u32 %v2380, 2147483648
      %v2413 = vxor.u32 %v2381, 2147483648
      %v2414 = vxor.u32 %v2382, 2147483648
      %v2415 = vmul.f32 %v2383, 1.442695
      %v2416 = vpow.pop %v2415
      %v2417 = vmul.f32 %v2384, 1.442695
      %v2418 = vpow.pop %v2417
      %v2419 = vmul.f32 %v2385, 1.442695
      %v2420 = vpow.pop %v2419
      %v2421 = vmul.f32 %v2386, 1.442695
      %v2422 = vpow.pop %v2421
      %v2423 = vmul.f32 %v2387, 1.442695
      %v2424 = vpow.pop %v2423
      %v2425 = vmul.f32 %v2388, 1.442695
      %v2426 = vpow.pop %v2425
      %v2427 = vmul.f32 %v2389, 1.442695
      %v2428 = vpow.pop %v2427
      %v2429 = vmul.f32 %v2390, 1.442695
      %v2430 = vpow.pop %v2429
      %v2431 = vmul.f32 %v2391, 1.442695
      %v2432 = vpow.pop %v2431
      %v2433 = vmul.f32 %v2392, 1.442695
      %v2434 = vpow.pop %v2433
      %v2435 = vmul.f32 %v2393, 1.442695
      %v2436 = vpow.pop %v2435
      %v2437 = vmul.f32 %v2394, 1.442695
      %v2438 = vpow.pop %v2437
      %v2439 = vmul.f32 %v2395, 1.442695
      %v2440 = vpow.pop %v2439
      %v2441 = vmul.f32 %v2396, 1.442695
      %v2442 = vpow.pop %v2441
      %v2443 = vmul.f32 %v2397, 1.442695
      %v2444 = vpow.pop %v2443
      %v2445 = vmul.f32 %v2398, 1.442695
      %v2446 = vpow.pop %v2445
      %v2447 = vmul.f32 %v2399, 1.442695
      %v2448 = vpow.pop %v2447
      %v2449 = vmul.f32 %v2400, 1.442695
      %v2450 = vpow.pop %v2449
      %v2451 = vmul.f32 %v2401, 1.442695
      %v2452 = vpow.pop %v2451
      %v2453 = vmul.f32 %v2402, 1.442695
      %v2454 = vpow.pop %v2453
      %v2455 = vmul.f32 %v2403, 1.442695
      %v2456 = vpow.pop %v2455
      %v2457 = vmul.f32 %v2404, 1.442695
      %v2458 = vpow.pop %v2457
      %v2459 = vmul.f32 %v2405, 1.442695
      %v2460 = vpow.pop %v2459
      %v2461 = vmul.f32 %v2406, 1.442695
      %v2462 = vpow.pop %v2461
      %v2463 = vmul.f32 %v2407, 1.442695
      %v2464 = vpow.pop %v2463
      %v2465 = vmul.f32 %v2408, 1.442695
      %v2466 = vpow.pop %v2465
      %v2467 = vmul.f32 %v2409, 1.442695
      %v2468 = vpow.pop %v2467
      %v2469 = vmul.f32 %v2410, 1.442695
      %v2470 = vpow.pop %v2469
      %v2471 = vmul.f32 %v2411, 1.442695
      %v2472 = vpow.pop %v2471
      %v2473 = vmul.f32 %v2412, 1.442695
      %v2474 = vpow.pop %v2473
      %v2475 = vmul.f32 %v2413, 1.442695
      %v2476 = vpow.pop %v2475
      %v2477 = vmul.f32 %v2414, 1.442695
      %v2478 = vpow.pop %v2477
      %v2479 = vadd.f32 %v2416, 1.0
      %v2480 = vadd.f32 %v2418, 1.0
      %v2481 = vadd.f32 %v2420, 1.0
      %v2482 = vadd.f32 %v2422, 1.0
      %v2483 = vadd.f32 %v2424, 1.0
      %v2484 = vadd.f32 %v2426, 1.0
      %v2485 = vadd.f32 %v2428, 1.0
      %v2486 = vadd.f32 %v2430, 1.0
      %v2487 = vadd.f32 %v2432, 1.0
      %v2488 = vadd.f32 %v2434, 1.0
      %v2489 = vadd.f32 %v2436, 1.0
      %v2490 = vadd.f32 %v2438, 1.0
      %v2491 = vadd.f32 %v2440, 1.0
      %v2492 = vadd.f32 %v2442, 1.0
      %v2493 = vadd.f32 %v2444, 1.0
      %v2494 = vadd.f32 %v2446, 1.0
      %v2495 = vadd.f32 %v2448, 1.0
      %v2496 = vadd.f32 %v2450, 1.0
      %v2497 = vadd.f32 %v2452, 1.0
      %v2498 = vadd.f32 %v2454, 1.0
      %v2499 = vadd.f32 %v2456, 1.0
      %v2500 = vadd.f32 %v2458, 1.0
      %v2501 = vadd.f32 %v2460, 1.0
      %v2502 = vadd.f32 %v2462, 1.0
      %v2503 = vadd.f32 %v2464, 1.0
      %v2504 = vadd.f32 %v2466, 1.0
      %v2505 = vadd.f32 %v2468, 1.0
      %v2506 = vadd.f32 %v2470, 1.0
      %v2507 = vadd.f32 %v2472, 1.0
      %v2508 = vadd.f32 %v2474, 1.0
      %v2509 = vadd.f32 %v2476, 1.0
      %v2510 = vadd.f32 %v2478, 1.0
      %v2511 = vrcp.pop %v2479
      %v2512 = vmul.f32 %v2479, %v2511
      %v2513 = vsub.f32 1.0, %v2512
      %v2514 = vmul.f32 %v2511, %v2513
      %v2515 = vadd.f32 %v2511, %v2514
      %vm2516 = vweird.f32 %v2479
      %vm2517 = vweird.f32 %v2511
      %vm2518 = vmor %vm2516, %vm2517
      %v2519 = vsel %vm2518, %v2511, %v2515
      %v2520 = vand.u32 2147483647, %v2479
      %vm2521 = vcmp.eq.f32.partialorder %v2520, 8.507059e+37
      %v2522 = vand.u32 %v2479, 2147483648
      %v2523 = vor.u32 1.1754944e-38, %v2522
      %v2524 = vsel %vm2521, %v2523, %v2519
      %v2525 = vmul.f32 1.0, %v2524
      %v2526 = vrcp.pop %v2480
      %v2527 = vmul.f32 %v2480, %v2526
      %v2528 = vsub.f32 1.0, %v2527
      %v2529 = vmul.f32 %v2526, %v2528
      %v2530 = vadd.f32 %v2526, %v2529
      %vm2531 = vweird.f32 %v2480
      %vm2532 = vweird.f32 %v2526
      %vm2533 = vmor %vm2531, %vm2532
      %v2534 = vsel %vm2533, %v2526, %v2530
      %v2535 = vand.u32 2147483647, %v2480
      %vm2536 = vcmp.eq.f32.partialorder %v2535, 8.507059e+37
      %v2537 = vand.u32 %v2480, 2147483648
      %v2538 = vor.u32 1.1754944e-38, %v2537
      %v2539 = vsel %vm2536, %v2538, %v2534
      %v2540 = vmul.f32 1.0, %v2539
      %v2541 = vrcp.pop %v2481
      %v2542 = vmul.f32 %v2481, %v2541
      %v2543 = vsub.f32 1.0, %v2542
      %v2544 = vmul.f32 %v2541, %v2543
      %v2545 = vadd.f32 %v2541, %v2544
      %vm2546 = vweird.f32 %v2481
      %vm2547 = vweird.f32 %v2541
      %vm2548 = vmor %vm2546, %vm2547
      %v2549 = vsel %vm2548, %v2541, %v2545
      %v2550 = vand.u32 2147483647, %v2481
      %vm2551 = vcmp.eq.f32.partialorder %v2550, 8.507059e+37
      %v2552 = vand.u32 %v2481, 2147483648
      %v2553 = vor.u32 1.1754944e-38, %v2552
      %v2554 = vsel %vm2551, %v2553, %v2549
      %v2555 = vmul.f32 1.0, %v2554
      %v2556 = vrcp.pop %v2482
      %v2557 = vmul.f32 %v2482, %v2556
      %v2558 = vsub.f32 1.0, %v2557
      %v2559 = vmul.f32 %v2556, %v2558
      %v2560 = vadd.f32 %v2556, %v2559
      %vm2561 = vweird.f32 %v2482
      %vm2562 = vweird.f32 %v2556
      %vm2563 = vmor %vm2561, %vm2562
      %v2564 = vsel %vm2563, %v2556, %v2560
      %v2565 = vand.u32 2147483647, %v2482
      %vm2566 = vcmp.eq.f32.partialorder %v2565, 8.507059e+37
      %v2567 = vand.u32 %v2482, 2147483648
      %v2568 = vor.u32 1.1754944e-38, %v2567
      %v2569 = vsel %vm2566, %v2568, %v2564
      %v2570 = vmul.f32 1.0, %v2569
      %v2571 = vrcp.pop %v2483
      %v2572 = vmul.f32 %v2483, %v2571
      %v2573 = vsub.f32 1.0, %v2572
      %v2574 = vmul.f32 %v2571, %v2573
      %v2575 = vadd.f32 %v2571, %v2574
      %vm2576 = vweird.f32 %v2483
      %vm2577 = vweird.f32 %v2571
      %vm2578 = vmor %vm2576, %vm2577
      %v2579 = vsel %vm2578, %v2571, %v2575
      %v2580 = vand.u32 2147483647, %v2483
      %vm2581 = vcmp.eq.f32.partialorder %v2580, 8.507059e+37
      %v2582 = vand.u32 %v2483, 2147483648
      %v2583 = vor.u32 1.1754944e-38, %v2582
      %v2584 = vsel %vm2581, %v2583, %v2579
      %v2585 = vmul.f32 1.0, %v2584
      %v2586 = vrcp.pop %v2484
      %v2587 = vmul.f32 %v2484, %v2586
      %v2588 = vsub.f32 1.0, %v2587
      %v2589 = vmul.f32 %v2586, %v2588
      %v2590 = vadd.f32 %v2586, %v2589
      %vm2591 = vweird.f32 %v2484
      %vm2592 = vweird.f32 %v2586
      %vm2593 = vmor %vm2591, %vm2592
      %v2594 = vsel %vm2593, %v2586, %v2590
      %v2595 = vand.u32 2147483647, %v2484
      %vm2596 = vcmp.eq.f32.partialorder %v2595, 8.507059e+37
      %v2597 = vand.u32 %v2484, 2147483648
      %v2598 = vor.u32 1.1754944e-38, %v2597
      %v2599 = vsel %vm2596, %v2598, %v2594
      %v2600 = vmul.f32 1.0, %v2599
      %v2601 = vrcp.pop %v2485
      %v2602 = vmul.f32 %v2485, %v2601
      %v2603 = vsub.f32 1.0, %v2602
      %v2604 = vmul.f32 %v2601, %v2603
      %v2605 = vadd.f32 %v2601, %v2604
      %vm2606 = vweird.f32 %v2485
      %vm2607 = vweird.f32 %v2601
      %vm2608 = vmor %vm2606, %vm2607
      %v2609 = vsel %vm2608, %v2601, %v2605
      %v2610 = vand.u32 2147483647, %v2485
      %vm2611 = vcmp.eq.f32.partialorder %v2610, 8.507059e+37
      %v2612 = vand.u32 %v2485, 2147483648
      %v2613 = vor.u32 1.1754944e-38, %v2612
      %v2614 = vsel %vm2611, %v2613, %v2609
      %v2615 = vmul.f32 1.0, %v2614
      %v2616 = vrcp.pop %v2486
      %v2617 = vmul.f32 %v2486, %v2616
      %v2618 = vsub.f32 1.0, %v2617
      %v2619 = vmul.f32 %v2616, %v2618
      %v2620 = vadd.f32 %v2616, %v2619
      %vm2621 = vweird.f32 %v2486
      %vm2622 = vweird.f32 %v2616
      %vm2623 = vmor %vm2621, %vm2622
      %v2624 = vsel %vm2623, %v2616, %v2620
      %v2625 = vand.u32 2147483647, %v2486
      %vm2626 = vcmp.eq.f32.partialorder %v2625, 8.507059e+37
      %v2627 = vand.u32 %v2486, 2147483648
      %v2628 = vor.u32 1.1754944e-38, %v2627
      %v2629 = vsel %vm2626, %v2628, %v2624
      %v2630 = vmul.f32 1.0, %v2629
      %v2631 = vrcp.pop %v2487
      %v2632 = vmul.f32 %v2487, %v2631
      %v2633 = vsub.f32 1.0, %v2632
      %v2634 = vmul.f32 %v2631, %v2633
      %v2635 = vadd.f32 %v2631, %v2634
      %vm2636 = vweird.f32 %v2487
      %vm2637 = vweird.f32 %v2631
      %vm2638 = vmor %vm2636, %vm2637
      %v2639 = vsel %vm2638, %v2631, %v2635
      %v2640 = vand.u32 2147483647, %v2487
      %vm2641 = vcmp.eq.f32.partialorder %v2640, 8.507059e+37
      %v2642 = vand.u32 %v2487, 2147483648
      %v2643 = vor.u32 1.1754944e-38, %v2642
      %v2644 = vsel %vm2641, %v2643, %v2639
      %v2645 = vmul.f32 1.0, %v2644
      %v2646 = vrcp.pop %v2488
      %v2647 = vmul.f32 %v2488, %v2646
      %v2648 = vsub.f32 1.0, %v2647
      %v2649 = vmul.f32 %v2646, %v2648
      %v2650 = vadd.f32 %v2646, %v2649
      %vm2651 = vweird.f32 %v2488
      %vm2652 = vweird.f32 %v2646
      %vm2653 = vmor %vm2651, %vm2652
      %v2654 = vsel %vm2653, %v2646, %v2650
      %v2655 = vand.u32 2147483647, %v2488
      %vm2656 = vcmp.eq.f32.partialorder %v2655, 8.507059e+37
      %v2657 = vand.u32 %v2488, 2147483648
      %v2658 = vor.u32 1.1754944e-38, %v2657
      %v2659 = vsel %vm2656, %v2658, %v2654
      %v2660 = vmul.f32 1.0, %v2659
      %v2661 = vrcp.pop %v2489
      %v2662 = vmul.f32 %v2489, %v2661
      %v2663 = vsub.f32 1.0, %v2662
      %v2664 = vmul.f32 %v2661, %v2663
      %v2665 = vadd.f32 %v2661, %v2664
      %vm2666 = vweird.f32 %v2489
      %vm2667 = vweird.f32 %v2661
      %vm2668 = vmor %vm2666, %vm2667
      %v2669 = vsel %vm2668, %v2661, %v2665
      %v2670 = vand.u32 2147483647, %v2489
      %vm2671 = vcmp.eq.f32.partialorder %v2670, 8.507059e+37
      %v2672 = vand.u32 %v2489, 2147483648
      %v2673 = vor.u32 1.1754944e-38, %v2672
      %v2674 = vsel %vm2671, %v2673, %v2669
      %v2675 = vmul.f32 1.0, %v2674
      %v2676 = vrcp.pop %v2490
      %v2677 = vmul.f32 %v2490, %v2676
      %v2678 = vsub.f32 1.0, %v2677
      %v2679 = vmul.f32 %v2676, %v2678
      %v2680 = vadd.f32 %v2676, %v2679
      %vm2681 = vweird.f32 %v2490
      %vm2682 = vweird.f32 %v2676
      %vm2683 = vmor %vm2681, %vm2682
      %v2684 = vsel %vm2683, %v2676, %v2680
      %v2685 = vand.u32 2147483647, %v2490
      %vm2686 = vcmp.eq.f32.partialorder %v2685, 8.507059e+37
      %v2687 = vand.u32 %v2490, 2147483648
      %v2688 = vor.u32 1.1754944e-38, %v2687
      %v2689 = vsel %vm2686, %v2688, %v2684
      %v2690 = vmul.f32 1.0, %v2689
      %v2691 = vrcp.pop %v2491
      %v2692 = vmul.f32 %v2491, %v2691
      %v2693 = vsub.f32 1.0, %v2692
      %v2694 = vmul.f32 %v2691, %v2693
      %v2695 = vadd.f32 %v2691, %v2694
      %vm2696 = vweird.f32 %v2491
      %vm2697 = vweird.f32 %v2691
      %vm2698 = vmor %vm2696, %vm2697
      %v2699 = vsel %vm2698, %v2691, %v2695
      %v2700 = vand.u32 2147483647, %v2491
      %vm2701 = vcmp.eq.f32.partialorder %v2700, 8.507059e+37
      %v2702 = vand.u32 %v2491, 2147483648
      %v2703 = vor.u32 1.1754944e-38, %v2702
      %v2704 = vsel %vm2701, %v2703, %v2699
      %v2705 = vmul.f32 1.0, %v2704
      %v2706 = vrcp.pop %v2492
      %v2707 = vmul.f32 %v2492, %v2706
      %v2708 = vsub.f32 1.0, %v2707
      %v2709 = vmul.f32 %v2706, %v2708
      %v2710 = vadd.f32 %v2706, %v2709
      %vm2711 = vweird.f32 %v2492
      %vm2712 = vweird.f32 %v2706
      %vm2713 = vmor %vm2711, %vm2712
      %v2714 = vsel %vm2713, %v2706, %v2710
      %v2715 = vand.u32 2147483647, %v2492
      %vm2716 = vcmp.eq.f32.partialorder %v2715, 8.507059e+37
      %v2717 = vand.u32 %v2492, 2147483648
      %v2718 = vor.u32 1.1754944e-38, %v2717
      %v2719 = vsel %vm2716, %v2718, %v2714
      %v2720 = vmul.f32 1.0, %v2719
      %v2721 = vrcp.pop %v2493
      %v2722 = vmul.f32 %v2493, %v2721
      %v2723 = vsub.f32 1.0, %v2722
      %v2724 = vmul.f32 %v2721, %v2723
      %v2725 = vadd.f32 %v2721, %v2724
      %vm2726 = vweird.f32 %v2493
      %vm2727 = vweird.f32 %v2721
      %vm2728 = vmor %vm2726, %vm2727
      %v2729 = vsel %vm2728, %v2721, %v2725
      %v2730 = vand.u32 2147483647, %v2493
      %vm2731 = vcmp.eq.f32.partialorder %v2730, 8.507059e+37
      %v2732 = vand.u32 %v2493, 2147483648
      %v2733 = vor.u32 1.1754944e-38, %v2732
      %v2734 = vsel %vm2731, %v2733, %v2729
      %v2735 = vmul.f32 1.0, %v2734
      %v2736 = vrcp.pop %v2494
      %v2737 = vmul.f32 %v2494, %v2736
      %v2738 = vsub.f32 1.0, %v2737
      %v2739 = vmul.f32 %v2736, %v2738
      %v2740 = vadd.f32 %v2736, %v2739
      %vm2741 = vweird.f32 %v2494
      %vm2742 = vweird.f32 %v2736
      %vm2743 = vmor %vm2741, %vm2742
      %v2744 = vsel %vm2743, %v2736, %v2740
      %v2745 = vand.u32 2147483647, %v2494
      %vm2746 = vcmp.eq.f32.partialorder %v2745, 8.507059e+37
      %v2747 = vand.u32 %v2494, 2147483648
      %v2748 = vor.u32 1.1754944e-38, %v2747
      %v2749 = vsel %vm2746, %v2748, %v2744
      %v2750 = vmul.f32 1.0, %v2749
      %v2751 = vrcp.pop %v2495
      %v2752 = vmul.f32 %v2495, %v2751
      %v2753 = vsub.f32 1.0, %v2752
      %v2754 = vmul.f32 %v2751, %v2753
      %v2755 = vadd.f32 %v2751, %v2754
      %vm2756 = vweird.f32 %v2495
      %vm2757 = vweird.f32 %v2751
      %vm2758 = vmor %vm2756, %vm2757
      %v2759 = vsel %vm2758, %v2751, %v2755
      %v2760 = vand.u32 2147483647, %v2495
      %vm2761 = vcmp.eq.f32.partialorder %v2760, 8.507059e+37
      %v2762 = vand.u32 %v2495, 2147483648
      %v2763 = vor.u32 1.1754944e-38, %v2762
      %v2764 = vsel %vm2761, %v2763, %v2759
      %v2765 = vmul.f32 1.0, %v2764
      %v2766 = vrcp.pop %v2496
      %v2767 = vmul.f32 %v2496, %v2766
      %v2768 = vsub.f32 1.0, %v2767
      %v2769 = vmul.f32 %v2766, %v2768
      %v2770 = vadd.f32 %v2766, %v2769
      %vm2771 = vweird.f32 %v2496
      %vm2772 = vweird.f32 %v2766
      %vm2773 = vmor %vm2771, %vm2772
      %v2774 = vsel %vm2773, %v2766, %v2770
      %v2775 = vand.u32 2147483647, %v2496
      %vm2776 = vcmp.eq.f32.partialorder %v2775, 8.507059e+37
      %v2777 = vand.u32 %v2496, 2147483648
      %v2778 = vor.u32 1.1754944e-38, %v2777
      %v2779 = vsel %vm2776, %v2778, %v2774
      %v2780 = vmul.f32 1.0, %v2779
      %v2781 = vrcp.pop %v2497
      %v2782 = vmul.f32 %v2497, %v2781
      %v2783 = vsub.f32 1.0, %v2782
      %v2784 = vmul.f32 %v2781, %v2783
      %v2785 = vadd.f32 %v2781, %v2784
      %vm2786 = vweird.f32 %v2497
      %vm2787 = vweird.f32 %v2781
      %vm2788 = vmor %vm2786, %vm2787
      %v2789 = vsel %vm2788, %v2781, %v2785
      %v2790 = vand.u32 2147483647, %v2497
      %vm2791 = vcmp.eq.f32.partialorder %v2790, 8.507059e+37
      %v2792 = vand.u32 %v2497, 2147483648
      %v2793 = vor.u32 1.1754944e-38, %v2792
      %v2794 = vsel %vm2791, %v2793, %v2789
      %v2795 = vmul.f32 1.0, %v2794
      %v2796 = vrcp.pop %v2498
      %v2797 = vmul.f32 %v2498, %v2796
      %v2798 = vsub.f32 1.0, %v2797
      %v2799 = vmul.f32 %v2796, %v2798
      %v2800 = vadd.f32 %v2796, %v2799
      %vm2801 = vweird.f32 %v2498
      %vm2802 = vweird.f32 %v2796
      %vm2803 = vmor %vm2801, %vm2802
      %v2804 = vsel %vm2803, %v2796, %v2800
      %v2805 = vand.u32 2147483647, %v2498
      %vm2806 = vcmp.eq.f32.partialorder %v2805, 8.507059e+37
      %v2807 = vand.u32 %v2498, 2147483648
      %v2808 = vor.u32 1.1754944e-38, %v2807
      %v2809 = vsel %vm2806, %v2808, %v2804
      %v2810 = vmul.f32 1.0, %v2809
      %v2811 = vrcp.pop %v2499
      %v2812 = vmul.f32 %v2499, %v2811
      %v2813 = vsub.f32 1.0, %v2812
      %v2814 = vmul.f32 %v2811, %v2813
      %v2815 = vadd.f32 %v2811, %v2814
      %vm2816 = vweird.f32 %v2499
      %vm2817 = vweird.f32 %v2811
      %vm2818 = vmor %vm2816, %vm2817
      %v2819 = vsel %vm2818, %v2811, %v2815
      %v2820 = vand.u32 2147483647, %v2499
      %vm2821 = vcmp.eq.f32.partialorder %v2820, 8.507059e+37
      %v2822 = vand.u32 %v2499, 2147483648
      %v2823 = vor.u32 1.1754944e-38, %v2822
      %v2824 = vsel %vm2821, %v2823, %v2819
      %v2825 = vmul.f32 1.0, %v2824
      %v2826 = vrcp.pop %v2500
      %v2827 = vmul.f32 %v2500, %v2826
      %v2828 = vsub.f32 1.0, %v2827
      %v2829 = vmul.f32 %v2826, %v2828
      %v2830 = vadd.f32 %v2826, %v2829
      %vm2831 = vweird.f32 %v2500
      %vm2832 = vweird.f32 %v2826
      %vm2833 = vmor %vm2831, %vm2832
      %v2834 = vsel %vm2833, %v2826, %v2830
      %v2835 = vand.u32 2147483647, %v2500
      %vm2836 = vcmp.eq.f32.partialorder %v2835, 8.507059e+37
      %v2837 = vand.u32 %v2500, 2147483648
      %v2838 = vor.u32 1.1754944e-38, %v2837
      %v2839 = vsel %vm2836, %v2838, %v2834
      %v2840 = vmul.f32 1.0, %v2839
      %v2841 = vrcp.pop %v2501
      %v2842 = vmul.f32 %v2501, %v2841
      %v2843 = vsub.f32 1.0, %v2842
      %v2844 = vmul.f32 %v2841, %v2843
      %v2845 = vadd.f32 %v2841, %v2844
      %vm2846 = vweird.f32 %v2501
      %vm2847 = vweird.f32 %v2841
      %vm2848 = vmor %vm2846, %vm2847
      %v2849 = vsel %vm2848, %v2841, %v2845
      %v2850 = vand.u32 2147483647, %v2501
      %vm2851 = vcmp.eq.f32.partialorder %v2850, 8.507059e+37
      %v2852 = vand.u32 %v2501, 2147483648
      %v2853 = vor.u32 1.1754944e-38, %v2852
      %v2854 = vsel %vm2851, %v2853, %v2849
      %v2855 = vmul.f32 1.0, %v2854
      %v2856 = vrcp.pop %v2502
      %v2857 = vmul.f32 %v2502, %v2856
      %v2858 = vsub.f32 1.0, %v2857
      %v2859 = vmul.f32 %v2856, %v2858
      %v2860 = vadd.f32 %v2856, %v2859
      %vm2861 = vweird.f32 %v2502
      %vm2862 = vweird.f32 %v2856
      %vm2863 = vmor %vm2861, %vm2862
      %v2864 = vsel %vm2863, %v2856, %v2860
      %v2865 = vand.u32 2147483647, %v2502
      %vm2866 = vcmp.eq.f32.partialorder %v2865, 8.507059e+37
      %v2867 = vand.u32 %v2502, 2147483648
      %v2868 = vor.u32 1.1754944e-38, %v2867
      %v2869 = vsel %vm2866, %v2868, %v2864
      %v2870 = vmul.f32 1.0, %v2869
      %v2871 = vrcp.pop %v2503
      %v2872 = vmul.f32 %v2503, %v2871
      %v2873 = vsub.f32 1.0, %v2872
      %v2874 = vmul.f32 %v2871, %v2873
      %v2875 = vadd.f32 %v2871, %v2874
      %vm2876 = vweird.f32 %v2503
      %vm2877 = vweird.f32 %v2871
      %vm2878 = vmor %vm2876, %vm2877
      %v2879 = vsel %vm2878, %v2871, %v2875
      %v2880 = vand.u32 2147483647, %v2503
      %vm2881 = vcmp.eq.f32.partialorder %v2880, 8.507059e+37
      %v2882 = vand.u32 %v2503, 2147483648
      %v2883 = vor.u32 1.1754944e-38, %v2882
      %v2884 = vsel %vm2881, %v2883, %v2879
      %v2885 = vmul.f32 1.0, %v2884
      %v2886 = vrcp.pop %v2504
      %v2887 = vmul.f32 %v2504, %v2886
      %v2888 = vsub.f32 1.0, %v2887
      %v2889 = vmul.f32 %v2886, %v2888
      %v2890 = vadd.f32 %v2886, %v2889
      %vm2891 = vweird.f32 %v2504
      %vm2892 = vweird.f32 %v2886
      %vm2893 = vmor %vm2891, %vm2892
      %v2894 = vsel %vm2893, %v2886, %v2890
      %v2895 = vand.u32 2147483647, %v2504
      %vm2896 = vcmp.eq.f32.partialorder %v2895, 8.507059e+37
      %v2897 = vand.u32 %v2504, 2147483648
      %v2898 = vor.u32 1.1754944e-38, %v2897
      %v2899 = vsel %vm2896, %v2898, %v2894
      %v2900 = vmul.f32 1.0, %v2899
      %v2901 = vrcp.pop %v2505
      %v2902 = vmul.f32 %v2505, %v2901
      %v2903 = vsub.f32 1.0, %v2902
      %v2904 = vmul.f32 %v2901, %v2903
      %v2905 = vadd.f32 %v2901, %v2904
      %vm2906 = vweird.f32 %v2505
      %vm2907 = vweird.f32 %v2901
      %vm2908 = vmor %vm2906, %vm2907
      %v2909 = vsel %vm2908, %v2901, %v2905
      %v2910 = vand.u32 2147483647, %v2505
      %vm2911 = vcmp.eq.f32.partialorder %v2910, 8.507059e+37
      %v2912 = vand.u32 %v2505, 2147483648
      %v2913 = vor.u32 1.1754944e-38, %v2912
      %v2914 = vsel %vm2911, %v2913, %v2909
      %v2915 = vmul.f32 1.0, %v2914
      %v2916 = vrcp.pop %v2506
      %v2917 = vmul.f32 %v2506, %v2916
      %v2918 = vsub.f32 1.0, %v2917
      %v2919 = vmul.f32 %v2916, %v2918
      %v2920 = vadd.f32 %v2916, %v2919
      %vm2921 = vweird.f32 %v2506
      %vm2922 = vweird.f32 %v2916
      %vm2923 = vmor %vm2921, %vm2922
      %v2924 = vsel %vm2923, %v2916, %v2920
      %v2925 = vand.u32 2147483647, %v2506
      %vm2926 = vcmp.eq.f32.partialorder %v2925, 8.507059e+37
      %v2927 = vand.u32 %v2506, 2147483648
      %v2928 = vor.u32 1.1754944e-38, %v2927
      %v2929 = vsel %vm2926, %v2928, %v2924
      %v2930 = vmul.f32 1.0, %v2929
      %v2931 = vrcp.pop %v2507
      %v2932 = vmul.f32 %v2507, %v2931
      %v2933 = vsub.f32 1.0, %v2932
      %v2934 = vmul.f32 %v2931, %v2933
      %v2935 = vadd.f32 %v2931, %v2934
      %vm2936 = vweird.f32 %v2507
      %vm2937 = vweird.f32 %v2931
      %vm2938 = vmor %vm2936, %vm2937
      %v2939 = vsel %vm2938, %v2931, %v2935
      %v2940 = vand.u32 2147483647, %v2507
      %vm2941 = vcmp.eq.f32.partialorder %v2940, 8.507059e+37
      %v2942 = vand.u32 %v2507, 2147483648
      %v2943 = vor.u32 1.1754944e-38, %v2942
      %v2944 = vsel %vm2941, %v2943, %v2939
      %v2945 = vmul.f32 1.0, %v2944
      %v2946 = vrcp.pop %v2508
      %v2947 = vmul.f32 %v2508, %v2946
      %v2948 = vsub.f32 1.0, %v2947
      %v2949 = vmul.f32 %v2946, %v2948
      %v2950 = vadd.f32 %v2946, %v2949
      %vm2951 = vweird.f32 %v2508
      %vm2952 = vweird.f32 %v2946
      %vm2953 = vmor %vm2951, %vm2952
      %v2954 = vsel %vm2953, %v2946, %v2950
      %v2955 = vand.u32 2147483647, %v2508
      %vm2956 = vcmp.eq.f32.partialorder %v2955, 8.507059e+37
      %v2957 = vand.u32 %v2508, 2147483648
      %v2958 = vor.u32 1.1754944e-38, %v2957
      %v2959 = vsel %vm2956, %v2958, %v2954
      %v2960 = vmul.f32 1.0, %v2959
      %v2961 = vrcp.pop %v2509
      %v2962 = vmul.f32 %v2509, %v2961
      %v2963 = vsub.f32 1.0, %v2962
      %v2964 = vmul.f32 %v2961, %v2963
      %v2965 = vadd.f32 %v2961, %v2964
      %vm2966 = vweird.f32 %v2509
      %vm2967 = vweird.f32 %v2961
      %vm2968 = vmor %vm2966, %vm2967
      %v2969 = vsel %vm2968, %v2961, %v2965
      %v2970 = vand.u32 2147483647, %v2509
      %vm2971 = vcmp.eq.f32.partialorder %v2970, 8.507059e+37
      %v2972 = vand.u32 %v2509, 2147483648
      %v2973 = vor.u32 1.1754944e-38, %v2972
      %v2974 = vsel %vm2971, %v2973, %v2969
      %v2975 = vmul.f32 1.0, %v2974
      %v2976 = vrcp.pop %v2510
      %v2977 = vmul.f32 %v2510, %v2976
      %v2978 = vsub.f32 1.0, %v2977
      %v2979 = vmul.f32 %v2976, %v2978
      %v2980 = vadd.f32 %v2976, %v2979
      %vm2981 = vweird.f32 %v2510
      %vm2982 = vweird.f32 %v2976
      %vm2983 = vmor %vm2981, %vm2982
      %v2984 = vsel %vm2983, %v2976, %v2980
      %v2985 = vand.u32 2147483647, %v2510
      %vm2986 = vcmp.eq.f32.partialorder %v2985, 8.507059e+37
      %v2987 = vand.u32 %v2510, 2147483648
      %v2988 = vor.u32 1.1754944e-38, %v2987
      %v2989 = vsel %vm2986, %v2988, %v2984
      %v2990 = vmul.f32 1.0, %v2989
      %v2991 = vtanh.pop %v2351
      %v2992 = vtanh.pop %v2352
      %v2993 = vtanh.pop %v2353
      %v2994 = vtanh.pop %v2354
      %v2995 = vtanh.pop %v2355
      %v2996 = vtanh.pop %v2356
      %v2997 = vtanh.pop %v2357
      %v2998 = vtanh.pop %v2358
      %v2999 = vtanh.pop %v2359
      %v3000 = vtanh.pop %v2360
      %v3001 = vtanh.pop %v2361
      %v3002 = vtanh.pop %v2362
      %v3003 = vtanh.pop %v2363
      %v3004 = vtanh.pop %v2364
      %v3005 = vtanh.pop %v2365
      %v3006 = vtanh.pop %v2366
      %v3007 = vtanh.pop %v2367
      %v3008 = vtanh.pop %v2368
      %v3009 = vtanh.pop %v2369
      %v3010 = vtanh.pop %v2370
      %v3011 = vtanh.pop %v2371
      %v3012 = vtanh.pop %v2372
      %v3013 = vtanh.pop %v2373
      %v3014 = vtanh.pop %v2374
      %v3015 = vtanh.pop %v2375
      %v3016 = vtanh.pop %v2376
      %v3017 = vtanh.pop %v2377
      %v3018 = vtanh.pop %v2378
      %v3019 = vtanh.pop %v2379
      %v3020 = vtanh.pop %v2380
      %v3021 = vtanh.pop %v2381
      %v3022 = vtanh.pop %v2382
      %3055 = vrot.lane.b32.xlu0 %v604, 96
      %v3056 = vpop.permute.xlu0 %3055
      %3057 = vrot.lane.b32.xlu0 %v607, 96
      %v3058 = vpop.permute.xlu0 %3057
      %3059 = vrot.lane.b32.xlu0 %v610, 96
      %v3060 = vpop.permute.xlu0 %3059
      %3061 = vrot.lane.b32.xlu0 %v613, 96
      %v3062 = vpop.permute.xlu0 %3061
      %3063 = vrot.lane.b32.xlu0 %v616, 96
      %v3064 = vpop.permute.xlu0 %3063
      %3065 = vrot.lane.b32.xlu0 %v619, 96
      %v3066 = vpop.permute.xlu0 %3065
      %3067 = vrot.lane.b32.xlu0 %v622, 96
      %v3068 = vpop.permute.xlu0 %3067
      %3069 = vrot.lane.b32.xlu0 %v625, 96
      %v3070 = vpop.permute.xlu0 %3069
      %3071 = vrot.lane.b32.xlu0 %v628, 96
      %v3072 = vpop.permute.xlu0 %3071
      %3073 = vrot.lane.b32.xlu0 %v631, 96
      %v3074 = vpop.permute.xlu0 %3073
      %3075 = vrot.lane.b32.xlu0 %v634, 96
      %v3076 = vpop.permute.xlu0 %3075
      %3077 = vrot.lane.b32.xlu0 %v637, 96
      %v3078 = vpop.permute.xlu0 %3077
      %3079 = vrot.lane.b32.xlu0 %v640, 96
      %v3080 = vpop.permute.xlu0 %3079
      %3081 = vrot.lane.b32.xlu0 %v643, 96
      %v3082 = vpop.permute.xlu0 %3081
      %3083 = vrot.lane.b32.xlu0 %v646, 96
      %v3084 = vpop.permute.xlu0 %3083
      %3085 = vrot.lane.b32.xlu0 %v649, 96
      %v3086 = vpop.permute.xlu0 %3085
      %3087 = vrot.lane.b32.xlu0 %v652, 96
      %v3088 = vpop.permute.xlu0 %3087
      %3089 = vrot.lane.b32.xlu0 %v655, 96
      %v3090 = vpop.permute.xlu0 %3089
      %3091 = vrot.lane.b32.xlu0 %v658, 96
      %v3092 = vpop.permute.xlu0 %3091
      %3093 = vrot.lane.b32.xlu0 %v661, 96
      %v3094 = vpop.permute.xlu0 %3093
      %3095 = vrot.lane.b32.xlu0 %v664, 96
      %v3096 = vpop.permute.xlu0 %3095
      %3097 = vrot.lane.b32.xlu0 %v667, 96
      %v3098 = vpop.permute.xlu0 %3097
      %3099 = vrot.lane.b32.xlu0 %v670, 96
      %v3100 = vpop.permute.xlu0 %3099
      %3101 = vrot.lane.b32.xlu0 %v673, 96
      %v3102 = vpop.permute.xlu0 %3101
      %3103 = vrot.lane.b32.xlu0 %v676, 96
      %v3104 = vpop.permute.xlu0 %3103
      %3105 = vrot.lane.b32.xlu0 %v679, 96
      %v3106 = vpop.permute.xlu0 %3105
      %3107 = vrot.lane.b32.xlu0 %v682, 96
      %v3108 = vpop.permute.xlu0 %3107
      %3109 = vrot.lane.b32.xlu0 %v685, 96
      %v3110 = vpop.permute.xlu0 %3109
      %3111 = vrot.lane.b32.xlu0 %v688, 96
      %v3112 = vpop.permute.xlu0 %3111
      %3113 = vrot.lane.b32.xlu0 %v691, 96
      %v3114 = vpop.permute.xlu0 %3113
      %3115 = vrot.lane.b32.xlu0 %v694, 96
      %v3116 = vpop.permute.xlu0 %3115
      %3117 = vrot.lane.b32.xlu0 %v697, 96
      %v3118 = vpop.permute.xlu0 %3117
      %v3151 = vsel %vm891, %v3056, %v604
      %v3152 = vsel %vm891, %v3058, %v607
      %v3153 = vsel %vm891, %v3060, %v610
      %v3154 = vsel %vm891, %v3062, %v613
      %v3155 = vsel %vm891, %v3064, %v616
      %v3156 = vsel %vm891, %v3066, %v619
      %v3157 = vsel %vm891, %v3068, %v622
      %v3158 = vsel %vm891, %v3070, %v625
      %v3159 = vsel %vm891, %v3072, %v628
      %v3160 = vsel %vm891, %v3074, %v631
      %v3161 = vsel %vm891, %v3076, %v634
      %v3162 = vsel %vm891, %v3078, %v637
      %v3163 = vsel %vm891, %v3080, %v640
      %v3164 = vsel %vm891, %v3082, %v643
      %v3165 = vsel %vm891, %v3084, %v646
      %v3166 = vsel %vm891, %v3086, %v649
      %v3167 = vsel %vm891, %v3088, %v652
      %v3168 = vsel %vm891, %v3090, %v655
      %v3169 = vsel %vm891, %v3092, %v658
      %v3170 = vsel %vm891, %v3094, %v661
      %v3171 = vsel %vm891, %v3096, %v664
      %v3172 = vsel %vm891, %v3098, %v667
      %v3173 = vsel %vm891, %v3100, %v670
      %v3174 = vsel %vm891, %v3102, %v673
      %v3175 = vsel %vm891, %v3104, %v676
      %v3176 = vsel %vm891, %v3106, %v679
      %v3177 = vsel %vm891, %v3108, %v682
      %v3178 = vsel %vm891, %v3110, %v685
      %v3179 = vsel %vm891, %v3112, %v688
      %v3180 = vsel %vm891, %v3114, %v691
      %v3181 = vsel %vm891, %v3116, %v694
      %v3182 = vsel %vm891, %v3118, %v697
      %v3183 = vadd.f32 %v3151, %v1488
      %v3184 = vadd.f32 %v3152, %v1491
      %v3185 = vadd.f32 %v3153, %v1494
      %v3186 = vadd.f32 %v3154, %v1497
      %v3187 = vadd.f32 %v3155, %v1500
      %v3188 = vadd.f32 %v3156, %v1503
      %v3189 = vadd.f32 %v3157, %v1506
      %v3190 = vadd.f32 %v3158, %v1509
      %v3191 = vadd.f32 %v3159, %v1512
      %v3192 = vadd.f32 %v3160, %v1515
      %v3193 = vadd.f32 %v3161, %v1518
      %v3194 = vadd.f32 %v3162, %v1521
      %v3195 = vadd.f32 %v3163, %v1524
      %v3196 = vadd.f32 %v3164, %v1527
      %v3197 = vadd.f32 %v3165, %v1530
      %v3198 = vadd.f32 %v3166, %v1533
      %v3199 = vadd.f32 %v3167, %v1536
      %v3200 = vadd.f32 %v3168, %v1539
      %v3201 = vadd.f32 %v3169, %v1542
      %v3202 = vadd.f32 %v3170, %v1545
      %v3203 = vadd.f32 %v3171, %v1548
      %v3204 = vadd.f32 %v3172, %v1551
      %v3205 = vadd.f32 %v3173, %v1554
      %v3206 = vadd.f32 %v3174, %v1557
      %v3207 = vadd.f32 %v3175, %v1560
      %v3208 = vadd.f32 %v3176, %v1563
      %v3209 = vadd.f32 %v3177, %v1566
      %v3210 = vadd.f32 %v3178, %v1569
      %v3211 = vadd.f32 %v3179, %v1572
      %v3212 = vadd.f32 %v3180, %v1575
      %v3213 = vadd.f32 %v3181, %v1578
      %v3214 = vadd.f32 %v3182, %v1581
      %v3215 = vxor.u32 %v3183, 2147483648
      %v3216 = vxor.u32 %v3184, 2147483648
      %v3217 = vxor.u32 %v3185, 2147483648
      %v3218 = vxor.u32 %v3186, 2147483648
      %v3219 = vxor.u32 %v3187, 2147483648
      %v3220 = vxor.u32 %v3188, 2147483648
      %v3221 = vxor.u32 %v3189, 2147483648
      %v3222 = vxor.u32 %v3190, 2147483648
      %v3223 = vxor.u32 %v3191, 2147483648
      %v3224 = vxor.u32 %v3192, 2147483648
      %v3225 = vxor.u32 %v3193, 2147483648
      %v3226 = vxor.u32 %v3194, 2147483648
      %v3227 = vxor.u32 %v3195, 2147483648
      %v3228 = vxor.u32 %v3196, 2147483648
      %v3229 = vxor.u32 %v3197, 2147483648
      %v3230 = vxor.u32 %v3198, 2147483648
      %v3231 = vxor.u32 %v3199, 2147483648
      %v3232 = vxor.u32 %v3200, 2147483648
      %v3233 = vxor.u32 %v3201, 2147483648
      %v3234 = vxor.u32 %v3202, 2147483648
      %v3235 = vxor.u32 %v3203, 2147483648
      %v3236 = vxor.u32 %v3204, 2147483648
      %v3237 = vxor.u32 %v3205, 2147483648
      %v3238 = vxor.u32 %v3206, 2147483648
      %v3239 = vxor.u32 %v3207, 2147483648
      %v3240 = vxor.u32 %v3208, 2147483648
      %v3241 = vxor.u32 %v3209, 2147483648
      %v3242 = vxor.u32 %v3210, 2147483648
      %v3243 = vxor.u32 %v3211, 2147483648
      %v3244 = vxor.u32 %v3212, 2147483648
      %v3245 = vxor.u32 %v3213, 2147483648
      %v3246 = vxor.u32 %v3214, 2147483648
      %v3247 = vmul.f32 %v3215, 1.442695
      %v3248 = vpow.pop %v3247
      %v3249 = vmul.f32 %v3216, 1.442695
      %v3250 = vpow.pop %v3249
      %v3251 = vmul.f32 %v3217, 1.442695
      %v3252 = vpow.pop %v3251
      %v3253 = vmul.f32 %v3218, 1.442695
      %v3254 = vpow.pop %v3253
      %v3255 = vmul.f32 %v3219, 1.442695
      %v3256 = vpow.pop %v3255
      %v3257 = vmul.f32 %v3220, 1.442695
      %v3258 = vpow.pop %v3257
      %v3259 = vmul.f32 %v3221, 1.442695
      %v3260 = vpow.pop %v3259
      %v3261 = vmul.f32 %v3222, 1.442695
      %v3262 = vpow.pop %v3261
      %v3263 = vmul.f32 %v3223, 1.442695
      %v3264 = vpow.pop %v3263
      %v3265 = vmul.f32 %v3224, 1.442695
      %v3266 = vpow.pop %v3265
      %v3267 = vmul.f32 %v3225, 1.442695
      %v3268 = vpow.pop %v3267
      %v3269 = vmul.f32 %v3226, 1.442695
      %v3270 = vpow.pop %v3269
      %v3271 = vmul.f32 %v3227, 1.442695
      %v3272 = vpow.pop %v3271
      %v3273 = vmul.f32 %v3228, 1.442695
      %v3274 = vpow.pop %v3273
      %v3275 = vmul.f32 %v3229, 1.442695
      %v3276 = vpow.pop %v3275
      %v3277 = vmul.f32 %v3230, 1.442695
      %v3278 = vpow.pop %v3277
      %v3279 = vmul.f32 %v3231, 1.442695
      %v3280 = vpow.pop %v3279
      %v3281 = vmul.f32 %v3232, 1.442695
      %v3282 = vpow.pop %v3281
      %v3283 = vmul.f32 %v3233, 1.442695
      %v3284 = vpow.pop %v3283
      %v3285 = vmul.f32 %v3234, 1.442695
      %v3286 = vpow.pop %v3285
      %v3287 = vmul.f32 %v3235, 1.442695
      %v3288 = vpow.pop %v3287
      %v3289 = vmul.f32 %v3236, 1.442695
      %v3290 = vpow.pop %v3289
      %v3291 = vmul.f32 %v3237, 1.442695
      %v3292 = vpow.pop %v3291
      %v3293 = vmul.f32 %v3238, 1.442695
      %v3294 = vpow.pop %v3293
      %v3295 = vmul.f32 %v3239, 1.442695
      %v3296 = vpow.pop %v3295
      %v3297 = vmul.f32 %v3240, 1.442695
      %v3298 = vpow.pop %v3297
      %v3299 = vmul.f32 %v3241, 1.442695
      %v3300 = vpow.pop %v3299
      %v3301 = vmul.f32 %v3242, 1.442695
      %v3302 = vpow.pop %v3301
      %v3303 = vmul.f32 %v3243, 1.442695
      %v3304 = vpow.pop %v3303
      %v3305 = vmul.f32 %v3244, 1.442695
      %v3306 = vpow.pop %v3305
      %v3307 = vmul.f32 %v3245, 1.442695
      %v3308 = vpow.pop %v3307
      %v3309 = vmul.f32 %v3246, 1.442695
      %v3310 = vpow.pop %v3309
      %v3311 = vadd.f32 %v3248, 1.0
      %v3312 = vadd.f32 %v3250, 1.0
      %v3313 = vadd.f32 %v3252, 1.0
      %v3314 = vadd.f32 %v3254, 1.0
      %v3315 = vadd.f32 %v3256, 1.0
      %v3316 = vadd.f32 %v3258, 1.0
      %v3317 = vadd.f32 %v3260, 1.0
      %v3318 = vadd.f32 %v3262, 1.0
      %v3319 = vadd.f32 %v3264, 1.0
      %v3320 = vadd.f32 %v3266, 1.0
      %v3321 = vadd.f32 %v3268, 1.0
      %v3322 = vadd.f32 %v3270, 1.0
      %v3323 = vadd.f32 %v3272, 1.0
      %v3324 = vadd.f32 %v3274, 1.0
      %v3325 = vadd.f32 %v3276, 1.0
      %v3326 = vadd.f32 %v3278, 1.0
      %v3327 = vadd.f32 %v3280, 1.0
      %v3328 = vadd.f32 %v3282, 1.0
      %v3329 = vadd.f32 %v3284, 1.0
      %v3330 = vadd.f32 %v3286, 1.0
      %v3331 = vadd.f32 %v3288, 1.0
      %v3332 = vadd.f32 %v3290, 1.0
      %v3333 = vadd.f32 %v3292, 1.0
      %v3334 = vadd.f32 %v3294, 1.0
      %v3335 = vadd.f32 %v3296, 1.0
      %v3336 = vadd.f32 %v3298, 1.0
      %v3337 = vadd.f32 %v3300, 1.0
      %v3338 = vadd.f32 %v3302, 1.0
      %v3339 = vadd.f32 %v3304, 1.0
      %v3340 = vadd.f32 %v3306, 1.0
      %v3341 = vadd.f32 %v3308, 1.0
      %v3342 = vadd.f32 %v3310, 1.0
      %v3343 = vrcp.pop %v3311
      %v3344 = vmul.f32 %v3311, %v3343
      %v3345 = vsub.f32 1.0, %v3344
      %v3346 = vmul.f32 %v3343, %v3345
      %v3347 = vadd.f32 %v3343, %v3346
      %vm3348 = vweird.f32 %v3311
      %vm3349 = vweird.f32 %v3343
      %vm3350 = vmor %vm3348, %vm3349
      %v3351 = vsel %vm3350, %v3343, %v3347
      %v3352 = vand.u32 2147483647, %v3311
      %vm3353 = vcmp.eq.f32.partialorder %v3352, 8.507059e+37
      %v3354 = vand.u32 %v3311, 2147483648
      %v3355 = vor.u32 1.1754944e-38, %v3354
      %v3356 = vsel %vm3353, %v3355, %v3351
      %v3357 = vmul.f32 1.0, %v3356
      %v3358 = vrcp.pop %v3312
      %v3359 = vmul.f32 %v3312, %v3358
      %v3360 = vsub.f32 1.0, %v3359
      %v3361 = vmul.f32 %v3358, %v3360
      %v3362 = vadd.f32 %v3358, %v3361
      %vm3363 = vweird.f32 %v3312
      %vm3364 = vweird.f32 %v3358
      %vm3365 = vmor %vm3363, %vm3364
      %v3366 = vsel %vm3365, %v3358, %v3362
      %v3367 = vand.u32 2147483647, %v3312
      %vm3368 = vcmp.eq.f32.partialorder %v3367, 8.507059e+37
      %v3369 = vand.u32 %v3312, 2147483648
      %v3370 = vor.u32 1.1754944e-38, %v3369
      %v3371 = vsel %vm3368, %v3370, %v3366
      %v3372 = vmul.f32 1.0, %v3371
      %v3373 = vrcp.pop %v3313
      %v3374 = vmul.f32 %v3313, %v3373
      %v3375 = vsub.f32 1.0, %v3374
      %v3376 = vmul.f32 %v3373, %v3375
      %v3377 = vadd.f32 %v3373, %v3376
      %vm3378 = vweird.f32 %v3313
      %vm3379 = vweird.f32 %v3373
      %vm3380 = vmor %vm3378, %vm3379
      %v3381 = vsel %vm3380, %v3373, %v3377
      %v3382 = vand.u32 2147483647, %v3313
      %vm3383 = vcmp.eq.f32.partialorder %v3382, 8.507059e+37
      %v3384 = vand.u32 %v3313, 2147483648
      %v3385 = vor.u32 1.1754944e-38, %v3384
      %v3386 = vsel %vm3383, %v3385, %v3381
      %v3387 = vmul.f32 1.0, %v3386
      %v3388 = vrcp.pop %v3314
      %v3389 = vmul.f32 %v3314, %v3388
      %v3390 = vsub.f32 1.0, %v3389
      %v3391 = vmul.f32 %v3388, %v3390
      %v3392 = vadd.f32 %v3388, %v3391
      %vm3393 = vweird.f32 %v3314
      %vm3394 = vweird.f32 %v3388
      %vm3395 = vmor %vm3393, %vm3394
      %v3396 = vsel %vm3395, %v3388, %v3392
      %v3397 = vand.u32 2147483647, %v3314
      %vm3398 = vcmp.eq.f32.partialorder %v3397, 8.507059e+37
      %v3399 = vand.u32 %v3314, 2147483648
      %v3400 = vor.u32 1.1754944e-38, %v3399
      %v3401 = vsel %vm3398, %v3400, %v3396
      %v3402 = vmul.f32 1.0, %v3401
      %v3403 = vrcp.pop %v3315
      %v3404 = vmul.f32 %v3315, %v3403
      %v3405 = vsub.f32 1.0, %v3404
      %v3406 = vmul.f32 %v3403, %v3405
      %v3407 = vadd.f32 %v3403, %v3406
      %vm3408 = vweird.f32 %v3315
      %vm3409 = vweird.f32 %v3403
      %vm3410 = vmor %vm3408, %vm3409
      %v3411 = vsel %vm3410, %v3403, %v3407
      %v3412 = vand.u32 2147483647, %v3315
      %vm3413 = vcmp.eq.f32.partialorder %v3412, 8.507059e+37
      %v3414 = vand.u32 %v3315, 2147483648
      %v3415 = vor.u32 1.1754944e-38, %v3414
      %v3416 = vsel %vm3413, %v3415, %v3411
      %v3417 = vmul.f32 1.0, %v3416
      %v3418 = vrcp.pop %v3316
      %v3419 = vmul.f32 %v3316, %v3418
      %v3420 = vsub.f32 1.0, %v3419
      %v3421 = vmul.f32 %v3418, %v3420
      %v3422 = vadd.f32 %v3418, %v3421
      %vm3423 = vweird.f32 %v3316
      %vm3424 = vweird.f32 %v3418
      %vm3425 = vmor %vm3423, %vm3424
      %v3426 = vsel %vm3425, %v3418, %v3422
      %v3427 = vand.u32 2147483647, %v3316
      %vm3428 = vcmp.eq.f32.partialorder %v3427, 8.507059e+37
      %v3429 = vand.u32 %v3316, 2147483648
      %v3430 = vor.u32 1.1754944e-38, %v3429
      %v3431 = vsel %vm3428, %v3430, %v3426
      %v3432 = vmul.f32 1.0, %v3431
      %v3433 = vrcp.pop %v3317
      %v3434 = vmul.f32 %v3317, %v3433
      %v3435 = vsub.f32 1.0, %v3434
      %v3436 = vmul.f32 %v3433, %v3435
      %v3437 = vadd.f32 %v3433, %v3436
      %vm3438 = vweird.f32 %v3317
      %vm3439 = vweird.f32 %v3433
      %vm3440 = vmor %vm3438, %vm3439
      %v3441 = vsel %vm3440, %v3433, %v3437
      %v3442 = vand.u32 2147483647, %v3317
      %vm3443 = vcmp.eq.f32.partialorder %v3442, 8.507059e+37
      %v3444 = vand.u32 %v3317, 2147483648
      %v3445 = vor.u32 1.1754944e-38, %v3444
      %v3446 = vsel %vm3443, %v3445, %v3441
      %v3447 = vmul.f32 1.0, %v3446
      %v3448 = vrcp.pop %v3318
      %v3449 = vmul.f32 %v3318, %v3448
      %v3450 = vsub.f32 1.0, %v3449
      %v3451 = vmul.f32 %v3448, %v3450
      %v3452 = vadd.f32 %v3448, %v3451
      %vm3453 = vweird.f32 %v3318
      %vm3454 = vweird.f32 %v3448
      %vm3455 = vmor %vm3453, %vm3454
      %v3456 = vsel %vm3455, %v3448, %v3452
      %v3457 = vand.u32 2147483647, %v3318
      %vm3458 = vcmp.eq.f32.partialorder %v3457, 8.507059e+37
      %v3459 = vand.u32 %v3318, 2147483648
      %v3460 = vor.u32 1.1754944e-38, %v3459
      %v3461 = vsel %vm3458, %v3460, %v3456
      %v3462 = vmul.f32 1.0, %v3461
      %v3463 = vrcp.pop %v3319
      %v3464 = vmul.f32 %v3319, %v3463
      %v3465 = vsub.f32 1.0, %v3464
      %v3466 = vmul.f32 %v3463, %v3465
      %v3467 = vadd.f32 %v3463, %v3466
      %vm3468 = vweird.f32 %v3319
      %vm3469 = vweird.f32 %v3463
      %vm3470 = vmor %vm3468, %vm3469
      %v3471 = vsel %vm3470, %v3463, %v3467
      %v3472 = vand.u32 2147483647, %v3319
      %vm3473 = vcmp.eq.f32.partialorder %v3472, 8.507059e+37
      %v3474 = vand.u32 %v3319, 2147483648
      %v3475 = vor.u32 1.1754944e-38, %v3474
      %v3476 = vsel %vm3473, %v3475, %v3471
      %v3477 = vmul.f32 1.0, %v3476
      %v3478 = vrcp.pop %v3320
      %v3479 = vmul.f32 %v3320, %v3478
      %v3480 = vsub.f32 1.0, %v3479
      %v3481 = vmul.f32 %v3478, %v3480
      %v3482 = vadd.f32 %v3478, %v3481
      %vm3483 = vweird.f32 %v3320
      %vm3484 = vweird.f32 %v3478
      %vm3485 = vmor %vm3483, %vm3484
      %v3486 = vsel %vm3485, %v3478, %v3482
      %v3487 = vand.u32 2147483647, %v3320
      %vm3488 = vcmp.eq.f32.partialorder %v3487, 8.507059e+37
      %v3489 = vand.u32 %v3320, 2147483648
      %v3490 = vor.u32 1.1754944e-38, %v3489
      %v3491 = vsel %vm3488, %v3490, %v3486
      %v3492 = vmul.f32 1.0, %v3491
      %v3493 = vrcp.pop %v3321
      %v3494 = vmul.f32 %v3321, %v3493
      %v3495 = vsub.f32 1.0, %v3494
      %v3496 = vmul.f32 %v3493, %v3495
      %v3497 = vadd.f32 %v3493, %v3496
      %vm3498 = vweird.f32 %v3321
      %vm3499 = vweird.f32 %v3493
      %vm3500 = vmor %vm3498, %vm3499
      %v3501 = vsel %vm3500, %v3493, %v3497
      %v3502 = vand.u32 2147483647, %v3321
      %vm3503 = vcmp.eq.f32.partialorder %v3502, 8.507059e+37
      %v3504 = vand.u32 %v3321, 2147483648
      %v3505 = vor.u32 1.1754944e-38, %v3504
      %v3506 = vsel %vm3503, %v3505, %v3501
      %v3507 = vmul.f32 1.0, %v3506
      %v3508 = vrcp.pop %v3322
      %v3509 = vmul.f32 %v3322, %v3508
      %v3510 = vsub.f32 1.0, %v3509
      %v3511 = vmul.f32 %v3508, %v3510
      %v3512 = vadd.f32 %v3508, %v3511
      %vm3513 = vweird.f32 %v3322
      %vm3514 = vweird.f32 %v3508
      %vm3515 = vmor %vm3513, %vm3514
      %v3516 = vsel %vm3515, %v3508, %v3512
      %v3517 = vand.u32 2147483647, %v3322
      %vm3518 = vcmp.eq.f32.partialorder %v3517, 8.507059e+37
      %v3519 = vand.u32 %v3322, 2147483648
      %v3520 = vor.u32 1.1754944e-38, %v3519
      %v3521 = vsel %vm3518, %v3520, %v3516
      %v3522 = vmul.f32 1.0, %v3521
      %v3523 = vrcp.pop %v3323
      %v3524 = vmul.f32 %v3323, %v3523
      %v3525 = vsub.f32 1.0, %v3524
      %v3526 = vmul.f32 %v3523, %v3525
      %v3527 = vadd.f32 %v3523, %v3526
      %vm3528 = vweird.f32 %v3323
      %vm3529 = vweird.f32 %v3523
      %vm3530 = vmor %vm3528, %vm3529
      %v3531 = vsel %vm3530, %v3523, %v3527
      %v3532 = vand.u32 2147483647, %v3323
      %vm3533 = vcmp.eq.f32.partialorder %v3532, 8.507059e+37
      %v3534 = vand.u32 %v3323, 2147483648
      %v3535 = vor.u32 1.1754944e-38, %v3534
      %v3536 = vsel %vm3533, %v3535, %v3531
      %v3537 = vmul.f32 1.0, %v3536
      %v3538 = vrcp.pop %v3324
      %v3539 = vmul.f32 %v3324, %v3538
      %v3540 = vsub.f32 1.0, %v3539
      %v3541 = vmul.f32 %v3538, %v3540
      %v3542 = vadd.f32 %v3538, %v3541
      %vm3543 = vweird.f32 %v3324
      %vm3544 = vweird.f32 %v3538
      %vm3545 = vmor %vm3543, %vm3544
      %v3546 = vsel %vm3545, %v3538, %v3542
      %v3547 = vand.u32 2147483647, %v3324
      %vm3548 = vcmp.eq.f32.partialorder %v3547, 8.507059e+37
      %v3549 = vand.u32 %v3324, 2147483648
      %v3550 = vor.u32 1.1754944e-38, %v3549
      %v3551 = vsel %vm3548, %v3550, %v3546
      %v3552 = vmul.f32 1.0, %v3551
      %v3553 = vrcp.pop %v3325
      %v3554 = vmul.f32 %v3325, %v3553
      %v3555 = vsub.f32 1.0, %v3554
      %v3556 = vmul.f32 %v3553, %v3555
      %v3557 = vadd.f32 %v3553, %v3556
      %vm3558 = vweird.f32 %v3325
      %vm3559 = vweird.f32 %v3553
      %vm3560 = vmor %vm3558, %vm3559
      %v3561 = vsel %vm3560, %v3553, %v3557
      %v3562 = vand.u32 2147483647, %v3325
      %vm3563 = vcmp.eq.f32.partialorder %v3562, 8.507059e+37
      %v3564 = vand.u32 %v3325, 2147483648
      %v3565 = vor.u32 1.1754944e-38, %v3564
      %v3566 = vsel %vm3563, %v3565, %v3561
      %v3567 = vmul.f32 1.0, %v3566
      %v3568 = vrcp.pop %v3326
      %v3569 = vmul.f32 %v3326, %v3568
      %v3570 = vsub.f32 1.0, %v3569
      %v3571 = vmul.f32 %v3568, %v3570
      %v3572 = vadd.f32 %v3568, %v3571
      %vm3573 = vweird.f32 %v3326
      %vm3574 = vweird.f32 %v3568
      %vm3575 = vmor %vm3573, %vm3574
      %v3576 = vsel %vm3575, %v3568, %v3572
      %v3577 = vand.u32 2147483647, %v3326
      %vm3578 = vcmp.eq.f32.partialorder %v3577, 8.507059e+37
      %v3579 = vand.u32 %v3326, 2147483648
      %v3580 = vor.u32 1.1754944e-38, %v3579
      %v3581 = vsel %vm3578, %v3580, %v3576
      %v3582 = vmul.f32 1.0, %v3581
      %v3583 = vrcp.pop %v3327
      %v3584 = vmul.f32 %v3327, %v3583
      %v3585 = vsub.f32 1.0, %v3584
      %v3586 = vmul.f32 %v3583, %v3585
      %v3587 = vadd.f32 %v3583, %v3586
      %vm3588 = vweird.f32 %v3327
      %vm3589 = vweird.f32 %v3583
      %vm3590 = vmor %vm3588, %vm3589
      %v3591 = vsel %vm3590, %v3583, %v3587
      %v3592 = vand.u32 2147483647, %v3327
      %vm3593 = vcmp.eq.f32.partialorder %v3592, 8.507059e+37
      %v3594 = vand.u32 %v3327, 2147483648
      %v3595 = vor.u32 1.1754944e-38, %v3594
      %v3596 = vsel %vm3593, %v3595, %v3591
      %v3597 = vmul.f32 1.0, %v3596
      %v3598 = vrcp.pop %v3328
      %v3599 = vmul.f32 %v3328, %v3598
      %v3600 = vsub.f32 1.0, %v3599
      %v3601 = vmul.f32 %v3598, %v3600
      %v3602 = vadd.f32 %v3598, %v3601
      %vm3603 = vweird.f32 %v3328
      %vm3604 = vweird.f32 %v3598
      %vm3605 = vmor %vm3603, %vm3604
      %v3606 = vsel %vm3605, %v3598, %v3602
      %v3607 = vand.u32 2147483647, %v3328
      %vm3608 = vcmp.eq.f32.partialorder %v3607, 8.507059e+37
      %v3609 = vand.u32 %v3328, 2147483648
      %v3610 = vor.u32 1.1754944e-38, %v3609
      %v3611 = vsel %vm3608, %v3610, %v3606
      %v3612 = vmul.f32 1.0, %v3611
      %v3613 = vrcp.pop %v3329
      %v3614 = vmul.f32 %v3329, %v3613
      %v3615 = vsub.f32 1.0, %v3614
      %v3616 = vmul.f32 %v3613, %v3615
      %v3617 = vadd.f32 %v3613, %v3616
      %vm3618 = vweird.f32 %v3329
      %vm3619 = vweird.f32 %v3613
      %vm3620 = vmor %vm3618, %vm3619
      %v3621 = vsel %vm3620, %v3613, %v3617
      %v3622 = vand.u32 2147483647, %v3329
      %vm3623 = vcmp.eq.f32.partialorder %v3622, 8.507059e+37
      %v3624 = vand.u32 %v3329, 2147483648
      %v3625 = vor.u32 1.1754944e-38, %v3624
      %v3626 = vsel %vm3623, %v3625, %v3621
      %v3627 = vmul.f32 1.0, %v3626
      %v3628 = vrcp.pop %v3330
      %v3629 = vmul.f32 %v3330, %v3628
      %v3630 = vsub.f32 1.0, %v3629
      %v3631 = vmul.f32 %v3628, %v3630
      %v3632 = vadd.f32 %v3628, %v3631
      %vm3633 = vweird.f32 %v3330
      %vm3634 = vweird.f32 %v3628
      %vm3635 = vmor %vm3633, %vm3634
      %v3636 = vsel %vm3635, %v3628, %v3632
      %v3637 = vand.u32 2147483647, %v3330
      %vm3638 = vcmp.eq.f32.partialorder %v3637, 8.507059e+37
      %v3639 = vand.u32 %v3330, 2147483648
      %v3640 = vor.u32 1.1754944e-38, %v3639
      %v3641 = vsel %vm3638, %v3640, %v3636
      %v3642 = vmul.f32 1.0, %v3641
      %v3643 = vrcp.pop %v3331
      %v3644 = vmul.f32 %v3331, %v3643
      %v3645 = vsub.f32 1.0, %v3644
      %v3646 = vmul.f32 %v3643, %v3645
      %v3647 = vadd.f32 %v3643, %v3646
      %vm3648 = vweird.f32 %v3331
      %vm3649 = vweird.f32 %v3643
      %vm3650 = vmor %vm3648, %vm3649
      %v3651 = vsel %vm3650, %v3643, %v3647
      %v3652 = vand.u32 2147483647, %v3331
      %vm3653 = vcmp.eq.f32.partialorder %v3652, 8.507059e+37
      %v3654 = vand.u32 %v3331, 2147483648
      %v3655 = vor.u32 1.1754944e-38, %v3654
      %v3656 = vsel %vm3653, %v3655, %v3651
      %v3657 = vmul.f32 1.0, %v3656
      %v3658 = vrcp.pop %v3332
      %v3659 = vmul.f32 %v3332, %v3658
      %v3660 = vsub.f32 1.0, %v3659
      %v3661 = vmul.f32 %v3658, %v3660
      %v3662 = vadd.f32 %v3658, %v3661
      %vm3663 = vweird.f32 %v3332
      %vm3664 = vweird.f32 %v3658
      %vm3665 = vmor %vm3663, %vm3664
      %v3666 = vsel %vm3665, %v3658, %v3662
      %v3667 = vand.u32 2147483647, %v3332
      %vm3668 = vcmp.eq.f32.partialorder %v3667, 8.507059e+37
      %v3669 = vand.u32 %v3332, 2147483648
      %v3670 = vor.u32 1.1754944e-38, %v3669
      %v3671 = vsel %vm3668, %v3670, %v3666
      %v3672 = vmul.f32 1.0, %v3671
      %v3673 = vrcp.pop %v3333
      %v3674 = vmul.f32 %v3333, %v3673
      %v3675 = vsub.f32 1.0, %v3674
      %v3676 = vmul.f32 %v3673, %v3675
      %v3677 = vadd.f32 %v3673, %v3676
      %vm3678 = vweird.f32 %v3333
      %vm3679 = vweird.f32 %v3673
      %vm3680 = vmor %vm3678, %vm3679
      %v3681 = vsel %vm3680, %v3673, %v3677
      %v3682 = vand.u32 2147483647, %v3333
      %vm3683 = vcmp.eq.f32.partialorder %v3682, 8.507059e+37
      %v3684 = vand.u32 %v3333, 2147483648
      %v3685 = vor.u32 1.1754944e-38, %v3684
      %v3686 = vsel %vm3683, %v3685, %v3681
      %v3687 = vmul.f32 1.0, %v3686
      %v3688 = vrcp.pop %v3334
      %v3689 = vmul.f32 %v3334, %v3688
      %v3690 = vsub.f32 1.0, %v3689
      %v3691 = vmul.f32 %v3688, %v3690
      %v3692 = vadd.f32 %v3688, %v3691
      %vm3693 = vweird.f32 %v3334
      %vm3694 = vweird.f32 %v3688
      %vm3695 = vmor %vm3693, %vm3694
      %v3696 = vsel %vm3695, %v3688, %v3692
      %v3697 = vand.u32 2147483647, %v3334
      %vm3698 = vcmp.eq.f32.partialorder %v3697, 8.507059e+37
      %v3699 = vand.u32 %v3334, 2147483648
      %v3700 = vor.u32 1.1754944e-38, %v3699
      %v3701 = vsel %vm3698, %v3700, %v3696
      %v3702 = vmul.f32 1.0, %v3701
      %v3703 = vrcp.pop %v3335
      %v3704 = vmul.f32 %v3335, %v3703
      %v3705 = vsub.f32 1.0, %v3704
      %v3706 = vmul.f32 %v3703, %v3705
      %v3707 = vadd.f32 %v3703, %v3706
      %vm3708 = vweird.f32 %v3335
      %vm3709 = vweird.f32 %v3703
      %vm3710 = vmor %vm3708, %vm3709
      %v3711 = vsel %vm3710, %v3703, %v3707
      %v3712 = vand.u32 2147483647, %v3335
      %vm3713 = vcmp.eq.f32.partialorder %v3712, 8.507059e+37
      %v3714 = vand.u32 %v3335, 2147483648
      %v3715 = vor.u32 1.1754944e-38, %v3714
      %v3716 = vsel %vm3713, %v3715, %v3711
      %v3717 = vmul.f32 1.0, %v3716
      %v3718 = vrcp.pop %v3336
      %v3719 = vmul.f32 %v3336, %v3718
      %v3720 = vsub.f32 1.0, %v3719
      %v3721 = vmul.f32 %v3718, %v3720
      %v3722 = vadd.f32 %v3718, %v3721
      %vm3723 = vweird.f32 %v3336
      %vm3724 = vweird.f32 %v3718
      %vm3725 = vmor %vm3723, %vm3724
      %v3726 = vsel %vm3725, %v3718, %v3722
      %v3727 = vand.u32 2147483647, %v3336
      %vm3728 = vcmp.eq.f32.partialorder %v3727, 8.507059e+37
      %v3729 = vand.u32 %v3336, 2147483648
      %v3730 = vor.u32 1.1754944e-38, %v3729
      %v3731 = vsel %vm3728, %v3730, %v3726
      %v3732 = vmul.f32 1.0, %v3731
      %v3733 = vrcp.pop %v3337
      %v3734 = vmul.f32 %v3337, %v3733
      %v3735 = vsub.f32 1.0, %v3734
      %v3736 = vmul.f32 %v3733, %v3735
      %v3737 = vadd.f32 %v3733, %v3736
      %vm3738 = vweird.f32 %v3337
      %vm3739 = vweird.f32 %v3733
      %vm3740 = vmor %vm3738, %vm3739
      %v3741 = vsel %vm3740, %v3733, %v3737
      %v3742 = vand.u32 2147483647, %v3337
      %vm3743 = vcmp.eq.f32.partialorder %v3742, 8.507059e+37
      %v3744 = vand.u32 %v3337, 2147483648
      %v3745 = vor.u32 1.1754944e-38, %v3744
      %v3746 = vsel %vm3743, %v3745, %v3741
      %v3747 = vmul.f32 1.0, %v3746
      %v3748 = vrcp.pop %v3338
      %v3749 = vmul.f32 %v3338, %v3748
      %v3750 = vsub.f32 1.0, %v3749
      %v3751 = vmul.f32 %v3748, %v3750
      %v3752 = vadd.f32 %v3748, %v3751
      %vm3753 = vweird.f32 %v3338
      %vm3754 = vweird.f32 %v3748
      %vm3755 = vmor %vm3753, %vm3754
      %v3756 = vsel %vm3755, %v3748, %v3752
      %v3757 = vand.u32 2147483647, %v3338
      %vm3758 = vcmp.eq.f32.partialorder %v3757, 8.507059e+37
      %v3759 = vand.u32 %v3338, 2147483648
      %v3760 = vor.u32 1.1754944e-38, %v3759
      %v3761 = vsel %vm3758, %v3760, %v3756
      %v3762 = vmul.f32 1.0, %v3761
      %v3763 = vrcp.pop %v3339
      %v3764 = vmul.f32 %v3339, %v3763
      %v3765 = vsub.f32 1.0, %v3764
      %v3766 = vmul.f32 %v3763, %v3765
      %v3767 = vadd.f32 %v3763, %v3766
      %vm3768 = vweird.f32 %v3339
      %vm3769 = vweird.f32 %v3763
      %vm3770 = vmor %vm3768, %vm3769
      %v3771 = vsel %vm3770, %v3763, %v3767
      %v3772 = vand.u32 2147483647, %v3339
      %vm3773 = vcmp.eq.f32.partialorder %v3772, 8.507059e+37
      %v3774 = vand.u32 %v3339, 2147483648
      %v3775 = vor.u32 1.1754944e-38, %v3774
      %v3776 = vsel %vm3773, %v3775, %v3771
      %v3777 = vmul.f32 1.0, %v3776
      %v3778 = vrcp.pop %v3340
      %v3779 = vmul.f32 %v3340, %v3778
      %v3780 = vsub.f32 1.0, %v3779
      %v3781 = vmul.f32 %v3778, %v3780
      %v3782 = vadd.f32 %v3778, %v3781
      %vm3783 = vweird.f32 %v3340
      %vm3784 = vweird.f32 %v3778
      %vm3785 = vmor %vm3783, %vm3784
      %v3786 = vsel %vm3785, %v3778, %v3782
      %v3787 = vand.u32 2147483647, %v3340
      %vm3788 = vcmp.eq.f32.partialorder %v3787, 8.507059e+37
      %v3789 = vand.u32 %v3340, 2147483648
      %v3790 = vor.u32 1.1754944e-38, %v3789
      %v3791 = vsel %vm3788, %v3790, %v3786
      %v3792 = vmul.f32 1.0, %v3791
      %v3793 = vrcp.pop %v3341
      %v3794 = vmul.f32 %v3341, %v3793
      %v3795 = vsub.f32 1.0, %v3794
      %v3796 = vmul.f32 %v3793, %v3795
      %v3797 = vadd.f32 %v3793, %v3796
      %vm3798 = vweird.f32 %v3341
      %vm3799 = vweird.f32 %v3793
      %vm3800 = vmor %vm3798, %vm3799
      %v3801 = vsel %vm3800, %v3793, %v3797
      %v3802 = vand.u32 2147483647, %v3341
      %vm3803 = vcmp.eq.f32.partialorder %v3802, 8.507059e+37
      %v3804 = vand.u32 %v3341, 2147483648
      %v3805 = vor.u32 1.1754944e-38, %v3804
      %v3806 = vsel %vm3803, %v3805, %v3801
      %v3807 = vmul.f32 1.0, %v3806
      %v3808 = vrcp.pop %v3342
      %v3809 = vmul.f32 %v3342, %v3808
      %v3810 = vsub.f32 1.0, %v3809
      %v3811 = vmul.f32 %v3808, %v3810
      %v3812 = vadd.f32 %v3808, %v3811
      %vm3813 = vweird.f32 %v3342
      %vm3814 = vweird.f32 %v3808
      %vm3815 = vmor %vm3813, %vm3814
      %v3816 = vsel %vm3815, %v3808, %v3812
      %v3817 = vand.u32 2147483647, %v3342
      %vm3818 = vcmp.eq.f32.partialorder %v3817, 8.507059e+37
      %v3819 = vand.u32 %v3342, 2147483648
      %v3820 = vor.u32 1.1754944e-38, %v3819
      %v3821 = vsel %vm3818, %v3820, %v3816
      %v3822 = vmul.f32 1.0, %v3821
      %v3823 = vmul.f32 %v3357, %v1116
      %v3824 = vmul.f32 %v3372, %v1117
      %v3825 = vmul.f32 %v3387, %v1118
      %v3826 = vmul.f32 %v3402, %v1119
      %v3827 = vmul.f32 %v3417, %v1120
      %v3828 = vmul.f32 %v3432, %v1121
      %v3829 = vmul.f32 %v3447, %v1122
      %v3830 = vmul.f32 %v3462, %v1123
      %v3831 = vmul.f32 %v3477, %v1124
      %v3832 = vmul.f32 %v3492, %v1125
      %v3833 = vmul.f32 %v3507, %v1126
      %v3834 = vmul.f32 %v3522, %v1127
      %v3835 = vmul.f32 %v3537, %v1128
      %v3836 = vmul.f32 %v3552, %v1129
      %v3837 = vmul.f32 %v3567, %v1130
      %v3838 = vmul.f32 %v3582, %v1131
      %v3839 = vmul.f32 %v3597, %v1132
      %v3840 = vmul.f32 %v3612, %v1133
      %v3841 = vmul.f32 %v3627, %v1134
      %v3842 = vmul.f32 %v3642, %v1135
      %v3843 = vmul.f32 %v3657, %v1136
      %v3844 = vmul.f32 %v3672, %v1137
      %v3845 = vmul.f32 %v3687, %v1138
      %v3846 = vmul.f32 %v3702, %v1139
      %v3847 = vmul.f32 %v3717, %v1140
      %v3848 = vmul.f32 %v3732, %v1141
      %v3849 = vmul.f32 %v3747, %v1142
      %v3850 = vmul.f32 %v3762, %v1143
      %v3851 = vmul.f32 %v3777, %v1144
      %v3852 = vmul.f32 %v3792, %v1145
      %v3853 = vmul.f32 %v3807, %v1146
      %v3854 = vmul.f32 %v3822, %v1147
      %v3855 = vld [vmem:[%s9] sm:$0xff]
      %v3856 = vld [vmem:[%s9 + $0x8] sm:$0xff]
      %v3857 = vld [vmem:[%s9 + $0x10] sm:$0xff]
      %v3858 = vld [vmem:[%s9 + $0x18] sm:$0xff]
      %v3859 = vld [vmem:[%s9 + $0x20] sm:$0xff]
      %v3860 = vld [vmem:[%s9 + $0x28] sm:$0xff]
      %v3861 = vld [vmem:[%s9 + $0x30] sm:$0xff]
      %v3862 = vld [vmem:[%s9 + $0x38] sm:$0xff]
      %v3864 = vsel %vm1156, %v3823, 0
      %v3867 = vsel %vm1156, %v3824, 0
      %v3870 = vsel %vm1156, %v3825, 0
      %v3873 = vsel %vm1156, %v3826, 0
      %v3876 = vsel %vm1156, %v3827, 0
      %v3879 = vsel %vm1156, %v3828, 0
      %v3882 = vsel %vm1156, %v3829, 0
      %v3885 = vsel %vm1156, %v3830, 0
      %v3888 = vsel %vm1156, %v3831, 0
      %v3891 = vsel %vm1156, %v3832, 0
      %v3894 = vsel %vm1156, %v3833, 0
      %v3897 = vsel %vm1156, %v3834, 0
      %v3900 = vsel %vm1156, %v3835, 0
      %v3903 = vsel %vm1156, %v3836, 0
      %v3906 = vsel %vm1156, %v3837, 0
      %v3909 = vsel %vm1156, %v3838, 0
      %v3912 = vsel %vm1156, %v3839, 0
      %v3915 = vsel %vm1156, %v3840, 0
      %v3918 = vsel %vm1156, %v3841, 0
      %v3921 = vsel %vm1156, %v3842, 0
      %v3924 = vsel %vm1156, %v3843, 0
      %v3927 = vsel %vm1156, %v3844, 0
      %v3930 = vsel %vm1156, %v3845, 0
      %v3933 = vsel %vm1156, %v3846, 0
      %v3936 = vsel %vm1156, %v3847, 0
      %v3939 = vsel %vm1156, %v3848, 0
      %v3942 = vsel %vm1156, %v3849, 0
      %v3945 = vsel %vm1156, %v3850, 0
      %v3948 = vsel %vm1156, %v3851, 0
      %v3951 = vsel %vm1156, %v3852, 0
      %v3954 = vsel %vm1156, %v3853, 0
      %v3957 = vsel %vm1156, %v3854, 0
      %3959 = vmatpush.msra.mxu0 0.0
      %3960 = vmatpush.msra.mxu0 0.0
      %3961 = vmatpush.msra.mxu0 0.0
      %3962 = vmatpush.msra.mxu0 0.0
      %3963 = vmatpush.msra.mxu0 0.0
      %3964 = vmatpush.msra.mxu0 0.0
      %3965 = vmatpush.msra.mxu0 0.0
      %3966 = vmatpush.msra.mxu0 0.0
      %3967 = vmatpush.msra.mxu0 %v3862
      %3968 = vmatpush.msra.mxu0 %v3861
      %3969 = vmatpush.msra.mxu0 %v3860
      %3970 = vmatpush.msra.mxu0 %v3859
      %3971 = vmatpush.msra.mxu0 %v3858
      %3972 = vmatpush.msra.mxu0 %v3857
      %3973 = vmatpush.msra.mxu0 %v3856
      %3974 = vmatpush.msra.mxu0 %v3855
      %3975 = vmatmul.f32.gmra.mxu0 %v3864
      %v3976 = vpop.f32.mrf.mxu0
      %v3977 = vadd.f32 0.0, %v3976
      %3978 = vmatmul.f32.gmra.mxu0 %v3867
      %v3979 = vpop.f32.mrf.mxu0
      %v3980 = vadd.f32 0.0, %v3979
      %3981 = vmatmul.f32.gmra.mxu0 %v3870
      %v3982 = vpop.f32.mrf.mxu0
      %v3983 = vadd.f32 0.0, %v3982
      %3984 = vmatmul.f32.gmra.mxu0 %v3873
      %v3985 = vpop.f32.mrf.mxu0
      %v3986 = vadd.f32 0.0, %v3985
      %3987 = vmatmul.f32.gmra.mxu0 %v3876
      %v3988 = vpop.f32.mrf.mxu0
      %v3989 = vadd.f32 0.0, %v3988
      %3990 = vmatmul.f32.gmra.mxu0 %v3879
      %v3991 = vpop.f32.mrf.mxu0
      %v3992 = vadd.f32 0.0, %v3991
      %3993 = vmatmul.f32.gmra.mxu0 %v3882
      %v3994 = vpop.f32.mrf.mxu0
      %v3995 = vadd.f32 0.0, %v3994
      %3996 = vmatmul.f32.gmra.mxu0 %v3885
      %v3997 = vpop.f32.mrf.mxu0
      %v3998 = vadd.f32 0.0, %v3997
      %3999 = vmatmul.f32.gmra.mxu0 %v3888
      %v4000 = vpop.f32.mrf.mxu0
      %v4001 = vadd.f32 0.0, %v4000
      %4002 = vmatmul.f32.gmra.mxu0 %v3891
      %v4003 = vpop.f32.mrf.mxu0
      %v4004 = vadd.f32 0.0, %v4003
      %4005 = vmatmul.f32.gmra.mxu0 %v3894
      %v4006 = vpop.f32.mrf.mxu0
      %v4007 = vadd.f32 0.0, %v4006
      %4008 = vmatmul.f32.gmra.mxu0 %v3897
      %v4009 = vpop.f32.mrf.mxu0
      %v4010 = vadd.f32 0.0, %v4009
      %4011 = vmatmul.f32.gmra.mxu0 %v3900
      %v4012 = vpop.f32.mrf.mxu0
      %v4013 = vadd.f32 0.0, %v4012
      %4014 = vmatmul.f32.gmra.mxu0 %v3903
      %v4015 = vpop.f32.mrf.mxu0
      %v4016 = vadd.f32 0.0, %v4015
      %4017 = vmatmul.f32.gmra.mxu0 %v3906
      %v4018 = vpop.f32.mrf.mxu0
      %v4019 = vadd.f32 0.0, %v4018
      %4020 = vmatmul.f32.gmra.mxu0 %v3909
      %v4021 = vpop.f32.mrf.mxu0
      %v4022 = vadd.f32 0.0, %v4021
      %4023 = vmatmul.f32.gmra.mxu0 %v3912
      %v4024 = vpop.f32.mrf.mxu0
      %v4025 = vadd.f32 0.0, %v4024
      %4026 = vmatmul.f32.gmra.mxu0 %v3915
      %v4027 = vpop.f32.mrf.mxu0
      %v4028 = vadd.f32 0.0, %v4027
      %4029 = vmatmul.f32.gmra.mxu0 %v3918
      %v4030 = vpop.f32.mrf.mxu0
      %v4031 = vadd.f32 0.0, %v4030
      %4032 = vmatmul.f32.gmra.mxu0 %v3921
      %v4033 = vpop.f32.mrf.mxu0
      %v4034 = vadd.f32 0.0, %v4033
      %4035 = vmatmul.f32.gmra.mxu0 %v3924
      %v4036 = vpop.f32.mrf.mxu0
      %v4037 = vadd.f32 0.0, %v4036
      %4038 = vmatmul.f32.gmra.mxu0 %v3927
      %v4039 = vpop.f32.mrf.mxu0
      %v4040 = vadd.f32 0.0, %v4039
      %4041 = vmatmul.f32.gmra.mxu0 %v3930
      %v4042 = vpop.f32.mrf.mxu0
      %v4043 = vadd.f32 0.0, %v4042
      %4044 = vmatmul.f32.gmra.mxu0 %v3933
      %v4045 = vpop.f32.mrf.mxu0
      %v4046 = vadd.f32 0.0, %v4045
      %4047 = vmatmul.f32.gmra.mxu0 %v3936
      %v4048 = vpop.f32.mrf.mxu0
      %v4049 = vadd.f32 0.0, %v4048
      %4050 = vmatmul.f32.gmra.mxu0 %v3939
      %v4051 = vpop.f32.mrf.mxu0
      %v4052 = vadd.f32 0.0, %v4051
      %4053 = vmatmul.f32.gmra.mxu0 %v3942
      %v4054 = vpop.f32.mrf.mxu0
      %v4055 = vadd.f32 0.0, %v4054
      %4056 = vmatmul.f32.gmra.mxu0 %v3945
      %v4057 = vpop.f32.mrf.mxu0
      %v4058 = vadd.f32 0.0, %v4057
      %4059 = vmatmul.f32.gmra.mxu0 %v3948
      %v4060 = vpop.f32.mrf.mxu0
      %v4061 = vadd.f32 0.0, %v4060
      %4062 = vmatmul.f32.gmra.mxu0 %v3951
      %v4063 = vpop.f32.mrf.mxu0
      %v4064 = vadd.f32 0.0, %v4063
      %4065 = vmatmul.f32.gmra.mxu0 %v3954
      %v4066 = vpop.f32.mrf.mxu0
      %v4067 = vadd.f32 0.0, %v4066
      %4068 = vmatmul.f32.gmra.mxu0 %v3957
      %v4069 = vpop.f32.mrf.mxu0
      %v4070 = vadd.f32 0.0, %v4069
      %4071 = vdwg.mxu0
      %4104 = vrot.lane.b32.xlu0 %v2991, 32
      %v4105 = vpop.permute.xlu0 %4104
      %4106 = vrot.lane.b32.xlu0 %v2992, 32
      %v4107 = vpop.permute.xlu0 %4106
      %4108 = vrot.lane.b32.xlu0 %v2993, 32
      %v4109 = vpop.permute.xlu0 %4108
      %4110 = vrot.lane.b32.xlu0 %v2994, 32
      %v4111 = vpop.permute.xlu0 %4110
      %4112 = vrot.lane.b32.xlu0 %v2995, 32
      %v4113 = vpop.permute.xlu0 %4112
      %4114 = vrot.lane.b32.xlu0 %v2996, 32
      %v4115 = vpop.permute.xlu0 %4114
      %4116 = vrot.lane.b32.xlu0 %v2997, 32
      %v4117 = vpop.permute.xlu0 %4116
      %4118 = vrot.lane.b32.xlu0 %v2998, 32
      %v4119 = vpop.permute.xlu0 %4118
      %4120 = vrot.lane.b32.xlu0 %v2999, 32
      %v4121 = vpop.permute.xlu0 %4120
      %4122 = vrot.lane.b32.xlu0 %v3000, 32
      %v4123 = vpop.permute.xlu0 %4122
      %4124 = vrot.lane.b32.xlu0 %v3001, 32
      %v4125 = vpop.permute.xlu0 %4124
      %4126 = vrot.lane.b32.xlu0 %v3002, 32
      %v4127 = vpop.permute.xlu0 %4126
      %4128 = vrot.lane.b32.xlu0 %v3003, 32
      %v4129 = vpop.permute.xlu0 %4128
      %4130 = vrot.lane.b32.xlu0 %v3004, 32
      %v4131 = vpop.permute.xlu0 %4130
      %4132 = vrot.lane.b32.xlu0 %v3005, 32
      %v4133 = vpop.permute.xlu0 %4132
      %4134 = vrot.lane.b32.xlu0 %v3006, 32
      %v4135 = vpop.permute.xlu0 %4134
      %4136 = vrot.lane.b32.xlu0 %v3007, 32
      %v4137 = vpop.permute.xlu0 %4136
      %4138 = vrot.lane.b32.xlu0 %v3008, 32
      %v4139 = vpop.permute.xlu0 %4138
      %4140 = vrot.lane.b32.xlu0 %v3009, 32
      %v4141 = vpop.permute.xlu0 %4140
      %4142 = vrot.lane.b32.xlu0 %v3010, 32
      %v4143 = vpop.permute.xlu0 %4142
      %4144 = vrot.lane.b32.xlu0 %v3011, 32
      %v4145 = vpop.permute.xlu0 %4144
      %4146 = vrot.lane.b32.xlu0 %v3012, 32
      %v4147 = vpop.permute.xlu0 %4146
      %4148 = vrot.lane.b32.xlu0 %v3013, 32
      %v4149 = vpop.permute.xlu0 %4148
      %4150 = vrot.lane.b32.xlu0 %v3014, 32
      %v4151 = vpop.permute.xlu0 %4150
      %4152 = vrot.lane.b32.xlu0 %v3015, 32
      %v4153 = vpop.permute.xlu0 %4152
      %4154 = vrot.lane.b32.xlu0 %v3016, 32
      %v4155 = vpop.permute.xlu0 %4154
      %4156 = vrot.lane.b32.xlu0 %v3017, 32
      %v4157 = vpop.permute.xlu0 %4156
      %4158 = vrot.lane.b32.xlu0 %v3018, 32
      %v4159 = vpop.permute.xlu0 %4158
      %4160 = vrot.lane.b32.xlu0 %v3019, 32
      %v4161 = vpop.permute.xlu0 %4160
      %4162 = vrot.lane.b32.xlu0 %v3020, 32
      %v4163 = vpop.permute.xlu0 %4162
      %4164 = vrot.lane.b32.xlu0 %v3021, 32
      %v4165 = vpop.permute.xlu0 %4164
      %4166 = vrot.lane.b32.xlu0 %v3022, 32
      %v4167 = vpop.permute.xlu0 %4166
      %v4200 = vmul.f32 %v1757, %v4105
      %v4201 = vmul.f32 %v1772, %v4107
      %v4202 = vmul.f32 %v1787, %v4109
      %v4203 = vmul.f32 %v1802, %v4111
      %v4204 = vmul.f32 %v1817, %v4113
      %v4205 = vmul.f32 %v1832, %v4115
      %v4206 = vmul.f32 %v1847, %v4117
      %v4207 = vmul.f32 %v1862, %v4119
      %v4208 = vmul.f32 %v1877, %v4121
      %v4209 = vmul.f32 %v1892, %v4123
      %v4210 = vmul.f32 %v1907, %v4125
      %v4211 = vmul.f32 %v1922, %v4127
      %v4212 = vmul.f32 %v1937, %v4129
      %v4213 = vmul.f32 %v1952, %v4131
      %v4214 = vmul.f32 %v1967, %v4133
      %v4215 = vmul.f32 %v1982, %v4135
      %v4216 = vmul.f32 %v1997, %v4137
      %v4217 = vmul.f32 %v2012, %v4139
      %v4218 = vmul.f32 %v2027, %v4141
      %v4219 = vmul.f32 %v2042, %v4143
      %v4220 = vmul.f32 %v2057, %v4145
      %v4221 = vmul.f32 %v2072, %v4147
      %v4222 = vmul.f32 %v2087, %v4149
      %v4223 = vmul.f32 %v2102, %v4151
      %v4224 = vmul.f32 %v2117, %v4153
      %v4225 = vmul.f32 %v2132, %v4155
      %v4226 = vmul.f32 %v2147, %v4157
      %v4227 = vmul.f32 %v2162, %v4159
      %v4228 = vmul.f32 %v2177, %v4161
      %v4229 = vmul.f32 %v2192, %v4163
      %v4230 = vmul.f32 %v2207, %v4165
      %v4231 = vmul.f32 %v2222, %v4167
      %v4232 = vadd.f32 %v4200, %v3977
      %v4233 = vadd.f32 %v4201, %v3980
      %v4234 = vadd.f32 %v4202, %v3983
      %v4235 = vadd.f32 %v4203, %v3986
      %v4236 = vadd.f32 %v4204, %v3989
      %v4237 = vadd.f32 %v4205, %v3992
      %v4238 = vadd.f32 %v4206, %v3995
      %v4239 = vadd.f32 %v4207, %v3998
      %v4240 = vadd.f32 %v4208, %v4001
      %v4241 = vadd.f32 %v4209, %v4004
      %v4242 = vadd.f32 %v4210, %v4007
      %v4243 = vadd.f32 %v4211, %v4010
      %v4244 = vadd.f32 %v4212, %v4013
      %v4245 = vadd.f32 %v4213, %v4016
      %v4246 = vadd.f32 %v4214, %v4019
      %v4247 = vadd.f32 %v4215, %v4022
      %v4248 = vadd.f32 %v4216, %v4025
      %v4249 = vadd.f32 %v4217, %v4028
      %v4250 = vadd.f32 %v4218, %v4031
      %v4251 = vadd.f32 %v4219, %v4034
      %v4252 = vadd.f32 %v4220, %v4037
      %v4253 = vadd.f32 %v4221, %v4040
      %v4254 = vadd.f32 %v4222, %v4043
      %v4255 = vadd.f32 %v4223, %v4046
      %v4256 = vadd.f32 %v4224, %v4049
      %v4257 = vadd.f32 %v4225, %v4052
      %v4258 = vadd.f32 %v4226, %v4055
      %v4259 = vadd.f32 %v4227, %v4058
      %v4260 = vadd.f32 %v4228, %v4061
      %v4261 = vadd.f32 %v4229, %v4064
      %v4262 = vadd.f32 %v4230, %v4067
      %v4263 = vadd.f32 %v4231, %v4070
      %v4264 = vtanh.pop %v4232
      %v4265 = vtanh.pop %v4233
      %v4266 = vtanh.pop %v4234
      %v4267 = vtanh.pop %v4235
      %v4268 = vtanh.pop %v4236
      %v4269 = vtanh.pop %v4237
      %v4270 = vtanh.pop %v4238
      %v4271 = vtanh.pop %v4239
      %v4272 = vtanh.pop %v4240
      %v4273 = vtanh.pop %v4241
      %v4274 = vtanh.pop %v4242
      %v4275 = vtanh.pop %v4243
      %v4276 = vtanh.pop %v4244
      %v4277 = vtanh.pop %v4245
      %v4278 = vtanh.pop %v4246
      %v4279 = vtanh.pop %v4247
      %v4280 = vtanh.pop %v4248
      %v4281 = vtanh.pop %v4249
      %v4282 = vtanh.pop %v4250
      %v4283 = vtanh.pop %v4251
      %v4284 = vtanh.pop %v4252
      %v4285 = vtanh.pop %v4253
      %v4286 = vtanh.pop %v4254
      %v4287 = vtanh.pop %v4255
      %v4288 = vtanh.pop %v4256
      %v4289 = vtanh.pop %v4257
      %v4290 = vtanh.pop %v4258
      %v4291 = vtanh.pop %v4259
      %v4292 = vtanh.pop %v4260
      %v4293 = vtanh.pop %v4261
      %v4294 = vtanh.pop %v4262
      %v4295 = vtanh.pop %v4263
      %4328 = vrot.lane.b32.xlu0 %v4264, 64
      %v4329 = vpop.permute.xlu0 %4328
      %4330 = vrot.lane.b32.xlu0 %v4265, 64
      %v4331 = vpop.permute.xlu0 %4330
      %4332 = vrot.lane.b32.xlu0 %v4266, 64
      %v4333 = vpop.permute.xlu0 %4332
      %4334 = vrot.lane.b32.xlu0 %v4267, 64
      %v4335 = vpop.permute.xlu0 %4334
      %4336 = vrot.lane.b32.xlu0 %v4268, 64
      %v4337 = vpop.permute.xlu0 %4336
      %4338 = vrot.lane.b32.xlu0 %v4269, 64
      %v4339 = vpop.permute.xlu0 %4338
      %4340 = vrot.lane.b32.xlu0 %v4270, 64
      %v4341 = vpop.permute.xlu0 %4340
      %4342 = vrot.lane.b32.xlu0 %v4271, 64
      %v4343 = vpop.permute.xlu0 %4342
      %4344 = vrot.lane.b32.xlu0 %v4272, 64
      %v4345 = vpop.permute.xlu0 %4344
      %4346 = vrot.lane.b32.xlu0 %v4273, 64
      %v4347 = vpop.permute.xlu0 %4346
      %4348 = vrot.lane.b32.xlu0 %v4274, 64
      %v4349 = vpop.permute.xlu0 %4348
      %4350 = vrot.lane.b32.xlu0 %v4275, 64
      %v4351 = vpop.permute.xlu0 %4350
      %4352 = vrot.lane.b32.xlu0 %v4276, 64
      %v4353 = vpop.permute.xlu0 %4352
      %4354 = vrot.lane.b32.xlu0 %v4277, 64
      %v4355 = vpop.permute.xlu0 %4354
      %4356 = vrot.lane.b32.xlu0 %v4278, 64
      %v4357 = vpop.permute.xlu0 %4356
      %4358 = vrot.lane.b32.xlu0 %v4279, 64
      %v4359 = vpop.permute.xlu0 %4358
      %4360 = vrot.lane.b32.xlu0 %v4280, 64
      %v4361 = vpop.permute.xlu0 %4360
      %4362 = vrot.lane.b32.xlu0 %v4281, 64
      %v4363 = vpop.permute.xlu0 %4362
      %4364 = vrot.lane.b32.xlu0 %v4282, 64
      %v4365 = vpop.permute.xlu0 %4364
      %4366 = vrot.lane.b32.xlu0 %v4283, 64
      %v4367 = vpop.permute.xlu0 %4366
      %4368 = vrot.lane.b32.xlu0 %v4284, 64
      %v4369 = vpop.permute.xlu0 %4368
      %4370 = vrot.lane.b32.xlu0 %v4285, 64
      %v4371 = vpop.permute.xlu0 %4370
      %4372 = vrot.lane.b32.xlu0 %v4286, 64
      %v4373 = vpop.permute.xlu0 %4372
      %4374 = vrot.lane.b32.xlu0 %v4287, 64
      %v4375 = vpop.permute.xlu0 %4374
      %4376 = vrot.lane.b32.xlu0 %v4288, 64
      %v4377 = vpop.permute.xlu0 %4376
      %4378 = vrot.lane.b32.xlu0 %v4289, 64
      %v4379 = vpop.permute.xlu0 %4378
      %4380 = vrot.lane.b32.xlu0 %v4290, 64
      %v4381 = vpop.permute.xlu0 %4380
      %4382 = vrot.lane.b32.xlu0 %v4291, 64
      %v4383 = vpop.permute.xlu0 %4382
      %4384 = vrot.lane.b32.xlu0 %v4292, 64
      %v4385 = vpop.permute.xlu0 %4384
      %4386 = vrot.lane.b32.xlu0 %v4293, 64
      %v4387 = vpop.permute.xlu0 %4386
      %4388 = vrot.lane.b32.xlu0 %v4294, 64
      %v4389 = vpop.permute.xlu0 %4388
      %4390 = vrot.lane.b32.xlu0 %v4295, 64
      %v4391 = vpop.permute.xlu0 %4390
      %v4424 = vmul.f32 %v2525, %v4329
      %v4425 = vmul.f32 %v2540, %v4331
      %v4426 = vmul.f32 %v2555, %v4333
      %v4427 = vmul.f32 %v2570, %v4335
      %v4428 = vmul.f32 %v2585, %v4337
      %v4429 = vmul.f32 %v2600, %v4339
      %v4430 = vmul.f32 %v2615, %v4341
      %v4431 = vmul.f32 %v2630, %v4343
      %v4432 = vmul.f32 %v2645, %v4345
      %v4433 = vmul.f32 %v2660, %v4347
      %v4434 = vmul.f32 %v2675, %v4349
      %v4435 = vmul.f32 %v2690, %v4351
      %v4436 = vmul.f32 %v2705, %v4353
      %v4437 = vmul.f32 %v2720, %v4355
      %v4438 = vmul.f32 %v2735, %v4357
      %v4439 = vmul.f32 %v2750, %v4359
      %v4440 = vmul.f32 %v2765, %v4361
      %v4441 = vmul.f32 %v2780, %v4363
      %v4442 = vmul.f32 %v2795, %v4365
      %v4443 = vmul.f32 %v2810, %v4367
      %v4444 = vmul.f32 %v2825, %v4369
      %v4445 = vmul.f32 %v2840, %v4371
      %v4446 = vmul.f32 %v2855, %v4373
      %v4447 = vmul.f32 %v2870, %v4375
      %v4448 = vmul.f32 %v2885, %v4377
      %v4449 = vmul.f32 %v2900, %v4379
      %v4450 = vmul.f32 %v2915, %v4381
      %v4451 = vmul.f32 %v2930, %v4383
      %v4452 = vmul.f32 %v2945, %v4385
      %v4453 = vmul.f32 %v2960, %v4387
      %v4454 = vmul.f32 %v2975, %v4389
      %v4455 = vmul.f32 %v2990, %v4391
      %4488 = vrot.lane.b32.xlu0 %v4424, 64
      %v4489 = vpop.permute.xlu0 %4488
      %4490 = vrot.lane.b32.xlu0 %v4425, 64
      %v4491 = vpop.permute.xlu0 %4490
      %4492 = vrot.lane.b32.xlu0 %v4426, 64
      %v4493 = vpop.permute.xlu0 %4492
      %4494 = vrot.lane.b32.xlu0 %v4427, 64
      %v4495 = vpop.permute.xlu0 %4494
      %4496 = vrot.lane.b32.xlu0 %v4428, 64
      %v4497 = vpop.permute.xlu0 %4496
      %4498 = vrot.lane.b32.xlu0 %v4429, 64
      %v4499 = vpop.permute.xlu0 %4498
      %4500 = vrot.lane.b32.xlu0 %v4430, 64
      %v4501 = vpop.permute.xlu0 %4500
      %4502 = vrot.lane.b32.xlu0 %v4431, 64
      %v4503 = vpop.permute.xlu0 %4502
      %4504 = vrot.lane.b32.xlu0 %v4432, 64
      %v4505 = vpop.permute.xlu0 %4504
      %4506 = vrot.lane.b32.xlu0 %v4433, 64
      %v4507 = vpop.permute.xlu0 %4506
      %4508 = vrot.lane.b32.xlu0 %v4434, 64
      %v4509 = vpop.permute.xlu0 %4508
      %4510 = vrot.lane.b32.xlu0 %v4435, 64
      %v4511 = vpop.permute.xlu0 %4510
      %4512 = vrot.lane.b32.xlu0 %v4436, 64
      %v4513 = vpop.permute.xlu0 %4512
      %4514 = vrot.lane.b32.xlu0 %v4437, 64
      %v4515 = vpop.permute.xlu0 %4514
      %4516 = vrot.lane.b32.xlu0 %v4438, 64
      %v4517 = vpop.permute.xlu0 %4516
      %4518 = vrot.lane.b32.xlu0 %v4439, 64
      %v4519 = vpop.permute.xlu0 %4518
      %4520 = vrot.lane.b32.xlu0 %v4440, 64
      %v4521 = vpop.permute.xlu0 %4520
      %4522 = vrot.lane.b32.xlu0 %v4441, 64
      %v4523 = vpop.permute.xlu0 %4522
      %4524 = vrot.lane.b32.xlu0 %v4442, 64
      %v4525 = vpop.permute.xlu0 %4524
      %4526 = vrot.lane.b32.xlu0 %v4443, 64
      %v4527 = vpop.permute.xlu0 %4526
      %4528 = vrot.lane.b32.xlu0 %v4444, 64
      %v4529 = vpop.permute.xlu0 %4528
      %4530 = vrot.lane.b32.xlu0 %v4445, 64
      %v4531 = vpop.permute.xlu0 %4530
      %4532 = vrot.lane.b32.xlu0 %v4446, 64
      %v4533 = vpop.permute.xlu0 %4532
      %4534 = vrot.lane.b32.xlu0 %v4447, 64
      %v4535 = vpop.permute.xlu0 %4534
      %4536 = vrot.lane.b32.xlu0 %v4448, 64
      %v4537 = vpop.permute.xlu0 %4536
      %4538 = vrot.lane.b32.xlu0 %v4449, 64
      %v4539 = vpop.permute.xlu0 %4538
      %4540 = vrot.lane.b32.xlu0 %v4450, 64
      %v4541 = vpop.permute.xlu0 %4540
      %4542 = vrot.lane.b32.xlu0 %v4451, 64
      %v4543 = vpop.permute.xlu0 %4542
      %4544 = vrot.lane.b32.xlu0 %v4452, 64
      %v4545 = vpop.permute.xlu0 %4544
      %4546 = vrot.lane.b32.xlu0 %v4453, 64
      %v4547 = vpop.permute.xlu0 %4546
      %4548 = vrot.lane.b32.xlu0 %v4454, 64
      %v4549 = vpop.permute.xlu0 %4548
      %4550 = vrot.lane.b32.xlu0 %v4455, 64
      %v4551 = vpop.permute.xlu0 %4550
      %4616 = vrot.lane.b32.xlu0 %v4232, 32
      %v4617 = vpop.permute.xlu0 %4616
      %4618 = vrot.lane.b32.xlu0 %v4233, 32
      %v4619 = vpop.permute.xlu0 %4618
      %4620 = vrot.lane.b32.xlu0 %v4234, 32
      %v4621 = vpop.permute.xlu0 %4620
      %4622 = vrot.lane.b32.xlu0 %v4235, 32
      %v4623 = vpop.permute.xlu0 %4622
      %4624 = vrot.lane.b32.xlu0 %v4236, 32
      %v4625 = vpop.permute.xlu0 %4624
      %4626 = vrot.lane.b32.xlu0 %v4237, 32
      %v4627 = vpop.permute.xlu0 %4626
      %4628 = vrot.lane.b32.xlu0 %v4238, 32
      %v4629 = vpop.permute.xlu0 %4628
      %4630 = vrot.lane.b32.xlu0 %v4239, 32
      %v4631 = vpop.permute.xlu0 %4630
      %4632 = vrot.lane.b32.xlu0 %v4240, 32
      %v4633 = vpop.permute.xlu0 %4632
      %4634 = vrot.lane.b32.xlu0 %v4241, 32
      %v4635 = vpop.permute.xlu0 %4634
      %4636 = vrot.lane.b32.xlu0 %v4242, 32
      %v4637 = vpop.permute.xlu0 %4636
      %4638 = vrot.lane.b32.xlu0 %v4243, 32
      %v4639 = vpop.permute.xlu0 %4638
      %4640 = vrot.lane.b32.xlu0 %v4244, 32
      %v4641 = vpop.permute.xlu0 %4640
      %4642 = vrot.lane.b32.xlu0 %v4245, 32
      %v4643 = vpop.permute.xlu0 %4642
      %4644 = vrot.lane.b32.xlu0 %v4246, 32
      %v4645 = vpop.permute.xlu0 %4644
      %4646 = vrot.lane.b32.xlu0 %v4247, 32
      %v4647 = vpop.permute.xlu0 %4646
      %4648 = vrot.lane.b32.xlu0 %v4248, 32
      %v4649 = vpop.permute.xlu0 %4648
      %4650 = vrot.lane.b32.xlu0 %v4249, 32
      %v4651 = vpop.permute.xlu0 %4650
      %4652 = vrot.lane.b32.xlu0 %v4250, 32
      %v4653 = vpop.permute.xlu0 %4652
      %4654 = vrot.lane.b32.xlu0 %v4251, 32
      %v4655 = vpop.permute.xlu0 %4654
      %4656 = vrot.lane.b32.xlu0 %v4252, 32
      %v4657 = vpop.permute.xlu0 %4656
      %4658 = vrot.lane.b32.xlu0 %v4253, 32
      %v4659 = vpop.permute.xlu0 %4658
      %4660 = vrot.lane.b32.xlu0 %v4254, 32
      %v4661 = vpop.permute.xlu0 %4660
      %4662 = vrot.lane.b32.xlu0 %v4255, 32
      %v4663 = vpop.permute.xlu0 %4662
      %4664 = vrot.lane.b32.xlu0 %v4256, 32
      %v4665 = vpop.permute.xlu0 %4664
      %4666 = vrot.lane.b32.xlu0 %v4257, 32
      %v4667 = vpop.permute.xlu0 %4666
      %4668 = vrot.lane.b32.xlu0 %v4258, 32
      %v4669 = vpop.permute.xlu0 %4668
      %4670 = vrot.lane.b32.xlu0 %v4259, 32
      %v4671 = vpop.permute.xlu0 %4670
      %4672 = vrot.lane.b32.xlu0 %v4260, 32
      %v4673 = vpop.permute.xlu0 %4672
      %4674 = vrot.lane.b32.xlu0 %v4261, 32
      %v4675 = vpop.permute.xlu0 %4674
      %4676 = vrot.lane.b32.xlu0 %v4262, 32
      %v4677 = vpop.permute.xlu0 %4676
      %4678 = vrot.lane.b32.xlu0 %v4263, 32
      %v4679 = vpop.permute.xlu0 %4678
      %v4712 = vsel %vm891, %v4489, %v4617
      %v4713 = vsel %vm891, %v4491, %v4619
      %v4714 = vsel %vm891, %v4493, %v4621
      %v4715 = vsel %vm891, %v4495, %v4623
      %v4716 = vsel %vm891, %v4497, %v4625
      %v4717 = vsel %vm891, %v4499, %v4627
      %v4718 = vsel %vm891, %v4501, %v4629
      %v4719 = vsel %vm891, %v4503, %v4631
      %v4720 = vsel %vm891, %v4505, %v4633
      %v4721 = vsel %vm891, %v4507, %v4635
      %v4722 = vsel %vm891, %v4509, %v4637
      %v4723 = vsel %vm891, %v4511, %v4639
      %v4724 = vsel %vm891, %v4513, %v4641
      %v4725 = vsel %vm891, %v4515, %v4643
      %v4726 = vsel %vm891, %v4517, %v4645
      %v4727 = vsel %vm891, %v4519, %v4647
      %v4728 = vsel %vm891, %v4521, %v4649
      %v4729 = vsel %vm891, %v4523, %v4651
      %v4730 = vsel %vm891, %v4525, %v4653
      %v4731 = vsel %vm891, %v4527, %v4655
      %v4732 = vsel %vm891, %v4529, %v4657
      %v4733 = vsel %vm891, %v4531, %v4659
      %v4734 = vsel %vm891, %v4533, %v4661
      %v4735 = vsel %vm891, %v4535, %v4663
      %v4736 = vsel %vm891, %v4537, %v4665
      %v4737 = vsel %vm891, %v4539, %v4667
      %v4738 = vsel %vm891, %v4541, %v4669
      %v4739 = vsel %vm891, %v4543, %v4671
      %v4740 = vsel %vm891, %v4545, %v4673
      %v4741 = vsel %vm891, %v4547, %v4675
      %v4742 = vsel %vm891, %v4549, %v4677
      %v4743 = vsel %vm891, %v4551, %v4679
      %4744 = vst.msk [vmem:[%s449] sm:$0xff] %vm1156, %v4712
      %4745 = vst.msk [vmem:[%s449 + $0x8] sm:$0xff] %vm1156, %v4713
      %4746 = vst.msk [vmem:[%s449 + $0x10] sm:$0xff] %vm1156, %v4714
      %4747 = vst.msk [vmem:[%s449 + $0x18] sm:$0xff] %vm1156, %v4715
      %4748 = vst.msk [vmem:[%s449 + $0x20] sm:$0xff] %vm1156, %v4716
      %4749 = vst.msk [vmem:[%s449 + $0x28] sm:$0xff] %vm1156, %v4717
      %4750 = vst.msk [vmem:[%s449 + $0x30] sm:$0xff] %vm1156, %v4718
      %4751 = vst.msk [vmem:[%s449 + $0x38] sm:$0xff] %vm1156, %v4719
      %4752 = vst.msk [vmem:[%s449 + $0x40] sm:$0xff] %vm1156, %v4720
      %4753 = vst.msk [vmem:[%s449 + $0x48] sm:$0xff] %vm1156, %v4721
      %4754 = vst.msk [vmem:[%s449 + $0x50] sm:$0xff] %vm1156, %v4722
      %4755 = vst.msk [vmem:[%s449 + $0x58] sm:$0xff] %vm1156, %v4723
      %4756 = vst.msk [vmem:[%s449 + $0x60] sm:$0xff] %vm1156, %v4724
      %4757 = vst.msk [vmem:[%s449 + $0x68] sm:$0xff] %vm1156, %v4725
      %4758 = vst.msk [vmem:[%s449 + $0x70] sm:$0xff] %vm1156, %v4726
      %4759 = vst.msk [vmem:[%s449 + $0x78] sm:$0xff] %vm1156, %v4727
      %4760 = vst.msk [vmem:[%s449 + $0x80] sm:$0xff] %vm1156, %v4728
      %4761 = vst.msk [vmem:[%s449 + $0x88] sm:$0xff] %vm1156, %v4729
      %4762 = vst.msk [vmem:[%s449 + $0x90] sm:$0xff] %vm1156, %v4730
      %4763 = vst.msk [vmem:[%s449 + $0x98] sm:$0xff] %vm1156, %v4731
      %4764 = vst.msk [vmem:[%s449 + $0xa0] sm:$0xff] %vm1156, %v4732
      %4765 = vst.msk [vmem:[%s449 + $0xa8] sm:$0xff] %vm1156, %v4733
      %4766 = vst.msk [vmem:[%s449 + $0xb0] sm:$0xff] %vm1156, %v4734
      %4767 = vst.msk [vmem:[%s449 + $0xb8] sm:$0xff] %vm1156, %v4735
      %4768 = vst.msk [vmem:[%s449 + $0xc0] sm:$0xff] %vm1156, %v4736
      %4769 = vst.msk [vmem:[%s449 + $0xc8] sm:$0xff] %vm1156, %v4737
      %4770 = vst.msk [vmem:[%s449 + $0xd0] sm:$0xff] %vm1156, %v4738
      %4771 = vst.msk [vmem:[%s449 + $0xd8] sm:$0xff] %vm1156, %v4739
      %4772 = vst.msk [vmem:[%s449 + $0xe0] sm:$0xff] %vm1156, %v4740
      %4773 = vst.msk [vmem:[%s449 + $0xe8] sm:$0xff] %vm1156, %v4741
      %4774 = vst.msk [vmem:[%s449 + $0xf0] sm:$0xff] %vm1156, %v4742
      %4775 = vst.msk [vmem:[%s449 + $0xf8] sm:$0xff] %vm1156, %v4743
      %s4776 = smul.u32 32, %s21
      %p4777 = scmp.lt.s32.totalorder %s4776, 127
      %s4778 = scalar_select %p4777, %s4776, 127
      %s4779 = smul.addr %s4778, 8
      %s4780 = scalar_lea.vmem %s10, %s4779
      // Predicated region
      $region61: #{tpu_custom_call.1} parent=59 // pred_check
        %p4781 = pneg %p274
      $region62: #{tpu_custom_call.1} parent=59 // pred_check_branch
        %4783 = sbr.rel (%p4781) target = $region64
      $region63: #{tpu_custom_call.1} parent=59 // pred_region
        %s4784 = smul.u32 32, %s21
      $region64: #{tpu_custom_call.1} parent=59 // pred_fallthru
        _
    $region60: #{tpu_custom_call.1} parent=5 // pred_fallthru
      _
    %p4785 = scmp.le.s32.totalorder 2, %s16
    // Predicated region
    $region65: #{tpu_custom_call.1} parent=5 // pred_check
      %p4786 = pneg %p4785
    $region66: #{tpu_custom_call.1} parent=5 // pred_check_branch
      %4788 = sbr.rel (%p4786) target = $region68
    $region67: #{tpu_custom_call.1} parent=5 // pred_region
      %s4789 = ssub.s32 %s16, 2
      // Predicated region
      $region69: #{tpu_custom_call.1} parent=67 // pred_check
        %p4790 = pneg %p280
      $region70: #{tpu_custom_call.1} parent=67 // pred_check_branch
        %4792 = sbr.rel (%p4790) target = $region72
      $region71: #{tpu_custom_call.1} parent=67 // pred_region
        %s4793 = smul.u32 32, %s22
        %p4794 = scmp.lt.s32.totalorder %s4793, 127
        %s4795 = scalar_select %p4794, %s4793, 127
        %s4796 = smul.addr %s4795, 8
        %s4797 = scalar_lea.vmem %s10, %s4796
      $region72: #{tpu_custom_call.1} parent=67 // pred_fallthru
        _
    $region68: #{tpu_custom_call.1} parent=5 // pred_fallthru
      _
  $region6: #{tpu_custom_call.1} parent=0 // loop_footer
    %s20 = sadd.s32 1, %s16
  $region7: #{tpu_custom_call.1} parent=0 // loop_footer_branch
    %15 = sbr.rel target = $region3
  $region8: #{tpu_custom_call.1} parent=0 // loop_exit
    _

</llo_original>
